<compile_context>
chip_gen: v7x
topology: tpu7x:2x2x1
jax: 0.10.0
libtpu: 0.0.40
codegen_flags: <defaults>
</compile_context>

<pallas_src>
import functools
import math

import numpy as np

import jax
import jax.numpy as jnp
from jax.experimental import pallas as pl
from jax.experimental.pallas import tpu as pltpu

D_MODEL = 32
NHEAD = 4
DIM_FF = 64
NUM_LAYERS = 2
SEQ = 16
BATCH = 2
EPS = 1e-5


# ----------------------------- shared math ----------------------------------


def _ln(x, gamma, beta, eps=EPS):
    mu = jnp.mean(x, axis=-1, keepdims=True)
    var = jnp.mean((x - mu) ** 2, axis=-1, keepdims=True)
    return (x - mu) * jax.lax.rsqrt(var + eps) * gamma + beta


# ----------------------------- kernel ----------------------------------------


def _encoder_kernel(src_ref, pos_ref, w_ref, vec_ref, out_ref, *,
                    d, f, nhead, num_layers, batch, seq, use_final_norm):
    dh = d // nhead
    x = src_ref[...]          # (N*S, D) f32
    pos = pos_ref[...]        # (N*S, D) f32

    for l in range(num_layers):              # static unroll over layers
        # --- static slices into the packed weight / vector blobs -------------
        wqk = w_ref[l, 0:d, 0:2 * d]                 # (D, 2D)  bf16  [wq|wk], q pre-scaled
        wv = w_ref[l, 0:d, 2 * d:3 * d]              # (D, D)   bf16
        wo = w_ref[l, 0:d, 3 * d:4 * d]              # (D, D)   bf16
        w1 = w_ref[l, 0:d, 4 * d:4 * d + f]          # (D, F)   bf16
        w2 = w_ref[l, d:d + f, 0:d]                  # (F, D)   bf16

        vl = vec_ref[l]                              # (11, 64) f32
        bqk = vl[0:1, 0:2 * d]
        bv = vl[1:2, 0:d]
        bo = vl[2:3, 0:d]
        b1 = vl[3:4, 0:f]
        b2 = vl[4:5, 0:d]
        g1 = vl[5:6, 0:d]
        be1 = vl[6:7, 0:d]
        g2 = vl[7:8, 0:d]
        be2 = vl[8:9, 0:d]

        # --- fused projections (whole (N*S, D) block) -------------------------
        qk_b = (x + pos).astype(jnp.bfloat16)
        x_b = x.astype(jnp.bfloat16)
        qk = jnp.dot(qk_b, wqk, preferred_element_type=jnp.float32) + bqk   # (NS, 2D)
        v = jnp.dot(x_b, wv, preferred_element_type=jnp.float32) + bv       # (NS, D)

        # --- attention: per-(batch, head) score / softmax / PV (f32) ----------
        batch_outs = []
        for b in range(batch):               # static unroll
            r0, r1 = b * seq, (b + 1) * seq
            head_outs = []
            for h in range(nhead):           # static unroll
                c0, c1 = h * dh, (h + 1) * dh
                q_h = qk[r0:r1, c0:c1]                       # (S, dh)
                k_h = qk[r0:r1, d + c0:d + c1]               # (S, dh)
                v_h = v[r0:r1, c0:c1]                        # (S, dh)
                s = jnp.dot(q_h, k_h.T, preferred_element_type=jnp.float32)  # (S, S)
                s = s - jnp.max(s, axis=-1, keepdims=True)
                p = jnp.exp(s)
                p = p * pl.reciprocal(jnp.sum(p, axis=-1, keepdims=True),
                                      approx=True)
                head_outs.append(jnp.dot(p, v_h,
                                         preferred_element_type=jnp.float32))
            batch_outs.append(jnp.concatenate(head_outs, axis=-1))           # (S, D)
        attn_cat = jnp.concatenate(batch_outs, axis=0)                       # (NS, D)

        # --- single wide out-projection + residual + LN1 ----------------------
        attn = jnp.dot(attn_cat.astype(jnp.bfloat16), wo,
                       preferred_element_type=jnp.float32) + bo
        x = _ln(x + attn, g1, be1)

        # --- FFN + residual + LN2 ---------------------------------------------
        h1 = jnp.dot(x.astype(jnp.bfloat16), w1,
                     preferred_element_type=jnp.float32) + b1
        h1 = jnp.maximum(h1, 0.0)
        h2 = jnp.dot(h1.astype(jnp.bfloat16), w2,
                     preferred_element_type=jnp.float32) + b2
        x = _ln(x + h2, g2, be2)

    if use_final_norm:
        gf = vec_ref[0, 9:10, 0:d]
        bf = vec_ref[0, 10:11, 0:d]
        x = _ln(x, gf, bf)
    out_ref[...] = x


# ----------------------------- wrapper ----------------------------------------


def transformer_encoder(src_snd, pos_snd, packed):
    """src_snd / pos_snd: (S, N, D).  Returns (S, N, D)."""
    S, N, D = src_snd.shape
    meta = packed["meta"]
    L, F, H = meta["num_layers"], meta["f"], meta["nhead"]
    use_final = meta["use_final"]

    # Stack batch along the sublane axis: one (N*S, D) block for the whole kernel.
    x = jnp.transpose(src_snd, (1, 0, 2)).reshape(N * S, D)
    pos = jnp.transpose(pos_snd, (1, 0, 2)).reshape(N * S, D)

    W, V = packed["W"], packed["V"]

    kernel = functools.partial(
        _encoder_kernel, d=D, f=F, nhead=H, num_layers=L,
        batch=N, seq=S, use_final_norm=use_final)

    out = pl.pallas_call(
        kernel,
        out_shape=jax.ShapeDtypeStruct((N * S, D), jnp.float32),
        grid=(1,),
        in_specs=[
            pl.BlockSpec((N * S, D), lambda i: (0, 0)),        # src
            pl.BlockSpec((N * S, D), lambda i: (0, 0)),        # pos
            pl.BlockSpec(W.shape, lambda i: (0, 0, 0)),        # packed weights (bf16)
            pl.BlockSpec(V.shape, lambda i: (0, 0, 0)),        # packed biases/LN (f32)
        ],
        out_specs=pl.BlockSpec((N * S, D), lambda i: (0, 0)),
    )(x, pos, W, V)
    return jnp.transpose(out.reshape(N, S, D), (1, 0, 2))


# ----------------------------- params / packing -------------------------------


def init_layer_params(key, d, f):
    ks = jax.random.split(key, 8)
    s = 0.1
    return {
        "wqkv": jax.random.normal(ks[0], (3 * d, d), jnp.float32) * s,
        "bqkv": jax.random.normal(ks[1], (1, 3 * d), jnp.float32) * s,
        "wo":   jax.random.normal(ks[2], (d, d), jnp.float32) * s,
        "bo":   jax.random.normal(ks[3], (1, d), jnp.float32) * s,
        "w1":   jax.random.normal(ks[4], (f, d), jnp.float32) * s,
        "b1":   jax.random.normal(ks[5], (1, f), jnp.float32) * s,
        "w2":   jax.random.normal(ks[6], (d, f), jnp.float32) * s,
        "b2":   jax.random.normal(ks[7], (1, d), jnp.float32) * s,
        "g1":  jnp.ones((1, d), jnp.float32), "be1": jnp.zeros((1, d), jnp.float32),
        "g2":  jnp.ones((1, d), jnp.float32), "be2": jnp.zeros((1, d), jnp.float32),
    }


def pack_params(layer_params, nhead, norm_params=None, weight_dtype=jnp.bfloat16):
    """Host-side prep: pre-transpose, fold 1/sqrt(dh) into Q, pack into 2 blobs.

    Weight blob W (L, D+F, 4D+F) bf16:
      rows 0:D    -> [wq | wk | wv | wo | w1]   (each already transposed to (D, .))
      rows D:D+F  -> w2 (transposed, (F, D)) in cols 0:D
    Vector blob V (L, 11, max(2D, F)) f32:
      rows: 0=bq|bk, 1=bv, 2=bo, 3=b1, 4=b2, 5=g1, 6=be1, 7=g2, 8=be2,
      rows 9/10 of layer 0 hold the optional final LayerNorm gamma/beta.
    """
    L = len(layer_params)
    d = layer_params[0]["wo"].shape[0]
    f = layer_params[0]["w1"].shape[0]
    dh = d // nhead
    scale = 1.0 / math.sqrt(dh)

    W = np.zeros((L, d + f, 4 * d + f), np.float32)
    V = np.zeros((L, 11, max(2 * d, f)), np.float32)

    for i, p in enumerate(layer_params):
        Wqkv = np.asarray(p["wqkv"])
        Bqkv = np.asarray(p["bqkv"])[0]
        W[i, :d, 0:d] = Wqkv[:d].T * scale            # wq (scaled)
        W[i, :d, d:2 * d] = Wqkv[d:2 * d].T           # wk
        W[i, :d, 2 * d:3 * d] = Wqkv[2 * d:].T        # wv
        W[i, :d, 3 * d:4 * d] = np.asarray(p["wo"]).T
        W[i, :d, 4 * d:4 * d + f] = np.asarray(p["w1"]).T
        W[i, d:d + f, 0:d] = np.asarray(p["w2"]).T

        V[i, 0, 0:d] = Bqkv[:d] * scale
        V[i, 0, d:2 * d] = Bqkv[d:2 * d]
        V[i, 1, 0:d] = Bqkv[2 * d:]
        V[i, 2, 0:d] = np.asarray(p["bo"])[0]
        V[i, 3, 0:f] = np.asarray(p["b1"])[0]
        V[i, 4, 0:d] = np.asarray(p["b2"])[0]
        V[i, 5, 0:d] = np.asarray(p["g1"])[0]
        V[i, 6, 0:d] = np.asarray(p["be1"])[0]
        V[i, 7, 0:d] = np.asarray(p["g2"])[0]
        V[i, 8, 0:d] = np.asarray(p["be2"])[0]

    use_final = norm_params is not None
    if use_final:
        V[0, 9, 0:d] = np.asarray(norm_params["g"])[0]
        V[0, 10, 0:d] = np.asarray(norm_params["b"])[0]

    return {
        "W": jnp.asarray(W, weight_dtype),
        "V": jnp.asarray(V, jnp.float32),
        "meta": dict(d=d, f=f, nhead=nhead, num_layers=L, use_final=use_final),
    }


# ----------------------------- reference (f32, PyTorch math) ------------------


def _ref_layer_single(x, pos, p, nhead):
    D = x.shape[-1]
    dh = D // nhead
    qk_in = x + pos
    q = qk_in @ p["wqkv"][:D].T + p["bqkv"][0, :D]
    k = qk_in @ p["wqkv"][D:2 * D].T + p["bqkv"][0, D:2 * D]
    v = x @ p["wqkv"][2 * D:].T + p["bqkv"][0, 2 * D:]
    outs = []
    for h in range(nhead):
        lo, hi = h * dh, (h + 1) * dh
        s = (q[:, lo:hi] @ k[:, lo:hi].T) / jnp.sqrt(jnp.float32(dh))
        outs.append(jax.nn.softmax(s, axis=-1) @ v[:, lo:hi])
    attn = jnp.concatenate(outs, -1) @ p["wo"].T + p["bo"][0]
    x1 = _ln(x + attn, p["g1"][0], p["be1"][0])
    h1 = jnp.maximum(x1 @ p["w1"].T + p["b1"][0], 0.0)
    return _ln(x1 + h1 @ p["w2"].T + p["b2"][0], p["g2"][0], p["be2"][0])


def reference_encoder(src_snd, pos_snd, layer_params, norm_params, nhead=NHEAD):
    x = jnp.transpose(src_snd, (1, 0, 2))
    pos = jnp.transpose(pos_snd, (1, 0, 2))
    for p in layer_params:
        x = jax.vmap(lambda xi, pi: _ref_layer_single(xi, pi, p, nhead))(x, pos)
    if norm_params is not None:
        x = _ln(x, norm_params["g"][0], norm_params["b"][0])
    return jnp.transpose(x, (1, 0, 2))


# ----------------------------- main ------------------------------------------

if __name__ == "__main__":
    key = jax.random.PRNGKey(0)
    k_src, k_pos, k_params = jax.random.split(key, 3)

    src = jax.random.normal(k_src, (SEQ, BATCH, D_MODEL), jnp.float32)
    pos = jax.random.normal(k_pos, (SEQ, BATCH, D_MODEL), jnp.float32)

    layer_keys = jax.random.split(k_params, NUM_LAYERS)
    layer_params = [init_layer_params(k, D_MODEL, DIM_FF) for k in layer_keys]
    norm_params = {"g": jnp.ones((1, D_MODEL), jnp.float32),
                   "b": jnp.zeros((1, D_MODEL), jnp.float32)}

    packed = pack_params(layer_params, NHEAD, norm_params)

    out = transformer_encoder(src, pos, packed)
    out = jax.block_until_ready(out)

    ref = reference_encoder(src, pos, layer_params, norm_params)
    assert out.shape == src.shape and out.dtype == jnp.float32
    assert jnp.allclose(out, ref, atol=5e-2, rtol=5e-2)

    print("KERNEL_OK")
</pallas_src>

<mosaic_0001>
module attributes {stable_mosaic.version = 11 : i64} {
  func.func @_encoder_kernel(%arg0: i32, %arg1: memref<32x32xf32, #tpu.memory_space<vmem>>, %arg2: memref<32x32xf32, #tpu.memory_space<vmem>>, %arg3: memref<2x96x192xbf16, #tpu.memory_space<vmem>>, %arg4: memref<2x11x64xf32, #tpu.memory_space<vmem>>, %arg5: memref<32x32xf32, #tpu.memory_space<vmem>>) attributes {dimension_semantics = [#tpu.dimension_semantics<arbitrary>], iteration_bounds = array<i64: 1>, scalar_prefetch = 0 : i64, scratch_operands = 0 : i64, tpu.core_type = #tpu.core_type<tc>, window_params = [{pipeline_mode = #tpu.pipeline_mode<synchronous>, transform_indices = @transform_0, window_bounds = array<i64: 32, 32>}, {pipeline_mode = #tpu.pipeline_mode<synchronous>, transform_indices = @transform_1, window_bounds = array<i64: 32, 32>}, {pipeline_mode = #tpu.pipeline_mode<synchronous>, transform_indices = @transform_2, window_bounds = array<i64: 2, 96, 192>}, {pipeline_mode = #tpu.pipeline_mode<synchronous>, transform_indices = @transform_3, window_bounds = array<i64: 2, 11, 64>}, {pipeline_mode = #tpu.pipeline_mode<synchronous>, transform_indices = @transform_4, window_bounds = array<i64: 32, 32>}]} {
    %c0 = arith.constant 0 : index
    %c0_0 = arith.constant 0 : index
    %0 = vector.load %arg1[%c0, %c0_0] : memref<32x32xf32, #tpu.memory_space<vmem>>, vector<32x32xf32>
    %c0_1 = arith.constant 0 : index
    %c0_2 = arith.constant 0 : index
    %1 = vector.load %arg2[%c0_1, %c0_2] : memref<32x32xf32, #tpu.memory_space<vmem>>, vector<32x32xf32>
    %c0_3 = arith.constant 0 : index
    %c0_4 = arith.constant 0 : index
    %c0_5 = arith.constant 0 : index
    %2 = vector.load %arg3[%c0_3, %c0_4, %c0_5] : memref<2x96x192xbf16, #tpu.memory_space<vmem>>, vector<1x32x64xbf16>
    %3 = vector.shape_cast %2 : vector<1x32x64xbf16> to vector<32x64xbf16>
    %c0_6 = arith.constant 0 : index
    %c0_7 = arith.constant 0 : index
    %c64 = arith.constant 64 : index
    %4 = vector.load %arg3[%c0_6, %c0_7, %c64] : memref<2x96x192xbf16, #tpu.memory_space<vmem>>, vector<1x32x32xbf16>
    %5 = vector.shape_cast %4 : vector<1x32x32xbf16> to vector<32x32xbf16>
    %c0_8 = arith.constant 0 : index
    %c0_9 = arith.constant 0 : index
    %c96 = arith.constant 96 : index
    %6 = vector.load %arg3[%c0_8, %c0_9, %c96] : memref<2x96x192xbf16, #tpu.memory_space<vmem>>, vector<1x32x32xbf16>
    %7 = vector.shape_cast %6 : vector<1x32x32xbf16> to vector<32x32xbf16>
    %c0_10 = arith.constant 0 : index
    %c0_11 = arith.constant 0 : index
    %c128 = arith.constant 128 : index
    %8 = vector.load %arg3[%c0_10, %c0_11, %c128] : memref<2x96x192xbf16, #tpu.memory_space<vmem>>, vector<1x32x64xbf16>
    %9 = vector.shape_cast %8 : vector<1x32x64xbf16> to vector<32x64xbf16>
    %c0_12 = arith.constant 0 : index
    %c32 = arith.constant 32 : index
    %c0_13 = arith.constant 0 : index
    %10 = vector.load %arg3[%c0_12, %c32, %c0_13] : memref<2x96x192xbf16, #tpu.memory_space<vmem>>, vector<1x64x32xbf16>
    %11 = vector.shape_cast %10 : vector<1x64x32xbf16> to vector<64x32xbf16>
    %c0_14 = arith.constant 0 : index
    %c0_15 = arith.constant 0 : index
    %c0_16 = arith.constant 0 : index
    %12 = vector.load %arg4[%c0_14, %c0_15, %c0_16] : memref<2x11x64xf32, #tpu.memory_space<vmem>>, vector<1x11x64xf32>
    %13 = vector.shape_cast %12 : vector<1x11x64xf32> to vector<11x64xf32>
    %14 = vector.extract_strided_slice %13 {offsets = [0, 0], sizes = [1, 64], strides = [1, 1]} : vector<11x64xf32> to vector<1x64xf32>
    %15 = vector.extract_strided_slice %13 {offsets = [1, 0], sizes = [1, 32], strides = [1, 1]} : vector<11x64xf32> to vector<1x32xf32>
    %16 = vector.extract_strided_slice %13 {offsets = [2, 0], sizes = [1, 32], strides = [1, 1]} : vector<11x64xf32> to vector<1x32xf32>
    %17 = vector.extract_strided_slice %13 {offsets = [3, 0], sizes = [1, 64], strides = [1, 1]} : vector<11x64xf32> to vector<1x64xf32>
    %18 = vector.extract_strided_slice %13 {offsets = [4, 0], sizes = [1, 32], strides = [1, 1]} : vector<11x64xf32> to vector<1x32xf32>
    %19 = vector.extract_strided_slice %13 {offsets = [5, 0], sizes = [1, 32], strides = [1, 1]} : vector<11x64xf32> to vector<1x32xf32>
    %20 = vector.extract_strided_slice %13 {offsets = [6, 0], sizes = [1, 32], strides = [1, 1]} : vector<11x64xf32> to vector<1x32xf32>
    %21 = vector.extract_strided_slice %13 {offsets = [7, 0], sizes = [1, 32], strides = [1, 1]} : vector<11x64xf32> to vector<1x32xf32>
    %22 = vector.extract_strided_slice %13 {offsets = [8, 0], sizes = [1, 32], strides = [1, 1]} : vector<11x64xf32> to vector<1x32xf32>
    %23 = arith.addf %0, %1 : vector<32x32xf32>
    %24 = arith.truncf %23 : vector<32x32xf32> to vector<32x32xbf16>
    %25 = arith.truncf %0 : vector<32x32xf32> to vector<32x32xbf16>
    %cst = arith.constant dense<0.000000e+00> : vector<32x64xf32>
    %26 = tpu.matmul %24, %3, %cst {dimension_numbers = #tpu.dot_dimension_numbers<[1], [0], [0], [1], [0, 0, 1, 1], [], []>} : vector<32x32xbf16>, vector<32x64xbf16>, vector<32x64xf32> -> vector<32x64xf32>
    %27 = vector.broadcast %14 : vector<1x64xf32> to vector<32x64xf32>
    %28 = arith.addf %26, %27 : vector<32x64xf32>
    %cst_17 = arith.constant dense<0.000000e+00> : vector<32x32xf32>
    %29 = tpu.matmul %25, %5, %cst_17 {dimension_numbers = #tpu.dot_dimension_numbers<[1], [0], [0], [1], [0, 0, 1, 1], [], []>} : vector<32x32xbf16>, vector<32x32xbf16>, vector<32x32xf32> -> vector<32x32xf32>
    %30 = vector.broadcast %15 : vector<1x32xf32> to vector<32x32xf32>
    %31 = arith.addf %29, %30 : vector<32x32xf32>
    %32 = vector.extract_strided_slice %28 {offsets = [0, 0], sizes = [16, 8], strides = [1, 1]} : vector<32x64xf32> to vector<16x8xf32>
    %33 = vector.extract_strided_slice %28 {offsets = [0, 32], sizes = [16, 8], strides = [1, 1]} : vector<32x64xf32> to vector<16x8xf32>
    %34 = vector.extract_strided_slice %31 {offsets = [0, 0], sizes = [16, 8], strides = [1, 1]} : vector<32x32xf32> to vector<16x8xf32>
    %35 = tpu.transpose %33, [1, 0] : vector<16x8xf32> -> vector<8x16xf32>
    %cst_18 = arith.constant dense<0.000000e+00> : vector<16x16xf32>
    %36 = tpu.matmul %32, %35, %cst_18 {dimension_numbers = #tpu.dot_dimension_numbers<[1], [0], [0], [1], [0, 0, 1, 1], [], []>} : vector<16x8xf32>, vector<8x16xf32>, vector<16x16xf32> -> vector<16x16xf32>
    %cst_19 = arith.constant dense<0xFF800000> : vector<16xf32>
    %37 = vector.multi_reduction <maximumf>, %36, %cst_19 [1] : vector<16x16xf32> to vector<16xf32>
    %38 = vector.shape_cast %37 : vector<16xf32> to vector<16x1xf32>
    %39 = vector.broadcast %38 : vector<16x1xf32> to vector<16x16xf32>
    %40 = arith.subf %36, %39 : vector<16x16xf32>
    %41 = math.exp %40 : vector<16x16xf32>
    %cst_20 = arith.constant dense<0.000000e+00> : vector<16xf32>
    %42 = vector.multi_reduction <add>, %41, %cst_20 [1] : vector<16x16xf32> to vector<16xf32>
    %43 = vector.shape_cast %42 : vector<16xf32> to vector<16x1xf32>
    %44 = tpu.reciprocal %43 {approx = true} : vector<16x1xf32> -> vector<16x1xf32>
    %45 = vector.broadcast %44 : vector<16x1xf32> to vector<16x16xf32>
    %46 = arith.mulf %41, %45 : vector<16x16xf32>
    %cst_21 = arith.constant dense<0.000000e+00> : vector<16x8xf32>
    %47 = tpu.matmul %46, %34, %cst_21 {dimension_numbers = #tpu.dot_dimension_numbers<[1], [0], [0], [1], [0, 0, 1, 1], [], []>} : vector<16x16xf32>, vector<16x8xf32>, vector<16x8xf32> -> vector<16x8xf32>
    %48 = vector.extract_strided_slice %28 {offsets = [0, 8], sizes = [16, 8], strides = [1, 1]} : vector<32x64xf32> to vector<16x8xf32>
    %49 = vector.extract_strided_slice %28 {offsets = [0, 40], sizes = [16, 8], strides = [1, 1]} : vector<32x64xf32> to vector<16x8xf32>
    %50 = vector.extract_strided_slice %31 {offsets = [0, 8], sizes = [16, 8], strides = [1, 1]} : vector<32x32xf32> to vector<16x8xf32>
    %51 = tpu.transpose %49, [1, 0] : vector<16x8xf32> -> vector<8x16xf32>
    %cst_22 = arith.constant dense<0.000000e+00> : vector<16x16xf32>
    %52 = tpu.matmul %48, %51, %cst_22 {dimension_numbers = #tpu.dot_dimension_numbers<[1], [0], [0], [1], [0, 0, 1, 1], [], []>} : vector<16x8xf32>, vector<8x16xf32>, vector<16x16xf32> -> vector<16x16xf32>
    %cst_23 = arith.constant dense<0xFF800000> : vector<16xf32>
    %53 = vector.multi_reduction <maximumf>, %52, %cst_23 [1] : vector<16x16xf32> to vector<16xf32>
    %54 = vector.shape_cast %53 : vector<16xf32> to vector<16x1xf32>
    %55 = vector.broadcast %54 : vector<16x1xf32> to vector<16x16xf32>
    %56 = arith.subf %52, %55 : vector<16x16xf32>
    %57 = math.exp %56 : vector<16x16xf32>
    %cst_24 = arith.constant dense<0.000000e+00> : vector<16xf32>
    %58 = vector.multi_reduction <add>, %57, %cst_24 [1] : vector<16x16xf32> to vector<16xf32>
    %59 = vector.shape_cast %58 : vector<16xf32> to vector<16x1xf32>
    %60 = tpu.reciprocal %59 {approx = true} : vector<16x1xf32> -> vector<16x1xf32>
    %61 = vector.broadcast %60 : vector<16x1xf32> to vector<16x16xf32>
    %62 = arith.mulf %57, %61 : vector<16x16xf32>
    %cst_25 = arith.constant dense<0.000000e+00> : vector<16x8xf32>
    %63 = tpu.matmul %62, %50, %cst_25 {dimension_numbers = #tpu.dot_dimension_numbers<[1], [0], [0], [1], [0, 0, 1, 1], [], []>} : vector<16x16xf32>, vector<16x8xf32>, vector<16x8xf32> -> vector<16x8xf32>
    %64 = vector.extract_strided_slice %28 {offsets = [0, 16], sizes = [16, 8], strides = [1, 1]} : vector<32x64xf32> to vector<16x8xf32>
    %65 = vector.extract_strided_slice %28 {offsets = [0, 48], sizes = [16, 8], strides = [1, 1]} : vector<32x64xf32> to vector<16x8xf32>
    %66 = vector.extract_strided_slice %31 {offsets = [0, 16], sizes = [16, 8], strides = [1, 1]} : vector<32x32xf32> to vector<16x8xf32>
    %67 = tpu.transpose %65, [1, 0] : vector<16x8xf32> -> vector<8x16xf32>
    %cst_26 = arith.constant dense<0.000000e+00> : vector<16x16xf32>
    %68 = tpu.matmul %64, %67, %cst_26 {dimension_numbers = #tpu.dot_dimension_numbers<[1], [0], [0], [1], [0, 0, 1, 1], [], []>} : vector<16x8xf32>, vector<8x16xf32>, vector<16x16xf32> -> vector<16x16xf32>
    %cst_27 = arith.constant dense<0xFF800000> : vector<16xf32>
    %69 = vector.multi_reduction <maximumf>, %68, %cst_27 [1] : vector<16x16xf32> to vector<16xf32>
    %70 = vector.shape_cast %69 : vector<16xf32> to vector<16x1xf32>
    %71 = vector.broadcast %70 : vector<16x1xf32> to vector<16x16xf32>
    %72 = arith.subf %68, %71 : vector<16x16xf32>
    %73 = math.exp %72 : vector<16x16xf32>
    %cst_28 = arith.constant dense<0.000000e+00> : vector<16xf32>
    %74 = vector.multi_reduction <add>, %73, %cst_28 [1] : vector<16x16xf32> to vector<16xf32>
    %75 = vector.shape_cast %74 : vector<16xf32> to vector<16x1xf32>
    %76 = tpu.reciprocal %75 {approx = true} : vector<16x1xf32> -> vector<16x1xf32>
    %77 = vector.broadcast %76 : vector<16x1xf32> to vector<16x16xf32>
    %78 = arith.mulf %73, %77 : vector<16x16xf32>
    %cst_29 = arith.constant dense<0.000000e+00> : vector<16x8xf32>
    %79 = tpu.matmul %78, %66, %cst_29 {dimension_numbers = #tpu.dot_dimension_numbers<[1], [0], [0], [1], [0, 0, 1, 1], [], []>} : vector<16x16xf32>, vector<16x8xf32>, vector<16x8xf32> -> vector<16x8xf32>
    %80 = vector.extract_strided_slice %28 {offsets = [0, 24], sizes = [16, 8], strides = [1, 1]} : vector<32x64xf32> to vector<16x8xf32>
    %81 = vector.extract_strided_slice %28 {offsets = [0, 56], sizes = [16, 8], strides = [1, 1]} : vector<32x64xf32> to vector<16x8xf32>
    %82 = vector.extract_strided_slice %31 {offsets = [0, 24], sizes = [16, 8], strides = [1, 1]} : vector<32x32xf32> to vector<16x8xf32>
    %83 = tpu.transpose %81, [1, 0] : vector<16x8xf32> -> vector<8x16xf32>
    %cst_30 = arith.constant dense<0.000000e+00> : vector<16x16xf32>
    %84 = tpu.matmul %80, %83, %cst_30 {dimension_numbers = #tpu.dot_dimension_numbers<[1], [0], [0], [1], [0, 0, 1, 1], [], []>} : vector<16x8xf32>, vector<8x16xf32>, vector<16x16xf32> -> vector<16x16xf32>
    %cst_31 = arith.constant dense<0xFF800000> : vector<16xf32>
    %85 = vector.multi_reduction <maximumf>, %84, %cst_31 [1] : vector<16x16xf32> to vector<16xf32>
    %86 = vector.shape_cast %85 : vector<16xf32> to vector<16x1xf32>
    %87 = vector.broadcast %86 : vector<16x1xf32> to vector<16x16xf32>
    %88 = arith.subf %84, %87 : vector<16x16xf32>
    %89 = math.exp %88 : vector<16x16xf32>
    %cst_32 = arith.constant dense<0.000000e+00> : vector<16xf32>
    %90 = vector.multi_reduction <add>, %89, %cst_32 [1] : vector<16x16xf32> to vector<16xf32>
    %91 = vector.shape_cast %90 : vector<16xf32> to vector<16x1xf32>
    %92 = tpu.reciprocal %91 {approx = true} : vector<16x1xf32> -> vector<16x1xf32>
    %93 = vector.broadcast %92 : vector<16x1xf32> to vector<16x16xf32>
    %94 = arith.mulf %89, %93 : vector<16x16xf32>
    %cst_33 = arith.constant dense<0.000000e+00> : vector<16x8xf32>
    %95 = tpu.matmul %94, %82, %cst_33 {dimension_numbers = #tpu.dot_dimension_numbers<[1], [0], [0], [1], [0, 0, 1, 1], [], []>} : vector<16x16xf32>, vector<16x8xf32>, vector<16x8xf32> -> vector<16x8xf32>
    %96 = tpu.concatenate %47, %63, %79, %95 in 1 : vector<16x8xf32>, vector<16x8xf32>, vector<16x8xf32>, vector<16x8xf32> -> vector<16x32xf32>
    %97 = vector.extract_strided_slice %28 {offsets = [16, 0], sizes = [16, 8], strides = [1, 1]} : vector<32x64xf32> to vector<16x8xf32>
    %98 = vector.extract_strided_slice %28 {offsets = [16, 32], sizes = [16, 8], strides = [1, 1]} : vector<32x64xf32> to vector<16x8xf32>
    %99 = vector.extract_strided_slice %31 {offsets = [16, 0], sizes = [16, 8], strides = [1, 1]} : vector<32x32xf32> to vector<16x8xf32>
    %100 = tpu.transpose %98, [1, 0] : vector<16x8xf32> -> vector<8x16xf32>
    %cst_34 = arith.constant dense<0.000000e+00> : vector<16x16xf32>
    %101 = tpu.matmul %97, %100, %cst_34 {dimension_numbers = #tpu.dot_dimension_numbers<[1], [0], [0], [1], [0, 0, 1, 1], [], []>} : vector<16x8xf32>, vector<8x16xf32>, vector<16x16xf32> -> vector<16x16xf32>
    %cst_35 = arith.constant dense<0xFF800000> : vector<16xf32>
    %102 = vector.multi_reduction <maximumf>, %101, %cst_35 [1] : vector<16x16xf32> to vector<16xf32>
    %103 = vector.shape_cast %102 : vector<16xf32> to vector<16x1xf32>
    %104 = vector.broadcast %103 : vector<16x1xf32> to vector<16x16xf32>
    %105 = arith.subf %101, %104 : vector<16x16xf32>
    %106 = math.exp %105 : vector<16x16xf32>
    %cst_36 = arith.constant dense<0.000000e+00> : vector<16xf32>
    %107 = vector.multi_reduction <add>, %106, %cst_36 [1] : vector<16x16xf32> to vector<16xf32>
    %108 = vector.shape_cast %107 : vector<16xf32> to vector<16x1xf32>
    %109 = tpu.reciprocal %108 {approx = true} : vector<16x1xf32> -> vector<16x1xf32>
    %110 = vector.broadcast %109 : vector<16x1xf32> to vector<16x16xf32>
    %111 = arith.mulf %106, %110 : vector<16x16xf32>
    %cst_37 = arith.constant dense<0.000000e+00> : vector<16x8xf32>
    %112 = tpu.matmul %111, %99, %cst_37 {dimension_numbers = #tpu.dot_dimension_numbers<[1], [0], [0], [1], [0, 0, 1, 1], [], []>} : vector<16x16xf32>, vector<16x8xf32>, vector<16x8xf32> -> vector<16x8xf32>
    %113 = vector.extract_strided_slice %28 {offsets = [16, 8], sizes = [16, 8], strides = [1, 1]} : vector<32x64xf32> to vector<16x8xf32>
    %114 = vector.extract_strided_slice %28 {offsets = [16, 40], sizes = [16, 8], strides = [1, 1]} : vector<32x64xf32> to vector<16x8xf32>
    %115 = vector.extract_strided_slice %31 {offsets = [16, 8], sizes = [16, 8], strides = [1, 1]} : vector<32x32xf32> to vector<16x8xf32>
    %116 = tpu.transpose %114, [1, 0] : vector<16x8xf32> -> vector<8x16xf32>
    %cst_38 = arith.constant dense<0.000000e+00> : vector<16x16xf32>
    %117 = tpu.matmul %113, %116, %cst_38 {dimension_numbers = #tpu.dot_dimension_numbers<[1], [0], [0], [1], [0, 0, 1, 1], [], []>} : vector<16x8xf32>, vector<8x16xf32>, vector<16x16xf32> -> vector<16x16xf32>
    %cst_39 = arith.constant dense<0xFF800000> : vector<16xf32>
    %118 = vector.multi_reduction <maximumf>, %117, %cst_39 [1] : vector<16x16xf32> to vector<16xf32>
    %119 = vector.shape_cast %118 : vector<16xf32> to vector<16x1xf32>
    %120 = vector.broadcast %119 : vector<16x1xf32> to vector<16x16xf32>
    %121 = arith.subf %117, %120 : vector<16x16xf32>
    %122 = math.exp %121 : vector<16x16xf32>
    %cst_40 = arith.constant dense<0.000000e+00> : vector<16xf32>
    %123 = vector.multi_reduction <add>, %122, %cst_40 [1] : vector<16x16xf32> to vector<16xf32>
    %124 = vector.shape_cast %123 : vector<16xf32> to vector<16x1xf32>
    %125 = tpu.reciprocal %124 {approx = true} : vector<16x1xf32> -> vector<16x1xf32>
    %126 = vector.broadcast %125 : vector<16x1xf32> to vector<16x16xf32>
    %127 = arith.mulf %122, %126 : vector<16x16xf32>
    %cst_41 = arith.constant dense<0.000000e+00> : vector<16x8xf32>
    %128 = tpu.matmul %127, %115, %cst_41 {dimension_numbers = #tpu.dot_dimension_numbers<[1], [0], [0], [1], [0, 0, 1, 1], [], []>} : vector<16x16xf32>, vector<16x8xf32>, vector<16x8xf32> -> vector<16x8xf32>
    %129 = vector.extract_strided_slice %28 {offsets = [16, 16], sizes = [16, 8], strides = [1, 1]} : vector<32x64xf32> to vector<16x8xf32>
    %130 = vector.extract_strided_slice %28 {offsets = [16, 48], sizes = [16, 8], strides = [1, 1]} : vector<32x64xf32> to vector<16x8xf32>
    %131 = vector.extract_strided_slice %31 {offsets = [16, 16], sizes = [16, 8], strides = [1, 1]} : vector<32x32xf32> to vector<16x8xf32>
    %132 = tpu.transpose %130, [1, 0] : vector<16x8xf32> -> vector<8x16xf32>
    %cst_42 = arith.constant dense<0.000000e+00> : vector<16x16xf32>
    %133 = tpu.matmul %129, %132, %cst_42 {dimension_numbers = #tpu.dot_dimension_numbers<[1], [0], [0], [1], [0, 0, 1, 1], [], []>} : vector<16x8xf32>, vector<8x16xf32>, vector<16x16xf32> -> vector<16x16xf32>
    %cst_43 = arith.constant dense<0xFF800000> : vector<16xf32>
    %134 = vector.multi_reduction <maximumf>, %133, %cst_43 [1] : vector<16x16xf32> to vector<16xf32>
    %135 = vector.shape_cast %134 : vector<16xf32> to vector<16x1xf32>
    %136 = vector.broadcast %135 : vector<16x1xf32> to vector<16x16xf32>
    %137 = arith.subf %133, %136 : vector<16x16xf32>
    %138 = math.exp %137 : vector<16x16xf32>
    %cst_44 = arith.constant dense<0.000000e+00> : vector<16xf32>
    %139 = vector.multi_reduction <add>, %138, %cst_44 [1] : vector<16x16xf32> to vector<16xf32>
    %140 = vector.shape_cast %139 : vector<16xf32> to vector<16x1xf32>
    %141 = tpu.reciprocal %140 {approx = true} : vector<16x1xf32> -> vector<16x1xf32>
    %142 = vector.broadcast %141 : vector<16x1xf32> to vector<16x16xf32>
    %143 = arith.mulf %138, %142 : vector<16x16xf32>
    %cst_45 = arith.constant dense<0.000000e+00> : vector<16x8xf32>
    %144 = tpu.matmul %143, %131, %cst_45 {dimension_numbers = #tpu.dot_dimension_numbers<[1], [0], [0], [1], [0, 0, 1, 1], [], []>} : vector<16x16xf32>, vector<16x8xf32>, vector<16x8xf32> -> vector<16x8xf32>
    %145 = vector.extract_strided_slice %28 {offsets = [16, 24], sizes = [16, 8], strides = [1, 1]} : vector<32x64xf32> to vector<16x8xf32>
    %146 = vector.extract_strided_slice %28 {offsets = [16, 56], sizes = [16, 8], strides = [1, 1]} : vector<32x64xf32> to vector<16x8xf32>
    %147 = vector.extract_strided_slice %31 {offsets = [16, 24], sizes = [16, 8], strides = [1, 1]} : vector<32x32xf32> to vector<16x8xf32>
    %148 = tpu.transpose %146, [1, 0] : vector<16x8xf32> -> vector<8x16xf32>
    %cst_46 = arith.constant dense<0.000000e+00> : vector<16x16xf32>
    %149 = tpu.matmul %145, %148, %cst_46 {dimension_numbers = #tpu.dot_dimension_numbers<[1], [0], [0], [1], [0, 0, 1, 1], [], []>} : vector<16x8xf32>, vector<8x16xf32>, vector<16x16xf32> -> vector<16x16xf32>
    %cst_47 = arith.constant dense<0xFF800000> : vector<16xf32>
    %150 = vector.multi_reduction <maximumf>, %149, %cst_47 [1] : vector<16x16xf32> to vector<16xf32>
    %151 = vector.shape_cast %150 : vector<16xf32> to vector<16x1xf32>
    %152 = vector.broadcast %151 : vector<16x1xf32> to vector<16x16xf32>
    %153 = arith.subf %149, %152 : vector<16x16xf32>
    %154 = math.exp %153 : vector<16x16xf32>
    %cst_48 = arith.constant dense<0.000000e+00> : vector<16xf32>
    %155 = vector.multi_reduction <add>, %154, %cst_48 [1] : vector<16x16xf32> to vector<16xf32>
    %156 = vector.shape_cast %155 : vector<16xf32> to vector<16x1xf32>
    %157 = tpu.reciprocal %156 {approx = true} : vector<16x1xf32> -> vector<16x1xf32>
    %158 = vector.broadcast %157 : vector<16x1xf32> to vector<16x16xf32>
    %159 = arith.mulf %154, %158 : vector<16x16xf32>
    %cst_49 = arith.constant dense<0.000000e+00> : vector<16x8xf32>
    %160 = tpu.matmul %159, %147, %cst_49 {dimension_numbers = #tpu.dot_dimension_numbers<[1], [0], [0], [1], [0, 0, 1, 1], [], []>} : vector<16x16xf32>, vector<16x8xf32>, vector<16x8xf32> -> vector<16x8xf32>
    %161 = tpu.concatenate %112, %128, %144, %160 in 1 : vector<16x8xf32>, vector<16x8xf32>, vector<16x8xf32>, vector<16x8xf32> -> vector<16x32xf32>
    %162 = tpu.concatenate %96, %161 in 0 : vector<16x32xf32>, vector<16x32xf32> -> vector<32x32xf32>
    %163 = arith.truncf %162 : vector<32x32xf32> to vector<32x32xbf16>
    %cst_50 = arith.constant dense<0.000000e+00> : vector<32x32xf32>
    %164 = tpu.matmul %163, %7, %cst_50 {dimension_numbers = #tpu.dot_dimension_numbers<[1], [0], [0], [1], [0, 0, 1, 1], [], []>} : vector<32x32xbf16>, vector<32x32xbf16>, vector<32x32xf32> -> vector<32x32xf32>
    %165 = vector.broadcast %16 : vector<1x32xf32> to vector<32x32xf32>
    %166 = arith.addf %164, %165 : vector<32x32xf32>
    %167 = arith.addf %0, %166 : vector<32x32xf32>
    %cst_51 = arith.constant dense<0.000000e+00> : vector<32xf32>
    %168 = vector.multi_reduction <add>, %167, %cst_51 [1] : vector<32x32xf32> to vector<32xf32>
    %169 = vector.shape_cast %168 : vector<32xf32> to vector<32x1xf32>
    %cst_52 = arith.constant 3.200000e+01 : f32
    %170 = vector.broadcast %cst_52 : f32 to vector<32x1xf32>
    %171 = arith.divf %169, %170 : vector<32x1xf32>
    %172 = vector.broadcast %171 : vector<32x1xf32> to vector<32x32xf32>
    %173 = arith.subf %167, %172 : vector<32x32xf32>
    %174 = arith.mulf %173, %173 : vector<32x32xf32>
    %cst_53 = arith.constant dense<0.000000e+00> : vector<32xf32>
    %175 = vector.multi_reduction <add>, %174, %cst_53 [1] : vector<32x32xf32> to vector<32xf32>
    %176 = vector.shape_cast %175 : vector<32xf32> to vector<32x1xf32>
    %cst_54 = arith.constant 3.200000e+01 : f32
    %177 = vector.broadcast %cst_54 : f32 to vector<32x1xf32>
    %178 = arith.divf %176, %177 : vector<32x1xf32>
    %179 = vector.broadcast %171 : vector<32x1xf32> to vector<32x32xf32>
    %180 = arith.subf %167, %179 : vector<32x32xf32>
    %cst_55 = arith.constant 9.99999974E-6 : f32
    %181 = vector.broadcast %cst_55 : f32 to vector<32x1xf32>
    %182 = arith.addf %178, %181 : vector<32x1xf32>
    %183 = math.rsqrt %182 : vector<32x1xf32>
    %184 = vector.broadcast %183 : vector<32x1xf32> to vector<32x32xf32>
    %185 = arith.mulf %180, %184 : vector<32x32xf32>
    %186 = vector.broadcast %19 : vector<1x32xf32> to vector<32x32xf32>
    %187 = arith.mulf %185, %186 : vector<32x32xf32>
    %188 = vector.broadcast %20 : vector<1x32xf32> to vector<32x32xf32>
    %189 = arith.addf %187, %188 : vector<32x32xf32>
    %190 = arith.truncf %189 : vector<32x32xf32> to vector<32x32xbf16>
    %cst_56 = arith.constant dense<0.000000e+00> : vector<32x64xf32>
    %191 = tpu.matmul %190, %9, %cst_56 {dimension_numbers = #tpu.dot_dimension_numbers<[1], [0], [0], [1], [0, 0, 1, 1], [], []>} : vector<32x32xbf16>, vector<32x64xbf16>, vector<32x64xf32> -> vector<32x64xf32>
    %192 = vector.broadcast %17 : vector<1x64xf32> to vector<32x64xf32>
    %193 = arith.addf %191, %192 : vector<32x64xf32>
    %cst_57 = arith.constant 0.000000e+00 : f32
    %194 = vector.broadcast %cst_57 : f32 to vector<32x64xf32>
    %195 = arith.maximumf %193, %194 : vector<32x64xf32>
    %196 = arith.truncf %195 : vector<32x64xf32> to vector<32x64xbf16>
    %cst_58 = arith.constant dense<0.000000e+00> : vector<32x32xf32>
    %197 = tpu.matmul %196, %11, %cst_58 {dimension_numbers = #tpu.dot_dimension_numbers<[1], [0], [0], [1], [0, 0, 1, 1], [], []>} : vector<32x64xbf16>, vector<64x32xbf16>, vector<32x32xf32> -> vector<32x32xf32>
    %198 = vector.broadcast %18 : vector<1x32xf32> to vector<32x32xf32>
    %199 = arith.addf %197, %198 : vector<32x32xf32>
    %200 = arith.addf %189, %199 : vector<32x32xf32>
    %cst_59 = arith.constant dense<0.000000e+00> : vector<32xf32>
    %201 = vector.multi_reduction <add>, %200, %cst_59 [1] : vector<32x32xf32> to vector<32xf32>
    %202 = vector.shape_cast %201 : vector<32xf32> to vector<32x1xf32>
    %cst_60 = arith.constant 3.200000e+01 : f32
    %203 = vector.broadcast %cst_60 : f32 to vector<32x1xf32>
    %204 = arith.divf %202, %203 : vector<32x1xf32>
    %205 = vector.broadcast %204 : vector<32x1xf32> to vector<32x32xf32>
    %206 = arith.subf %200, %205 : vector<32x32xf32>
    %207 = arith.mulf %206, %206 : vector<32x32xf32>
    %cst_61 = arith.constant dense<0.000000e+00> : vector<32xf32>
    %208 = vector.multi_reduction <add>, %207, %cst_61 [1] : vector<32x32xf32> to vector<32xf32>
    %209 = vector.shape_cast %208 : vector<32xf32> to vector<32x1xf32>
    %cst_62 = arith.constant 3.200000e+01 : f32
    %210 = vector.broadcast %cst_62 : f32 to vector<32x1xf32>
    %211 = arith.divf %209, %210 : vector<32x1xf32>
    %212 = vector.broadcast %204 : vector<32x1xf32> to vector<32x32xf32>
    %213 = arith.subf %200, %212 : vector<32x32xf32>
    %cst_63 = arith.constant 9.99999974E-6 : f32
    %214 = vector.broadcast %cst_63 : f32 to vector<32x1xf32>
    %215 = arith.addf %211, %214 : vector<32x1xf32>
    %216 = math.rsqrt %215 : vector<32x1xf32>
    %217 = vector.broadcast %216 : vector<32x1xf32> to vector<32x32xf32>
    %218 = arith.mulf %213, %217 : vector<32x32xf32>
    %219 = vector.broadcast %21 : vector<1x32xf32> to vector<32x32xf32>
    %220 = arith.mulf %218, %219 : vector<32x32xf32>
    %221 = vector.broadcast %22 : vector<1x32xf32> to vector<32x32xf32>
    %222 = arith.addf %220, %221 : vector<32x32xf32>
    %c1 = arith.constant 1 : index
    %c0_64 = arith.constant 0 : index
    %c0_65 = arith.constant 0 : index
    %223 = vector.load %arg3[%c1, %c0_64, %c0_65] : memref<2x96x192xbf16, #tpu.memory_space<vmem>>, vector<1x32x64xbf16>
    %224 = vector.shape_cast %223 : vector<1x32x64xbf16> to vector<32x64xbf16>
    %c1_66 = arith.constant 1 : index
    %c0_67 = arith.constant 0 : index
    %c64_68 = arith.constant 64 : index
    %225 = vector.load %arg3[%c1_66, %c0_67, %c64_68] : memref<2x96x192xbf16, #tpu.memory_space<vmem>>, vector<1x32x32xbf16>
    %226 = vector.shape_cast %225 : vector<1x32x32xbf16> to vector<32x32xbf16>
    %c1_69 = arith.constant 1 : index
    %c0_70 = arith.constant 0 : index
    %c96_71 = arith.constant 96 : index
    %227 = vector.load %arg3[%c1_69, %c0_70, %c96_71] : memref<2x96x192xbf16, #tpu.memory_space<vmem>>, vector<1x32x32xbf16>
    %228 = vector.shape_cast %227 : vector<1x32x32xbf16> to vector<32x32xbf16>
    %c1_72 = arith.constant 1 : index
    %c0_73 = arith.constant 0 : index
    %c128_74 = arith.constant 128 : index
    %229 = vector.load %arg3[%c1_72, %c0_73, %c128_74] : memref<2x96x192xbf16, #tpu.memory_space<vmem>>, vector<1x32x64xbf16>
    %230 = vector.shape_cast %229 : vector<1x32x64xbf16> to vector<32x64xbf16>
    %c1_75 = arith.constant 1 : index
    %c32_76 = arith.constant 32 : index
    %c0_77 = arith.constant 0 : index
    %231 = vector.load %arg3[%c1_75, %c32_76, %c0_77] : memref<2x96x192xbf16, #tpu.memory_space<vmem>>, vector<1x64x32xbf16>
    %232 = vector.shape_cast %231 : vector<1x64x32xbf16> to vector<64x32xbf16>
    %c1_78 = arith.constant 1 : index
    %c0_79 = arith.constant 0 : index
    %c0_80 = arith.constant 0 : index
    %233 = vector.load %arg4[%c1_78, %c0_79, %c0_80] : memref<2x11x64xf32, #tpu.memory_space<vmem>>, vector<1x11x64xf32>
    %234 = vector.shape_cast %233 : vector<1x11x64xf32> to vector<11x64xf32>
    %235 = vector.extract_strided_slice %234 {offsets = [0, 0], sizes = [1, 64], strides = [1, 1]} : vector<11x64xf32> to vector<1x64xf32>
    %236 = vector.extract_strided_slice %234 {offsets = [1, 0], sizes = [1, 32], strides = [1, 1]} : vector<11x64xf32> to vector<1x32xf32>
    %237 = vector.extract_strided_slice %234 {offsets = [2, 0], sizes = [1, 32], strides = [1, 1]} : vector<11x64xf32> to vector<1x32xf32>
    %238 = vector.extract_strided_slice %234 {offsets = [3, 0], sizes = [1, 64], strides = [1, 1]} : vector<11x64xf32> to vector<1x64xf32>
    %239 = vector.extract_strided_slice %234 {offsets = [4, 0], sizes = [1, 32], strides = [1, 1]} : vector<11x64xf32> to vector<1x32xf32>
    %240 = vector.extract_strided_slice %234 {offsets = [5, 0], sizes = [1, 32], strides = [1, 1]} : vector<11x64xf32> to vector<1x32xf32>
    %241 = vector.extract_strided_slice %234 {offsets = [6, 0], sizes = [1, 32], strides = [1, 1]} : vector<11x64xf32> to vector<1x32xf32>
    %242 = vector.extract_strided_slice %234 {offsets = [7, 0], sizes = [1, 32], strides = [1, 1]} : vector<11x64xf32> to vector<1x32xf32>
    %243 = vector.extract_strided_slice %234 {offsets = [8, 0], sizes = [1, 32], strides = [1, 1]} : vector<11x64xf32> to vector<1x32xf32>
    %244 = arith.addf %222, %1 : vector<32x32xf32>
    %245 = arith.truncf %244 : vector<32x32xf32> to vector<32x32xbf16>
    %246 = arith.truncf %222 : vector<32x32xf32> to vector<32x32xbf16>
    %cst_81 = arith.constant dense<0.000000e+00> : vector<32x64xf32>
    %247 = tpu.matmul %245, %224, %cst_81 {dimension_numbers = #tpu.dot_dimension_numbers<[1], [0], [0], [1], [0, 0, 1, 1], [], []>} : vector<32x32xbf16>, vector<32x64xbf16>, vector<32x64xf32> -> vector<32x64xf32>
    %248 = vector.broadcast %235 : vector<1x64xf32> to vector<32x64xf32>
    %249 = arith.addf %247, %248 : vector<32x64xf32>
    %cst_82 = arith.constant dense<0.000000e+00> : vector<32x32xf32>
    %250 = tpu.matmul %246, %226, %cst_82 {dimension_numbers = #tpu.dot_dimension_numbers<[1], [0], [0], [1], [0, 0, 1, 1], [], []>} : vector<32x32xbf16>, vector<32x32xbf16>, vector<32x32xf32> -> vector<32x32xf32>
    %251 = vector.broadcast %236 : vector<1x32xf32> to vector<32x32xf32>
    %252 = arith.addf %250, %251 : vector<32x32xf32>
    %253 = vector.extract_strided_slice %249 {offsets = [0, 0], sizes = [16, 8], strides = [1, 1]} : vector<32x64xf32> to vector<16x8xf32>
    %254 = vector.extract_strided_slice %249 {offsets = [0, 32], sizes = [16, 8], strides = [1, 1]} : vector<32x64xf32> to vector<16x8xf32>
    %255 = vector.extract_strided_slice %252 {offsets = [0, 0], sizes = [16, 8], strides = [1, 1]} : vector<32x32xf32> to vector<16x8xf32>
    %256 = tpu.transpose %254, [1, 0] : vector<16x8xf32> -> vector<8x16xf32>
    %cst_83 = arith.constant dense<0.000000e+00> : vector<16x16xf32>
    %257 = tpu.matmul %253, %256, %cst_83 {dimension_numbers = #tpu.dot_dimension_numbers<[1], [0], [0], [1], [0, 0, 1, 1], [], []>} : vector<16x8xf32>, vector<8x16xf32>, vector<16x16xf32> -> vector<16x16xf32>
    %cst_84 = arith.constant dense<0xFF800000> : vector<16xf32>
    %258 = vector.multi_reduction <maximumf>, %257, %cst_84 [1] : vector<16x16xf32> to vector<16xf32>
    %259 = vector.shape_cast %258 : vector<16xf32> to vector<16x1xf32>
    %260 = vector.broadcast %259 : vector<16x1xf32> to vector<16x16xf32>
    %261 = arith.subf %257, %260 : vector<16x16xf32>
    %262 = math.exp %261 : vector<16x16xf32>
    %cst_85 = arith.constant dense<0.000000e+00> : vector<16xf32>
    %263 = vector.multi_reduction <add>, %262, %cst_85 [1] : vector<16x16xf32> to vector<16xf32>
    %264 = vector.shape_cast %263 : vector<16xf32> to vector<16x1xf32>
    %265 = tpu.reciprocal %264 {approx = true} : vector<16x1xf32> -> vector<16x1xf32>
    %266 = vector.broadcast %265 : vector<16x1xf32> to vector<16x16xf32>
    %267 = arith.mulf %262, %266 : vector<16x16xf32>
    %cst_86 = arith.constant dense<0.000000e+00> : vector<16x8xf32>
    %268 = tpu.matmul %267, %255, %cst_86 {dimension_numbers = #tpu.dot_dimension_numbers<[1], [0], [0], [1], [0, 0, 1, 1], [], []>} : vector<16x16xf32>, vector<16x8xf32>, vector<16x8xf32> -> vector<16x8xf32>
    %269 = vector.extract_strided_slice %249 {offsets = [0, 8], sizes = [16, 8], strides = [1, 1]} : vector<32x64xf32> to vector<16x8xf32>
    %270 = vector.extract_strided_slice %249 {offsets = [0, 40], sizes = [16, 8], strides = [1, 1]} : vector<32x64xf32> to vector<16x8xf32>
    %271 = vector.extract_strided_slice %252 {offsets = [0, 8], sizes = [16, 8], strides = [1, 1]} : vector<32x32xf32> to vector<16x8xf32>
    %272 = tpu.transpose %270, [1, 0] : vector<16x8xf32> -> vector<8x16xf32>
    %cst_87 = arith.constant dense<0.000000e+00> : vector<16x16xf32>
    %273 = tpu.matmul %269, %272, %cst_87 {dimension_numbers = #tpu.dot_dimension_numbers<[1], [0], [0], [1], [0, 0, 1, 1], [], []>} : vector<16x8xf32>, vector<8x16xf32>, vector<16x16xf32> -> vector<16x16xf32>
    %cst_88 = arith.constant dense<0xFF800000> : vector<16xf32>
    %274 = vector.multi_reduction <maximumf>, %273, %cst_88 [1] : vector<16x16xf32> to vector<16xf32>
    %275 = vector.shape_cast %274 : vector<16xf32> to vector<16x1xf32>
    %276 = vector.broadcast %275 : vector<16x1xf32> to vector<16x16xf32>
    %277 = arith.subf %273, %276 : vector<16x16xf32>
    %278 = math.exp %277 : vector<16x16xf32>
    %cst_89 = arith.constant dense<0.000000e+00> : vector<16xf32>
    %279 = vector.multi_reduction <add>, %278, %cst_89 [1] : vector<16x16xf32> to vector<16xf32>
    %280 = vector.shape_cast %279 : vector<16xf32> to vector<16x1xf32>
    %281 = tpu.reciprocal %280 {approx = true} : vector<16x1xf32> -> vector<16x1xf32>
    %282 = vector.broadcast %281 : vector<16x1xf32> to vector<16x16xf32>
    %283 = arith.mulf %278, %282 : vector<16x16xf32>
    %cst_90 = arith.constant dense<0.000000e+00> : vector<16x8xf32>
    %284 = tpu.matmul %283, %271, %cst_90 {dimension_numbers = #tpu.dot_dimension_numbers<[1], [0], [0], [1], [0, 0, 1, 1], [], []>} : vector<16x16xf32>, vector<16x8xf32>, vector<16x8xf32> -> vector<16x8xf32>
    %285 = vector.extract_strided_slice %249 {offsets = [0, 16], sizes = [16, 8], strides = [1, 1]} : vector<32x64xf32> to vector<16x8xf32>
    %286 = vector.extract_strided_slice %249 {offsets = [0, 48], sizes = [16, 8], strides = [1, 1]} : vector<32x64xf32> to vector<16x8xf32>
    %287 = vector.extract_strided_slice %252 {offsets = [0, 16], sizes = [16, 8], strides = [1, 1]} : vector<32x32xf32> to vector<16x8xf32>
    %288 = tpu.transpose %286, [1, 0] : vector<16x8xf32> -> vector<8x16xf32>
    %cst_91 = arith.constant dense<0.000000e+00> : vector<16x16xf32>
    %289 = tpu.matmul %285, %288, %cst_91 {dimension_numbers = #tpu.dot_dimension_numbers<[1], [0], [0], [1], [0, 0, 1, 1], [], []>} : vector<16x8xf32>, vector<8x16xf32>, vector<16x16xf32> -> vector<16x16xf32>
    %cst_92 = arith.constant dense<0xFF800000> : vector<16xf32>
    %290 = vector.multi_reduction <maximumf>, %289, %cst_92 [1] : vector<16x16xf32> to vector<16xf32>
    %291 = vector.shape_cast %290 : vector<16xf32> to vector<16x1xf32>
    %292 = vector.broadcast %291 : vector<16x1xf32> to vector<16x16xf32>
    %293 = arith.subf %289, %292 : vector<16x16xf32>
    %294 = math.exp %293 : vector<16x16xf32>
    %cst_93 = arith.constant dense<0.000000e+00> : vector<16xf32>
    %295 = vector.multi_reduction <add>, %294, %cst_93 [1] : vector<16x16xf32> to vector<16xf32>
    %296 = vector.shape_cast %295 : vector<16xf32> to vector<16x1xf32>
    %297 = tpu.reciprocal %296 {approx = true} : vector<16x1xf32> -> vector<16x1xf32>
    %298 = vector.broadcast %297 : vector<16x1xf32> to vector<16x16xf32>
    %299 = arith.mulf %294, %298 : vector<16x16xf32>
    %cst_94 = arith.constant dense<0.000000e+00> : vector<16x8xf32>
    %300 = tpu.matmul %299, %287, %cst_94 {dimension_numbers = #tpu.dot_dimension_numbers<[1], [0], [0], [1], [0, 0, 1, 1], [], []>} : vector<16x16xf32>, vector<16x8xf32>, vector<16x8xf32> -> vector<16x8xf32>
    %301 = vector.extract_strided_slice %249 {offsets = [0, 24], sizes = [16, 8], strides = [1, 1]} : vector<32x64xf32> to vector<16x8xf32>
    %302 = vector.extract_strided_slice %249 {offsets = [0, 56], sizes = [16, 8], strides = [1, 1]} : vector<32x64xf32> to vector<16x8xf32>
    %303 = vector.extract_strided_slice %252 {offsets = [0, 24], sizes = [16, 8], strides = [1, 1]} : vector<32x32xf32> to vector<16x8xf32>
    %304 = tpu.transpose %302, [1, 0] : vector<16x8xf32> -> vector<8x16xf32>
    %cst_95 = arith.constant dense<0.000000e+00> : vector<16x16xf32>
    %305 = tpu.matmul %301, %304, %cst_95 {dimension_numbers = #tpu.dot_dimension_numbers<[1], [0], [0], [1], [0, 0, 1, 1], [], []>} : vector<16x8xf32>, vector<8x16xf32>, vector<16x16xf32> -> vector<16x16xf32>
    %cst_96 = arith.constant dense<0xFF800000> : vector<16xf32>
    %306 = vector.multi_reduction <maximumf>, %305, %cst_96 [1] : vector<16x16xf32> to vector<16xf32>
    %307 = vector.shape_cast %306 : vector<16xf32> to vector<16x1xf32>
    %308 = vector.broadcast %307 : vector<16x1xf32> to vector<16x16xf32>
    %309 = arith.subf %305, %308 : vector<16x16xf32>
    %310 = math.exp %309 : vector<16x16xf32>
    %cst_97 = arith.constant dense<0.000000e+00> : vector<16xf32>
    %311 = vector.multi_reduction <add>, %310, %cst_97 [1] : vector<16x16xf32> to vector<16xf32>
    %312 = vector.shape_cast %311 : vector<16xf32> to vector<16x1xf32>
    %313 = tpu.reciprocal %312 {approx = true} : vector<16x1xf32> -> vector<16x1xf32>
    %314 = vector.broadcast %313 : vector<16x1xf32> to vector<16x16xf32>
    %315 = arith.mulf %310, %314 : vector<16x16xf32>
    %cst_98 = arith.constant dense<0.000000e+00> : vector<16x8xf32>
    %316 = tpu.matmul %315, %303, %cst_98 {dimension_numbers = #tpu.dot_dimension_numbers<[1], [0], [0], [1], [0, 0, 1, 1], [], []>} : vector<16x16xf32>, vector<16x8xf32>, vector<16x8xf32> -> vector<16x8xf32>
    %317 = tpu.concatenate %268, %284, %300, %316 in 1 : vector<16x8xf32>, vector<16x8xf32>, vector<16x8xf32>, vector<16x8xf32> -> vector<16x32xf32>
    %318 = vector.extract_strided_slice %249 {offsets = [16, 0], sizes = [16, 8], strides = [1, 1]} : vector<32x64xf32> to vector<16x8xf32>
    %319 = vector.extract_strided_slice %249 {offsets = [16, 32], sizes = [16, 8], strides = [1, 1]} : vector<32x64xf32> to vector<16x8xf32>
    %320 = vector.extract_strided_slice %252 {offsets = [16, 0], sizes = [16, 8], strides = [1, 1]} : vector<32x32xf32> to vector<16x8xf32>
    %321 = tpu.transpose %319, [1, 0] : vector<16x8xf32> -> vector<8x16xf32>
    %cst_99 = arith.constant dense<0.000000e+00> : vector<16x16xf32>
    %322 = tpu.matmul %318, %321, %cst_99 {dimension_numbers = #tpu.dot_dimension_numbers<[1], [0], [0], [1], [0, 0, 1, 1], [], []>} : vector<16x8xf32>, vector<8x16xf32>, vector<16x16xf32> -> vector<16x16xf32>
    %cst_100 = arith.constant dense<0xFF800000> : vector<16xf32>
    %323 = vector.multi_reduction <maximumf>, %322, %cst_100 [1] : vector<16x16xf32> to vector<16xf32>
    %324 = vector.shape_cast %323 : vector<16xf32> to vector<16x1xf32>
    %325 = vector.broadcast %324 : vector<16x1xf32> to vector<16x16xf32>
    %326 = arith.subf %322, %325 : vector<16x16xf32>
    %327 = math.exp %326 : vector<16x16xf32>
    %cst_101 = arith.constant dense<0.000000e+00> : vector<16xf32>
    %328 = vector.multi_reduction <add>, %327, %cst_101 [1] : vector<16x16xf32> to vector<16xf32>
    %329 = vector.shape_cast %328 : vector<16xf32> to vector<16x1xf32>
    %330 = tpu.reciprocal %329 {approx = true} : vector<16x1xf32> -> vector<16x1xf32>
    %331 = vector.broadcast %330 : vector<16x1xf32> to vector<16x16xf32>
    %332 = arith.mulf %327, %331 : vector<16x16xf32>
    %cst_102 = arith.constant dense<0.000000e+00> : vector<16x8xf32>
    %333 = tpu.matmul %332, %320, %cst_102 {dimension_numbers = #tpu.dot_dimension_numbers<[1], [0], [0], [1], [0, 0, 1, 1], [], []>} : vector<16x16xf32>, vector<16x8xf32>, vector<16x8xf32> -> vector<16x8xf32>
    %334 = vector.extract_strided_slice %249 {offsets = [16, 8], sizes = [16, 8], strides = [1, 1]} : vector<32x64xf32> to vector<16x8xf32>
    %335 = vector.extract_strided_slice %249 {offsets = [16, 40], sizes = [16, 8], strides = [1, 1]} : vector<32x64xf32> to vector<16x8xf32>
    %336 = vector.extract_strided_slice %252 {offsets = [16, 8], sizes = [16, 8], strides = [1, 1]} : vector<32x32xf32> to vector<16x8xf32>
    %337 = tpu.transpose %335, [1, 0] : vector<16x8xf32> -> vector<8x16xf32>
    %cst_103 = arith.constant dense<0.000000e+00> : vector<16x16xf32>
    %338 = tpu.matmul %334, %337, %cst_103 {dimension_numbers = #tpu.dot_dimension_numbers<[1], [0], [0], [1], [0, 0, 1, 1], [], []>} : vector<16x8xf32>, vector<8x16xf32>, vector<16x16xf32> -> vector<16x16xf32>
    %cst_104 = arith.constant dense<0xFF800000> : vector<16xf32>
    %339 = vector.multi_reduction <maximumf>, %338, %cst_104 [1] : vector<16x16xf32> to vector<16xf32>
    %340 = vector.shape_cast %339 : vector<16xf32> to vector<16x1xf32>
    %341 = vector.broadcast %340 : vector<16x1xf32> to vector<16x16xf32>
    %342 = arith.subf %338, %341 : vector<16x16xf32>
    %343 = math.exp %342 : vector<16x16xf32>
    %cst_105 = arith.constant dense<0.000000e+00> : vector<16xf32>
    %344 = vector.multi_reduction <add>, %343, %cst_105 [1] : vector<16x16xf32> to vector<16xf32>
    %345 = vector.shape_cast %344 : vector<16xf32> to vector<16x1xf32>
    %346 = tpu.reciprocal %345 {approx = true} : vector<16x1xf32> -> vector<16x1xf32>
    %347 = vector.broadcast %346 : vector<16x1xf32> to vector<16x16xf32>
    %348 = arith.mulf %343, %347 : vector<16x16xf32>
    %cst_106 = arith.constant dense<0.000000e+00> : vector<16x8xf32>
    %349 = tpu.matmul %348, %336, %cst_106 {dimension_numbers = #tpu.dot_dimension_numbers<[1], [0], [0], [1], [0, 0, 1, 1], [], []>} : vector<16x16xf32>, vector<16x8xf32>, vector<16x8xf32> -> vector<16x8xf32>
    %350 = vector.extract_strided_slice %249 {offsets = [16, 16], sizes = [16, 8], strides = [1, 1]} : vector<32x64xf32> to vector<16x8xf32>
    %351 = vector.extract_strided_slice %249 {offsets = [16, 48], sizes = [16, 8], strides = [1, 1]} : vector<32x64xf32> to vector<16x8xf32>
    %352 = vector.extract_strided_slice %252 {offsets = [16, 16], sizes = [16, 8], strides = [1, 1]} : vector<32x32xf32> to vector<16x8xf32>
    %353 = tpu.transpose %351, [1, 0] : vector<16x8xf32> -> vector<8x16xf32>
    %cst_107 = arith.constant dense<0.000000e+00> : vector<16x16xf32>
    %354 = tpu.matmul %350, %353, %cst_107 {dimension_numbers = #tpu.dot_dimension_numbers<[1], [0], [0], [1], [0, 0, 1, 1], [], []>} : vector<16x8xf32>, vector<8x16xf32>, vector<16x16xf32> -> vector<16x16xf32>
    %cst_108 = arith.constant dense<0xFF800000> : vector<16xf32>
    %355 = vector.multi_reduction <maximumf>, %354, %cst_108 [1] : vector<16x16xf32> to vector<16xf32>
    %356 = vector.shape_cast %355 : vector<16xf32> to vector<16x1xf32>
    %357 = vector.broadcast %356 : vector<16x1xf32> to vector<16x16xf32>
    %358 = arith.subf %354, %357 : vector<16x16xf32>
    %359 = math.exp %358 : vector<16x16xf32>
    %cst_109 = arith.constant dense<0.000000e+00> : vector<16xf32>
    %360 = vector.multi_reduction <add>, %359, %cst_109 [1] : vector<16x16xf32> to vector<16xf32>
    %361 = vector.shape_cast %360 : vector<16xf32> to vector<16x1xf32>
    %362 = tpu.reciprocal %361 {approx = true} : vector<16x1xf32> -> vector<16x1xf32>
    %363 = vector.broadcast %362 : vector<16x1xf32> to vector<16x16xf32>
    %364 = arith.mulf %359, %363 : vector<16x16xf32>
    %cst_110 = arith.constant dense<0.000000e+00> : vector<16x8xf32>
    %365 = tpu.matmul %364, %352, %cst_110 {dimension_numbers = #tpu.dot_dimension_numbers<[1], [0], [0], [1], [0, 0, 1, 1], [], []>} : vector<16x16xf32>, vector<16x8xf32>, vector<16x8xf32> -> vector<16x8xf32>
    %366 = vector.extract_strided_slice %249 {offsets = [16, 24], sizes = [16, 8], strides = [1, 1]} : vector<32x64xf32> to vector<16x8xf32>
    %367 = vector.extract_strided_slice %249 {offsets = [16, 56], sizes = [16, 8], strides = [1, 1]} : vector<32x64xf32> to vector<16x8xf32>
    %368 = vector.extract_strided_slice %252 {offsets = [16, 24], sizes = [16, 8], strides = [1, 1]} : vector<32x32xf32> to vector<16x8xf32>
    %369 = tpu.transpose %367, [1, 0] : vector<16x8xf32> -> vector<8x16xf32>
    %cst_111 = arith.constant dense<0.000000e+00> : vector<16x16xf32>
    %370 = tpu.matmul %366, %369, %cst_111 {dimension_numbers = #tpu.dot_dimension_numbers<[1], [0], [0], [1], [0, 0, 1, 1], [], []>} : vector<16x8xf32>, vector<8x16xf32>, vector<16x16xf32> -> vector<16x16xf32>
    %cst_112 = arith.constant dense<0xFF800000> : vector<16xf32>
    %371 = vector.multi_reduction <maximumf>, %370, %cst_112 [1] : vector<16x16xf32> to vector<16xf32>
    %372 = vector.shape_cast %371 : vector<16xf32> to vector<16x1xf32>
    %373 = vector.broadcast %372 : vector<16x1xf32> to vector<16x16xf32>
    %374 = arith.subf %370, %373 : vector<16x16xf32>
    %375 = math.exp %374 : vector<16x16xf32>
    %cst_113 = arith.constant dense<0.000000e+00> : vector<16xf32>
    %376 = vector.multi_reduction <add>, %375, %cst_113 [1] : vector<16x16xf32> to vector<16xf32>
    %377 = vector.shape_cast %376 : vector<16xf32> to vector<16x1xf32>
    %378 = tpu.reciprocal %377 {approx = true} : vector<16x1xf32> -> vector<16x1xf32>
    %379 = vector.broadcast %378 : vector<16x1xf32> to vector<16x16xf32>
    %380 = arith.mulf %375, %379 : vector<16x16xf32>
    %cst_114 = arith.constant dense<0.000000e+00> : vector<16x8xf32>
    %381 = tpu.matmul %380, %368, %cst_114 {dimension_numbers = #tpu.dot_dimension_numbers<[1], [0], [0], [1], [0, 0, 1, 1], [], []>} : vector<16x16xf32>, vector<16x8xf32>, vector<16x8xf32> -> vector<16x8xf32>
    %382 = tpu.concatenate %333, %349, %365, %381 in 1 : vector<16x8xf32>, vector<16x8xf32>, vector<16x8xf32>, vector<16x8xf32> -> vector<16x32xf32>
    %383 = tpu.concatenate %317, %382 in 0 : vector<16x32xf32>, vector<16x32xf32> -> vector<32x32xf32>
    %384 = arith.truncf %383 : vector<32x32xf32> to vector<32x32xbf16>
    %cst_115 = arith.constant dense<0.000000e+00> : vector<32x32xf32>
    %385 = tpu.matmul %384, %228, %cst_115 {dimension_numbers = #tpu.dot_dimension_numbers<[1], [0], [0], [1], [0, 0, 1, 1], [], []>} : vector<32x32xbf16>, vector<32x32xbf16>, vector<32x32xf32> -> vector<32x32xf32>
    %386 = vector.broadcast %237 : vector<1x32xf32> to vector<32x32xf32>
    %387 = arith.addf %385, %386 : vector<32x32xf32>
    %388 = arith.addf %222, %387 : vector<32x32xf32>
    %cst_116 = arith.constant dense<0.000000e+00> : vector<32xf32>
    %389 = vector.multi_reduction <add>, %388, %cst_116 [1] : vector<32x32xf32> to vector<32xf32>
    %390 = vector.shape_cast %389 : vector<32xf32> to vector<32x1xf32>
    %cst_117 = arith.constant 3.200000e+01 : f32
    %391 = vector.broadcast %cst_117 : f32 to vector<32x1xf32>
    %392 = arith.divf %390, %391 : vector<32x1xf32>
    %393 = vector.broadcast %392 : vector<32x1xf32> to vector<32x32xf32>
    %394 = arith.subf %388, %393 : vector<32x32xf32>
    %395 = arith.mulf %394, %394 : vector<32x32xf32>
    %cst_118 = arith.constant dense<0.000000e+00> : vector<32xf32>
    %396 = vector.multi_reduction <add>, %395, %cst_118 [1] : vector<32x32xf32> to vector<32xf32>
    %397 = vector.shape_cast %396 : vector<32xf32> to vector<32x1xf32>
    %cst_119 = arith.constant 3.200000e+01 : f32
    %398 = vector.broadcast %cst_119 : f32 to vector<32x1xf32>
    %399 = arith.divf %397, %398 : vector<32x1xf32>
    %400 = vector.broadcast %392 : vector<32x1xf32> to vector<32x32xf32>
    %401 = arith.subf %388, %400 : vector<32x32xf32>
    %cst_120 = arith.constant 9.99999974E-6 : f32
    %402 = vector.broadcast %cst_120 : f32 to vector<32x1xf32>
    %403 = arith.addf %399, %402 : vector<32x1xf32>
    %404 = math.rsqrt %403 : vector<32x1xf32>
    %405 = vector.broadcast %404 : vector<32x1xf32> to vector<32x32xf32>
    %406 = arith.mulf %401, %405 : vector<32x32xf32>
    %407 = vector.broadcast %240 : vector<1x32xf32> to vector<32x32xf32>
    %408 = arith.mulf %406, %407 : vector<32x32xf32>
    %409 = vector.broadcast %241 : vector<1x32xf32> to vector<32x32xf32>
    %410 = arith.addf %408, %409 : vector<32x32xf32>
    %411 = arith.truncf %410 : vector<32x32xf32> to vector<32x32xbf16>
    %cst_121 = arith.constant dense<0.000000e+00> : vector<32x64xf32>
    %412 = tpu.matmul %411, %230, %cst_121 {dimension_numbers = #tpu.dot_dimension_numbers<[1], [0], [0], [1], [0, 0, 1, 1], [], []>} : vector<32x32xbf16>, vector<32x64xbf16>, vector<32x64xf32> -> vector<32x64xf32>
    %413 = vector.broadcast %238 : vector<1x64xf32> to vector<32x64xf32>
    %414 = arith.addf %412, %413 : vector<32x64xf32>
    %cst_122 = arith.constant 0.000000e+00 : f32
    %415 = vector.broadcast %cst_122 : f32 to vector<32x64xf32>
    %416 = arith.maximumf %414, %415 : vector<32x64xf32>
    %417 = arith.truncf %416 : vector<32x64xf32> to vector<32x64xbf16>
    %cst_123 = arith.constant dense<0.000000e+00> : vector<32x32xf32>
    %418 = tpu.matmul %417, %232, %cst_123 {dimension_numbers = #tpu.dot_dimension_numbers<[1], [0], [0], [1], [0, 0, 1, 1], [], []>} : vector<32x64xbf16>, vector<64x32xbf16>, vector<32x32xf32> -> vector<32x32xf32>
    %419 = vector.broadcast %239 : vector<1x32xf32> to vector<32x32xf32>
    %420 = arith.addf %418, %419 : vector<32x32xf32>
    %421 = arith.addf %410, %420 : vector<32x32xf32>
    %cst_124 = arith.constant dense<0.000000e+00> : vector<32xf32>
    %422 = vector.multi_reduction <add>, %421, %cst_124 [1] : vector<32x32xf32> to vector<32xf32>
    %423 = vector.shape_cast %422 : vector<32xf32> to vector<32x1xf32>
    %cst_125 = arith.constant 3.200000e+01 : f32
    %424 = vector.broadcast %cst_125 : f32 to vector<32x1xf32>
    %425 = arith.divf %423, %424 : vector<32x1xf32>
    %426 = vector.broadcast %425 : vector<32x1xf32> to vector<32x32xf32>
    %427 = arith.subf %421, %426 : vector<32x32xf32>
    %428 = arith.mulf %427, %427 : vector<32x32xf32>
    %cst_126 = arith.constant dense<0.000000e+00> : vector<32xf32>
    %429 = vector.multi_reduction <add>, %428, %cst_126 [1] : vector<32x32xf32> to vector<32xf32>
    %430 = vector.shape_cast %429 : vector<32xf32> to vector<32x1xf32>
    %cst_127 = arith.constant 3.200000e+01 : f32
    %431 = vector.broadcast %cst_127 : f32 to vector<32x1xf32>
    %432 = arith.divf %430, %431 : vector<32x1xf32>
    %433 = vector.broadcast %425 : vector<32x1xf32> to vector<32x32xf32>
    %434 = arith.subf %421, %433 : vector<32x32xf32>
    %cst_128 = arith.constant 9.99999974E-6 : f32
    %435 = vector.broadcast %cst_128 : f32 to vector<32x1xf32>
    %436 = arith.addf %432, %435 : vector<32x1xf32>
    %437 = math.rsqrt %436 : vector<32x1xf32>
    %438 = vector.broadcast %437 : vector<32x1xf32> to vector<32x32xf32>
    %439 = arith.mulf %434, %438 : vector<32x32xf32>
    %440 = vector.broadcast %242 : vector<1x32xf32> to vector<32x32xf32>
    %441 = arith.mulf %439, %440 : vector<32x32xf32>
    %442 = vector.broadcast %243 : vector<1x32xf32> to vector<32x32xf32>
    %443 = arith.addf %441, %442 : vector<32x32xf32>
    %c0_129 = arith.constant 0 : index
    %c9 = arith.constant 9 : index
    %c0_130 = arith.constant 0 : index
    %444 = vector.load %arg4[%c0_129, %c9, %c0_130] : memref<2x11x64xf32, #tpu.memory_space<vmem>>, vector<1x1x32xf32>
    %445 = vector.shape_cast %444 : vector<1x1x32xf32> to vector<1x32xf32>
    %c0_131 = arith.constant 0 : index
    %c10 = arith.constant 10 : index
    %c0_132 = arith.constant 0 : index
    %446 = vector.load %arg4[%c0_131, %c10, %c0_132] : memref<2x11x64xf32, #tpu.memory_space<vmem>>, vector<1x1x32xf32>
    %447 = vector.shape_cast %446 : vector<1x1x32xf32> to vector<1x32xf32>
    %cst_133 = arith.constant dense<0.000000e+00> : vector<32xf32>
    %448 = vector.multi_reduction <add>, %443, %cst_133 [1] : vector<32x32xf32> to vector<32xf32>
    %449 = vector.shape_cast %448 : vector<32xf32> to vector<32x1xf32>
    %cst_134 = arith.constant 3.200000e+01 : f32
    %450 = vector.broadcast %cst_134 : f32 to vector<32x1xf32>
    %451 = arith.divf %449, %450 : vector<32x1xf32>
    %452 = vector.broadcast %451 : vector<32x1xf32> to vector<32x32xf32>
    %453 = arith.subf %443, %452 : vector<32x32xf32>
    %454 = arith.mulf %453, %453 : vector<32x32xf32>
    %cst_135 = arith.constant dense<0.000000e+00> : vector<32xf32>
    %455 = vector.multi_reduction <add>, %454, %cst_135 [1] : vector<32x32xf32> to vector<32xf32>
    %456 = vector.shape_cast %455 : vector<32xf32> to vector<32x1xf32>
    %cst_136 = arith.constant 3.200000e+01 : f32
    %457 = vector.broadcast %cst_136 : f32 to vector<32x1xf32>
    %458 = arith.divf %456, %457 : vector<32x1xf32>
    %459 = vector.broadcast %451 : vector<32x1xf32> to vector<32x32xf32>
    %460 = arith.subf %443, %459 : vector<32x32xf32>
    %cst_137 = arith.constant 9.99999974E-6 : f32
    %461 = vector.broadcast %cst_137 : f32 to vector<32x1xf32>
    %462 = arith.addf %458, %461 : vector<32x1xf32>
    %463 = math.rsqrt %462 : vector<32x1xf32>
    %464 = vector.broadcast %463 : vector<32x1xf32> to vector<32x32xf32>
    %465 = arith.mulf %460, %464 : vector<32x32xf32>
    %466 = vector.broadcast %445 : vector<1x32xf32> to vector<32x32xf32>
    %467 = arith.mulf %465, %466 : vector<32x32xf32>
    %468 = vector.broadcast %447 : vector<1x32xf32> to vector<32x32xf32>
    %469 = arith.addf %467, %468 : vector<32x32xf32>
    %c0_138 = arith.constant 0 : index
    %c0_139 = arith.constant 0 : index
    %470 = vector.load %arg5[%c0_138, %c0_139] : memref<32x32xf32, #tpu.memory_space<vmem>>, vector<32x32xf32>
    tpu.vector_store %arg5[%c0_138, %c0_139], %469 {strides = array<i32>} : memref<32x32xf32, #tpu.memory_space<vmem>>, vector<32x32xf32>,
    return
  }
  func.func @transform_0(%arg0: i32) -> (i32, i32) {
    %c0_i32 = arith.constant 0 : i32
    %c0_i32_0 = arith.constant 0 : i32
    %c0_i32_1 = arith.constant 0 : i32
    return %c0_i32, %c0_i32_0 : i32, i32
  }
  func.func @transform_1(%arg0: i32) -> (i32, i32) {
    %c0_i32 = arith.constant 0 : i32
    %c0_i32_0 = arith.constant 0 : i32
    %c0_i32_1 = arith.constant 0 : i32
    return %c0_i32, %c0_i32_0 : i32, i32
  }
  func.func @transform_2(%arg0: i32) -> (i32, i32, i32) {
    %c0_i32 = arith.constant 0 : i32
    %c0_i32_0 = arith.constant 0 : i32
    %c0_i32_1 = arith.constant 0 : i32
    %c0_i32_2 = arith.constant 0 : i32
    return %c0_i32, %c0_i32_0, %c0_i32_1 : i32, i32, i32
  }
  func.func @transform_3(%arg0: i32) -> (i32, i32, i32) {
    %c0_i32 = arith.constant 0 : i32
    %c0_i32_0 = arith.constant 0 : i32
    %c0_i32_1 = arith.constant 0 : i32
    %c0_i32_2 = arith.constant 0 : i32
    return %c0_i32, %c0_i32_0, %c0_i32_1 : i32, i32, i32
  }
  func.func @transform_4(%arg0: i32) -> (i32, i32) {
    %c0_i32 = arith.constant 0 : i32
    %c0_i32_0 = arith.constant 0 : i32
    %c0_i32_1 = arith.constant 0 : i32
    return %c0_i32, %c0_i32_0 : i32, i32
  }
}

</mosaic_0001>

<llo_original>
// kernel: tpu_custom_call.1
$region0: #{tpu_custom_call.1}
  #allocation0 [shape = 'u32[]', space=smem, size = 0x4, offset = 0x4, fixed_abs, tag = 'smem constant byte address 0x4 - core index']
  #allocation1 [shape = 'u32[144,128]{1,0:T(1,128)}', space=vmem, size = 0x12000, scoped, tag = 'internal scratch']
  %s0 = inlined_call_operand.vmem [shape: f32[32,32], index: 0, kind: input, shape index: {}]
  %s1 = inlined_call_operand.hbm [shape: f32[32,32], index: 1, kind: input, shape index: {}]
  %s2 = inlined_call_operand.hbm [shape: bf16[2,96,192], index: 2, kind: input, shape index: {}]
  %s3 = inlined_call_operand.vmem [shape: f32[2,11,64], index: 3, kind: input, shape index: {}]
  %s4 = inlined_call_operand.hbm [shape: f32[32,32], index: 4, kind: output, shape index: {}]
  %s5 = sld [smem:[#allocation0]]
  $region34: #{tpu_custom_call.1} parent=0
    _
  %s7 = ssub.s32 1, %s5
  %s8 = scalar_select 0, %s7, %s5
  $region1: #{tpu_custom_call.1} parent=0
    #allocation2 [shape = 'u8[16384]{0}', space=vmem, size = 0x4000, scoped, tag = 'input window, operand 1, single buffered']
    #allocation3 [shape = 's32[1]{0}', space=sflag, size = 0x4, scoped, tag = 'scoped memory for tpu_custom_call.1']
    #allocation4 [shape = 's32[1]{0}', space=sflag, size = 0x4, scoped, tag = 'scoped memory for tpu_custom_call.1']
    #allocation5 [shape = 'u8[98304]{0}', space=vmem, size = 0x18000, scoped, tag = 'input window, operand 2, single buffered']
    #allocation6 [shape = 's32[1]{0}', space=sflag, size = 0x4, scoped, tag = 'scoped memory for tpu_custom_call.1']
    #allocation7 [shape = 'u8[16384]{0}', space=vmem, size = 0x4000, scoped, tag = 'output window, operand 0, single buffered']
    %9 = vsyncpa [#allocation3], 0
    %10 = vsyncpa [#allocation6], 0
    %11 = vsyncpa [#allocation4], 0
    // Predicated region
    $region2: #{tpu_custom_call.1} parent=1 // pred_check
      _
    $region3: #{tpu_custom_call.1} parent=1 // pred_check_branch
      %13 = sbr.rel (0) target = $region5
    $region4: #{tpu_custom_call.1} parent=1 // pred_region
      _
    $region5: #{tpu_custom_call.1} parent=1 // pred_fallthru
      _
    // Predicated region
    $region6: #{tpu_custom_call.1} parent=1 // pred_check
      _
    $region7: #{tpu_custom_call.1} parent=1 // pred_check_branch
      %15 = sbr.rel (0) target = $region9
    $region8: #{tpu_custom_call.1} parent=1 // pred_region
      %s17 = ssub.s32 512, 512
      %18 = vsyncadd [#allocation3], %s17
      %s19 = sshll.u32 [#allocation2], 4
      %s20 = int_to_ptr.vmem [resolvable:$true] %s19
      %25 = dma.hbm_to_vmem [thread:$0]  %s1, 512, %s20, [#allocation3], 128, 128, 8
    $region9: #{tpu_custom_call.1} parent=1 // pred_fallthru
      _
    // Predicated region
    $region10: #{tpu_custom_call.1} parent=1 // pred_check
      _
    $region11: #{tpu_custom_call.1} parent=1 // pred_check_branch
      %27 = sbr.rel (0) target = $region13
    $region12: #{tpu_custom_call.1} parent=1 // pred_region
      %s29 = ssub.s32 3072, 3072
      %30 = vsyncadd [#allocation6], %s29
      %s31 = sshll.u32 [#allocation5], 4
      %s32 = int_to_ptr.vmem [resolvable:$true] %s31
      %37 = dma.hbm_to_vmem [thread:$0]  %s2, 3072, %s32, [#allocation6], 128, 128, 8
    $region13: #{tpu_custom_call.1} parent=1 // pred_fallthru
      _
    // Predicated region
    $region14: #{tpu_custom_call.1} parent=1 // pred_check
      _
    $region15: #{tpu_custom_call.1} parent=1 // pred_check_branch
      %39 = sbr.rel (0) target = $region17
    $region16: #{tpu_custom_call.1} parent=1 // pred_region
      _
    $region17: #{tpu_custom_call.1} parent=1 // pred_fallthru
      _
    // Predicated region
    $region18: #{tpu_custom_call.1} parent=1 // pred_check
      _
    $region19: #{tpu_custom_call.1} parent=1 // pred_check_branch
      %41 = sbr.rel (0) target = $region21
    $region20: #{tpu_custom_call.1} parent=1 // pred_region
      %42 = dma.done [#allocation3], 512
    $region21: #{tpu_custom_call.1} parent=1 // pred_fallthru
      _
    // Predicated region
    $region22: #{tpu_custom_call.1} parent=1 // pred_check
      _
    $region23: #{tpu_custom_call.1} parent=1 // pred_check_branch
      %44 = sbr.rel (0) target = $region25
    $region24: #{tpu_custom_call.1} parent=1 // pred_region
      %45 = dma.done [#allocation6], 3072
    $region25: #{tpu_custom_call.1} parent=1 // pred_fallthru
      _
    %v47 = vld [vmem:[%s0] sm:$0xff]
    %v48 = vld [vmem:[%s0 + $0x8] sm:$0xff]
    %v49 = vld [vmem:[%s0 + $0x10] sm:$0xff]
    %v50 = vld [vmem:[%s0 + $0x18] sm:$0xff]
    %v51 = vld [vmem:[#allocation2] sm:$0xff]
    %v52 = vld [vmem:[#allocation2 + $0x8] sm:$0xff]
    %v53 = vld [vmem:[#allocation2 + $0x10] sm:$0xff]
    %v54 = vld [vmem:[#allocation2 + $0x18] sm:$0xff]
    %v55 = vld [vmem:[#allocation5] sm:$0xf]
    %v56 = vld [vmem:[#allocation5 + $0x8] sm:$0xf]
    %v57 = vld [vmem:[#allocation5 + $0x10] sm:$0xf]
    %v58 = vld [vmem:[#allocation5 + $0x18] sm:$0xf]
    %v59 = vld [vmem:[#allocation5 + $0x4] sm:$0xf]
    %v60 = vld [vmem:[#allocation5 + $0xc] sm:$0xf]
    %v61 = vld [vmem:[#allocation5 + $0x14] sm:$0xf]
    %v62 = vld [vmem:[#allocation5 + $0x1c] sm:$0xf]
    %v63 = vld [vmem:[#allocation5 + $0x20] sm:$0xf]
    %v64 = vld [vmem:[#allocation5 + $0x28] sm:$0xf]
    %v65 = vld [vmem:[#allocation5 + $0x30] sm:$0xf]
    %v66 = vld [vmem:[#allocation5 + $0x38] sm:$0xf]
    %v67 = vld [vmem:[#allocation5 + $0x40] sm:$0xf]
    %v68 = vld [vmem:[#allocation5 + $0x48] sm:$0xf]
    %v69 = vld [vmem:[#allocation5 + $0x50] sm:$0xf]
    %v70 = vld [vmem:[#allocation5 + $0x58] sm:$0xf]
    %v71 = vld [vmem:[%s3] sm:$0xff]
    %v72 = vld [vmem:[%s3 + $0x8] sm:$0x7]
    %v73 = vadd.f32 %v47, %v51
    %v74 = vadd.f32 %v48, %v52
    %v75 = vadd.f32 %v49, %v53
    %v76 = vadd.f32 %v50, %v54
    %v77 = vpack.c.bf16 %v74, %v73
    %v78 = vpack.c.bf16 %v76, %v75
    %v79 = vpack.c.bf16 %v48, %v47
    %v80 = vpack.c.bf16 %v50, %v49
    %v81 = vlaneseq
    %v82 = vshrl.u32 %v81, 7
    %v83 = vsub.s32 0, %v82
    %v84 = vrot.slane %v71, %v83
    %v89 = vunpack.c.l.b16 %v55
    %v90 = vunpack.c.l.b16 %v56
    %v91 = vunpack.c.l.b16 %v57
    %v92 = vunpack.c.l.b16 %v58
    %v93 = vpack.c.b16 %v90, %v89
    %v94 = vpack.c.b16 %v92, %v91
    %vm97 = vcmask 261120
    %v99 = vsel %vm97, %v77, 0
    %v102 = vsel %vm97, %v78, 0
    %104 = vmatprep.subr.bf16.mxu0 0
    %105 = vmatpush1.bf16.msra.mxu0 %v93
    %106 = vmatprep.subr.bf16.mxu0 0
    %107 = vmatpush1.bf16.msra.mxu0 %v94
    %108 = vmatprep.subr.bf16.mxu0 0
    %109 = vmatpush1.bf16.msra.mxu0 0
    %110 = vmatprep.subr.bf16.mxu0 0
    %111 = vmatpush1.bf16.msra.mxu0 0
    %112 = vmatprep.subr.bf16.mxu0 0
    %113 = vmatpush1.bf16.msra.mxu0 0
    %114 = vmatprep.subr.bf16.mxu0 0
    %115 = vmatpush1.bf16.msra.mxu0 0
    %116 = vmatprep.subr.bf16.mxu0 0
    %117 = vmatpush1.bf16.msra.mxu0 0
    %118 = vmatprep.subr.bf16.mxu0 0
    %119 = vmatpush1.bf16.msra.mxu0 0
    %120 = vmatprep.subr.bf16.mxu0 0
    %121 = vmatpush1.bf16.msra.mxu0 0
    %122 = vmatprep.subr.bf16.mxu0 0
    %123 = vmatpush1.bf16.msra.mxu0 0
    %124 = vmatprep.subr.bf16.mxu0 0
    %125 = vmatpush1.bf16.msra.mxu0 0
    %126 = vmatprep.subr.bf16.mxu0 0
    %127 = vmatpush1.bf16.msra.mxu0 0
    %128 = vmatprep.subr.bf16.mxu0 0
    %129 = vmatpush1.bf16.msra.mxu0 0
    %130 = vmatprep.subr.bf16.mxu0 0
    %131 = vmatpush1.bf16.msra.mxu0 0
    %132 = vmatprep.subr.bf16.mxu0 0
    %133 = vmatpush1.bf16.msra.mxu0 0
    %134 = vmatprep.subr.bf16.mxu0 0
    %135 = vmatpush1.bf16.msra.mxu0 0
    %136 = vmatprep.mubr.bf16.mxu0 0
    %137 = vmatmul.mubr.bf16.gmra.mrb[0].mxu0 %v99
    %v138 = vpop.f32.mrb[0].mxu0
    %v139 = vadd.f32 %v84, %v138
    %v140 = vpop.f32.mrb[0].mxu0
    %v141 = vpop.f32.mrb[0].mxu0
    %v142 = vadd.f32 %v84, %v141
    %v143 = vpop.f32.mrb[0].mxu0
    %144 = vmatprep.mubr.bf16.mxu0 0
    %145 = vmatmul.mubr.bf16.gmra.mrb[0].mxu0 %v102
    %v146 = vpop.f32.mrb[0].mxu0
    %v147 = vadd.f32 %v84, %v146
    %v148 = vpop.f32.mrb[0].mxu0
    %v149 = vpop.f32.mrb[0].mxu0
    %v150 = vadd.f32 %v84, %v149
    %v151 = vpop.f32.mrb[0].mxu0
    %152 = vdwg.mxu0
    %v153 = vlaneseq
    %v154 = vshrl.u32 %v153, 7
    %v155 = vsub.s32 1, %v154
    %v156 = vrot.slane %v71, %v155
    %157 = vrot.lane.b32.xlu0 %v93, 64
    %v158 = vpop.permute.xlu0 %157
    %159 = vrot.lane.b32.xlu0 %v94, 64
    %v160 = vpop.permute.xlu0 %159
    %v164 = vsel %vm97, %v79, 0
    %v167 = vsel %vm97, %v80, 0
    %169 = vmatprep.subr.bf16.mxu0 0
    %170 = vmatpush1.bf16.msra.mxu0 %v158
    %171 = vmatprep.subr.bf16.mxu0 0
    %172 = vmatpush1.bf16.msra.mxu0 %v160
    %173 = vmatprep.subr.bf16.mxu0 0
    %174 = vmatpush1.bf16.msra.mxu0 0
    %175 = vmatprep.subr.bf16.mxu0 0
    %176 = vmatpush1.bf16.msra.mxu0 0
    %177 = vmatprep.subr.bf16.mxu0 0
    %178 = vmatpush1.bf16.msra.mxu0 0
    %179 = vmatprep.subr.bf16.mxu0 0
    %180 = vmatpush1.bf16.msra.mxu0 0
    %181 = vmatprep.subr.bf16.mxu0 0
    %182 = vmatpush1.bf16.msra.mxu0 0
    %183 = vmatprep.subr.bf16.mxu0 0
    %184 = vmatpush1.bf16.msra.mxu0 0
    %185 = vmatprep.subr.bf16.mxu0 0
    %186 = vmatpush1.bf16.msra.mxu0 0
    %187 = vmatprep.subr.bf16.mxu0 0
    %188 = vmatpush1.bf16.msra.mxu0 0
    %189 = vmatprep.subr.bf16.mxu0 0
    %190 = vmatpush1.bf16.msra.mxu0 0
    %191 = vmatprep.subr.bf16.mxu0 0
    %192 = vmatpush1.bf16.msra.mxu0 0
    %193 = vmatprep.subr.bf16.mxu0 0
    %194 = vmatpush1.bf16.msra.mxu0 0
    %195 = vmatprep.subr.bf16.mxu0 0
    %196 = vmatpush1.bf16.msra.mxu0 0
    %197 = vmatprep.subr.bf16.mxu0 0
    %198 = vmatpush1.bf16.msra.mxu0 0
    %199 = vmatprep.subr.bf16.mxu0 0
    %200 = vmatpush1.bf16.msra.mxu0 0
    %201 = vmatprep.mubr.bf16.mxu0 0
    %202 = vmatmul.mubr.bf16.gmra.mrb[0].mxu0 %v164
    %v203 = vpop.f32.mrb[0].mxu0
    %v204 = vadd.f32 %v156, %v203
    %v205 = vpop.f32.mrb[0].mxu0
    %v206 = vpop.f32.mrb[0].mxu0
    %v207 = vadd.f32 %v156, %v206
    %v208 = vpop.f32.mrb[0].mxu0
    %209 = vmatprep.mubr.bf16.mxu0 0
    %210 = vmatmul.mubr.bf16.gmra.mrb[0].mxu0 %v167
    %v211 = vpop.f32.mrb[0].mxu0
    %v212 = vadd.f32 %v156, %v211
    %v213 = vpop.f32.mrb[0].mxu0
    %v214 = vpop.f32.mrb[0].mxu0
    %v215 = vadd.f32 %v156, %v214
    %v216 = vpop.f32.mrb[0].mxu0
    %217 = vdwg.mxu0
    %220 = vrot.lane.b32.xlu0 %v139, 96
    %v221 = vpop.permute.xlu0 %220
    %222 = vrot.lane.b32.xlu0 %v142, 96
    %v223 = vpop.permute.xlu0 %222
    %vm224 = vcmask 64512
    %v225 = vsel %vm224, %v139, 0
    %v227 = vsel %vm224, %v142, 0
    %v229 = vsel %vm224, %v221, 0
    %v231 = vsel %vm224, %v223, 0
    %233 = vmatprep.subr.mxu0 0.0
    %234 = vmatpush1.xpose.msra.mxu0 %v229
    %235 = vmatprep.subr.mxu0 0.0
    %236 = vmatpush1.xpose.msra.mxu0 %v231
    %237 = vmatprep.subr.mxu0 0.0
    %238 = vmatpush1.xpose.msra.mxu0 0.0
    %239 = vmatprep.subr.mxu0 0.0
    %240 = vmatpush1.xpose.msra.mxu0 0.0
    %241 = vmatprep.subr.mxu0 0.0
    %242 = vmatpush1.xpose.msra.mxu0 0.0
    %243 = vmatprep.subr.mxu0 0.0
    %244 = vmatpush1.xpose.msra.mxu0 0.0
    %245 = vmatprep.subr.mxu0 0.0
    %246 = vmatpush1.xpose.msra.mxu0 0.0
    %247 = vmatprep.subr.mxu0 0.0
    %248 = vmatpush1.xpose.msra.mxu0 0.0
    %249 = vmatprep.subr.mxu0 0.0
    %250 = vmatpush1.xpose.msra.mxu0 0.0
    %251 = vmatprep.subr.mxu0 0.0
    %252 = vmatpush1.xpose.msra.mxu0 0.0
    %253 = vmatprep.subr.mxu0 0.0
    %254 = vmatpush1.xpose.msra.mxu0 0.0
    %255 = vmatprep.subr.mxu0 0.0
    %256 = vmatpush1.xpose.msra.mxu0 0.0
    %257 = vmatprep.subr.mxu0 0.0
    %258 = vmatpush1.xpose.msra.mxu0 0.0
    %259 = vmatprep.subr.mxu0 0.0
    %260 = vmatpush1.xpose.msra.mxu0 0.0
    %261 = vmatprep.subr.mxu0 0.0
    %262 = vmatpush1.xpose.msra.mxu0 0.0
    %263 = vmatprep.subr.mxu0 0.0
    %264 = vmatpush1.xpose.msra.mxu0 0.0
    %265 = vmatprep.subr.mxu0 0.0
    %266 = vmatpush1.xpose.msra.mxu0 0.0
    %267 = vmatprep.subr.mxu0 0.0
    %268 = vmatpush1.xpose.msra.mxu0 0.0
    %269 = vmatprep.subr.mxu0 0.0
    %270 = vmatpush1.xpose.msra.mxu0 0.0
    %271 = vmatprep.subr.mxu0 0.0
    %272 = vmatpush1.xpose.msra.mxu0 0.0
    %273 = vmatprep.subr.mxu0 0.0
    %274 = vmatpush1.xpose.msra.mxu0 0.0
    %275 = vmatprep.subr.mxu0 0.0
    %276 = vmatpush1.xpose.msra.mxu0 0.0
    %277 = vmatprep.subr.mxu0 0.0
    %278 = vmatpush1.xpose.msra.mxu0 0.0
    %279 = vmatprep.subr.mxu0 0.0
    %280 = vmatpush1.xpose.msra.mxu0 0.0
    %281 = vmatprep.subr.mxu0 0.0
    %282 = vmatpush1.xpose.msra.mxu0 0.0
    %283 = vmatprep.subr.mxu0 0.0
    %284 = vmatpush1.xpose.msra.mxu0 0.0
    %285 = vmatprep.subr.mxu0 0.0
    %286 = vmatpush1.xpose.msra.mxu0 0.0
    %287 = vmatprep.subr.mxu0 0.0
    %288 = vmatpush1.xpose.msra.mxu0 0.0
    %289 = vmatprep.subr.mxu0 0.0
    %290 = vmatpush1.xpose.msra.mxu0 0.0
    %291 = vmatprep.subr.mxu0 0.0
    %292 = vmatpush1.xpose.msra.mxu0 0.0
    %293 = vmatprep.subr.mxu0 0.0
    %294 = vmatpush1.xpose.msra.mxu0 0.0
    %295 = vmatprep.subr.mxu0 0.0
    %296 = vmatpush1.xpose.msra.mxu0 0.0
    %297 = vmatprep.mubr.f32.mxu0 0.0
    %298 = vmatmul.mubr.f32.gmra.mrb[0].mxu0 %v225
    %v299 = vpop.f32.mrb[0].mxu0
    %v300 = vadd.f32 0.0, %v299
    %v301 = vpop.f32.mrb[0].mxu0
    %302 = vmatprep.mubr.f32.mxu0 0.0
    %303 = vmatmul.mubr.f32.gmra.mrb[0].mxu0 %v227
    %v304 = vpop.f32.mrb[0].mxu0
    %v305 = vadd.f32 0.0, %v304
    %v306 = vpop.f32.mrb[0].mxu0
    %307 = vdwg.mxu0
    %vm308 = vcmask 130048
    %v309 = vsel %vm308, %v300, -inf
    %310 = vmax.xlane.f32.xlu0 %v309
    %v311 = vpop.xlane.xlu0 %310
    %v312 = vsel %vm308, %v305, -inf
    %313 = vmax.xlane.f32.xlu0 %v312
    %v314 = vpop.xlane.xlu0 %313
    %v315 = vsub.f32 %v300, %v311
    %v316 = vsub.f32 %v305, %v314
    %v317 = vmul.f32 %v315, 1.442695
    %v318 = vpow.pop %v317
    %v319 = vmul.f32 %v316, 1.442695
    %v320 = vpow.pop %v319
    %v321 = vsel %vm308, %v318, 0.0
    %322 = vadd.xlane.f32.xlu0 %v321
    %v323 = vpop.xlane.xlu0 %322
    %v324 = vsel %vm308, %v320, 0.0
    %325 = vadd.xlane.f32.xlu0 %v324
    %v326 = vpop.xlane.xlu0 %325
    %v327 = vrcp.pop %v323
    %v328 = vrcp.pop %v326
    %v329 = vmul.f32 %v318, %v327
    %v330 = vmul.f32 %v320, %v328
    %v332 = vsel %vm308, %v329, 0
    %v335 = vsel %vm308, %v330, 0
    %337 = vmatprep.subr.mxu0 0.0
    %338 = vmatpush1.msra.mxu0 %v204
    %339 = vmatprep.subr.mxu0 0.0
    %340 = vmatpush1.msra.mxu0 %v207
    %341 = vmatprep.subr.mxu0 0.0
    %342 = vmatpush1.msra.mxu0 0.0
    %343 = vmatprep.subr.mxu0 0.0
    %344 = vmatpush1.msra.mxu0 0.0
    %345 = vmatprep.subr.mxu0 0.0
    %346 = vmatpush1.msra.mxu0 0.0
    %347 = vmatprep.subr.mxu0 0.0
    %348 = vmatpush1.msra.mxu0 0.0
    %349 = vmatprep.subr.mxu0 0.0
    %350 = vmatpush1.msra.mxu0 0.0
    %351 = vmatprep.subr.mxu0 0.0
    %352 = vmatpush1.msra.mxu0 0.0
    %353 = vmatprep.subr.mxu0 0.0
    %354 = vmatpush1.msra.mxu0 0.0
    %355 = vmatprep.subr.mxu0 0.0
    %356 = vmatpush1.msra.mxu0 0.0
    %357 = vmatprep.subr.mxu0 0.0
    %358 = vmatpush1.msra.mxu0 0.0
    %359 = vmatprep.subr.mxu0 0.0
    %360 = vmatpush1.msra.mxu0 0.0
    %361 = vmatprep.subr.mxu0 0.0
    %362 = vmatpush1.msra.mxu0 0.0
    %363 = vmatprep.subr.mxu0 0.0
    %364 = vmatpush1.msra.mxu0 0.0
    %365 = vmatprep.subr.mxu0 0.0
    %366 = vmatpush1.msra.mxu0 0.0
    %367 = vmatprep.subr.mxu0 0.0
    %368 = vmatpush1.msra.mxu0 0.0
    %369 = vmatprep.subr.mxu0 0.0
    %370 = vmatpush1.msra.mxu0 0.0
    %371 = vmatprep.subr.mxu0 0.0
    %372 = vmatpush1.msra.mxu0 0.0
    %373 = vmatprep.subr.mxu0 0.0
    %374 = vmatpush1.msra.mxu0 0.0
    %375 = vmatprep.subr.mxu0 0.0
    %376 = vmatpush1.msra.mxu0 0.0
    %377 = vmatprep.subr.mxu0 0.0
    %378 = vmatpush1.msra.mxu0 0.0
    %379 = vmatprep.subr.mxu0 0.0
    %380 = vmatpush1.msra.mxu0 0.0
    %381 = vmatprep.subr.mxu0 0.0
    %382 = vmatpush1.msra.mxu0 0.0
    %383 = vmatprep.subr.mxu0 0.0
    %384 = vmatpush1.msra.mxu0 0.0
    %385 = vmatprep.subr.mxu0 0.0
    %386 = vmatpush1.msra.mxu0 0.0
    %387 = vmatprep.subr.mxu0 0.0
    %388 = vmatpush1.msra.mxu0 0.0
    %389 = vmatprep.subr.mxu0 0.0
    %390 = vmatpush1.msra.mxu0 0.0
    %391 = vmatprep.subr.mxu0 0.0
    %392 = vmatpush1.msra.mxu0 0.0
    %393 = vmatprep.subr.mxu0 0.0
    %394 = vmatpush1.msra.mxu0 0.0
    %395 = vmatprep.subr.mxu0 0.0
    %396 = vmatpush1.msra.mxu0 0.0
    %397 = vmatprep.subr.mxu0 0.0
    %398 = vmatpush1.msra.mxu0 0.0
    %399 = vmatprep.subr.mxu0 0.0
    %400 = vmatpush1.msra.mxu0 0.0
    %401 = vmatprep.mubr.f32.mxu0 0.0
    %402 = vmatmul.mubr.f32.gmra.mrb[0].mxu0 %v332
    %v403 = vpop.f32.mrb[0].mxu0
    %v404 = vadd.f32 0.0, %v403
    %v405 = vpop.f32.mrb[0].mxu0
    %406 = vmatprep.mubr.f32.mxu0 0.0
    %407 = vmatmul.mubr.f32.gmra.mrb[0].mxu0 %v335
    %v408 = vpop.f32.mrb[0].mxu0
    %v409 = vadd.f32 0.0, %v408
    %v410 = vpop.f32.mrb[0].mxu0
    %411 = vdwg.mxu0
    %412 = vrot.lane.b32.xlu0 %v139, 120
    %v413 = vpop.permute.xlu0 %412
    %414 = vrot.lane.b32.xlu0 %v142, 120
    %v415 = vpop.permute.xlu0 %414
    %416 = vrot.lane.b32.xlu0 %v139, 88
    %v417 = vpop.permute.xlu0 %416
    %418 = vrot.lane.b32.xlu0 %v142, 88
    %v419 = vpop.permute.xlu0 %418
    %v420 = vsel %vm224, %v413, 0
    %v422 = vsel %vm224, %v415, 0
    %v424 = vsel %vm224, %v417, 0
    %v426 = vsel %vm224, %v419, 0
    %428 = vmatprep.subr.mxu0 0.0
    %429 = vmatpush1.xpose.msra.mxu0 %v424
    %430 = vmatprep.subr.mxu0 0.0
    %431 = vmatpush1.xpose.msra.mxu0 %v426
    %432 = vmatprep.subr.mxu0 0.0
    %433 = vmatpush1.xpose.msra.mxu0 0.0
    %434 = vmatprep.subr.mxu0 0.0
    %435 = vmatpush1.xpose.msra.mxu0 0.0
    %436 = vmatprep.subr.mxu0 0.0
    %437 = vmatpush1.xpose.msra.mxu0 0.0
    %438 = vmatprep.subr.mxu0 0.0
    %439 = vmatpush1.xpose.msra.mxu0 0.0
    %440 = vmatprep.subr.mxu0 0.0
    %441 = vmatpush1.xpose.msra.mxu0 0.0
    %442 = vmatprep.subr.mxu0 0.0
    %443 = vmatpush1.xpose.msra.mxu0 0.0
    %444 = vmatprep.subr.mxu0 0.0
    %445 = vmatpush1.xpose.msra.mxu0 0.0
    %446 = vmatprep.subr.mxu0 0.0
    %447 = vmatpush1.xpose.msra.mxu0 0.0
    %448 = vmatprep.subr.mxu0 0.0
    %449 = vmatpush1.xpose.msra.mxu0 0.0
    %450 = vmatprep.subr.mxu0 0.0
    %451 = vmatpush1.xpose.msra.mxu0 0.0
    %452 = vmatprep.subr.mxu0 0.0
    %453 = vmatpush1.xpose.msra.mxu0 0.0
    %454 = vmatprep.subr.mxu0 0.0
    %455 = vmatpush1.xpose.msra.mxu0 0.0
    %456 = vmatprep.subr.mxu0 0.0
    %457 = vmatpush1.xpose.msra.mxu0 0.0
    %458 = vmatprep.subr.mxu0 0.0
    %459 = vmatpush1.xpose.msra.mxu0 0.0
    %460 = vmatprep.subr.mxu0 0.0
    %461 = vmatpush1.xpose.msra.mxu0 0.0
    %462 = vmatprep.subr.mxu0 0.0
    %463 = vmatpush1.xpose.msra.mxu0 0.0
    %464 = vmatprep.subr.mxu0 0.0
    %465 = vmatpush1.xpose.msra.mxu0 0.0
    %466 = vmatprep.subr.mxu0 0.0
    %467 = vmatpush1.xpose.msra.mxu0 0.0
    %468 = vmatprep.subr.mxu0 0.0
    %469 = vmatpush1.xpose.msra.mxu0 0.0
    %470 = vmatprep.subr.mxu0 0.0
    %471 = vmatpush1.xpose.msra.mxu0 0.0
    %472 = vmatprep.subr.mxu0 0.0
    %473 = vmatpush1.xpose.msra.mxu0 0.0
    %474 = vmatprep.subr.mxu0 0.0
    %475 = vmatpush1.xpose.msra.mxu0 0.0
    %476 = vmatprep.subr.mxu0 0.0
    %477 = vmatpush1.xpose.msra.mxu0 0.0
    %478 = vmatprep.subr.mxu0 0.0
    %479 = vmatpush1.xpose.msra.mxu0 0.0
    %480 = vmatprep.subr.mxu0 0.0
    %481 = vmatpush1.xpose.msra.mxu0 0.0
    %482 = vmatprep.subr.mxu0 0.0
    %483 = vmatpush1.xpose.msra.mxu0 0.0
    %484 = vmatprep.subr.mxu0 0.0
    %485 = vmatpush1.xpose.msra.mxu0 0.0
    %486 = vmatprep.subr.mxu0 0.0
    %487 = vmatpush1.xpose.msra.mxu0 0.0
    %488 = vmatprep.subr.mxu0 0.0
    %489 = vmatpush1.xpose.msra.mxu0 0.0
    %490 = vmatprep.subr.mxu0 0.0
    %491 = vmatpush1.xpose.msra.mxu0 0.0
    %492 = vmatprep.mubr.f32.mxu0 0.0
    %493 = vmatmul.mubr.f32.gmra.mrb[0].mxu0 %v420
    %v494 = vpop.f32.mrb[0].mxu0
    %v495 = vadd.f32 0.0, %v494
    %v496 = vpop.f32.mrb[0].mxu0
    %497 = vmatprep.mubr.f32.mxu0 0.0
    %498 = vmatmul.mubr.f32.gmra.mrb[0].mxu0 %v422
    %v499 = vpop.f32.mrb[0].mxu0
    %v500 = vadd.f32 0.0, %v499
    %v501 = vpop.f32.mrb[0].mxu0
    %502 = vdwg.mxu0
    %v503 = vsel %vm308, %v495, -inf
    %504 = vmax.xlane.f32.xlu0 %v503
    %v505 = vpop.xlane.xlu0 %504
    %v506 = vsel %vm308, %v500, -inf
    %507 = vmax.xlane.f32.xlu0 %v506
    %v508 = vpop.xlane.xlu0 %507
    %v509 = vsub.f32 %v495, %v505
    %v510 = vsub.f32 %v500, %v508
    %v511 = vmul.f32 %v509, 1.442695
    %v512 = vpow.pop %v511
    %v513 = vmul.f32 %v510, 1.442695
    %v514 = vpow.pop %v513
    %v515 = vsel %vm308, %v512, 0.0
    %516 = vadd.xlane.f32.xlu0 %v515
    %v517 = vpop.xlane.xlu0 %516
    %v518 = vsel %vm308, %v514, 0.0
    %519 = vadd.xlane.f32.xlu0 %v518
    %v520 = vpop.xlane.xlu0 %519
    %v521 = vrcp.pop %v517
    %v522 = vrcp.pop %v520
    %v523 = vmul.f32 %v512, %v521
    %v524 = vmul.f32 %v514, %v522
    %527 = vrot.lane.b32.xlu0 %v204, 120
    %v528 = vpop.permute.xlu0 %527
    %529 = vrot.lane.b32.xlu0 %v207, 120
    %v530 = vpop.permute.xlu0 %529
    %v534 = vsel %vm308, %v523, 0
    %v537 = vsel %vm308, %v524, 0
    %539 = vmatprep.subr.mxu0 0.0
    %540 = vmatpush1.msra.mxu0 %v528
    %541 = vmatprep.subr.mxu0 0.0
    %542 = vmatpush1.msra.mxu0 %v530
    %543 = vmatprep.subr.mxu0 0.0
    %544 = vmatpush1.msra.mxu0 0.0
    %545 = vmatprep.subr.mxu0 0.0
    %546 = vmatpush1.msra.mxu0 0.0
    %547 = vmatprep.subr.mxu0 0.0
    %548 = vmatpush1.msra.mxu0 0.0
    %549 = vmatprep.subr.mxu0 0.0
    %550 = vmatpush1.msra.mxu0 0.0
    %551 = vmatprep.subr.mxu0 0.0
    %552 = vmatpush1.msra.mxu0 0.0
    %553 = vmatprep.subr.mxu0 0.0
    %554 = vmatpush1.msra.mxu0 0.0
    %555 = vmatprep.subr.mxu0 0.0
    %556 = vmatpush1.msra.mxu0 0.0
    %557 = vmatprep.subr.mxu0 0.0
    %558 = vmatpush1.msra.mxu0 0.0
    %559 = vmatprep.subr.mxu0 0.0
    %560 = vmatpush1.msra.mxu0 0.0
    %561 = vmatprep.subr.mxu0 0.0
    %562 = vmatpush1.msra.mxu0 0.0
    %563 = vmatprep.subr.mxu0 0.0
    %564 = vmatpush1.msra.mxu0 0.0
    %565 = vmatprep.subr.mxu0 0.0
    %566 = vmatpush1.msra.mxu0 0.0
    %567 = vmatprep.subr.mxu0 0.0
    %568 = vmatpush1.msra.mxu0 0.0
    %569 = vmatprep.subr.mxu0 0.0
    %570 = vmatpush1.msra.mxu0 0.0
    %571 = vmatprep.subr.mxu0 0.0
    %572 = vmatpush1.msra.mxu0 0.0
    %573 = vmatprep.subr.mxu0 0.0
    %574 = vmatpush1.msra.mxu0 0.0
    %575 = vmatprep.subr.mxu0 0.0
    %576 = vmatpush1.msra.mxu0 0.0
    %577 = vmatprep.subr.mxu0 0.0
    %578 = vmatpush1.msra.mxu0 0.0
    %579 = vmatprep.subr.mxu0 0.0
    %580 = vmatpush1.msra.mxu0 0.0
    %581 = vmatprep.subr.mxu0 0.0
    %582 = vmatpush1.msra.mxu0 0.0
    %583 = vmatprep.subr.mxu0 0.0
    %584 = vmatpush1.msra.mxu0 0.0
    %585 = vmatprep.subr.mxu0 0.0
    %586 = vmatpush1.msra.mxu0 0.0
    %587 = vmatprep.subr.mxu0 0.0
    %588 = vmatpush1.msra.mxu0 0.0
    %589 = vmatprep.subr.mxu0 0.0
    %590 = vmatpush1.msra.mxu0 0.0
    %591 = vmatprep.subr.mxu0 0.0
    %592 = vmatpush1.msra.mxu0 0.0
    %593 = vmatprep.subr.mxu0 0.0
    %594 = vmatpush1.msra.mxu0 0.0
    %595 = vmatprep.subr.mxu0 0.0
    %596 = vmatpush1.msra.mxu0 0.0
    %597 = vmatprep.subr.mxu0 0.0
    %598 = vmatpush1.msra.mxu0 0.0
    %599 = vmatprep.subr.mxu0 0.0
    %600 = vmatpush1.msra.mxu0 0.0
    %601 = vmatprep.subr.mxu0 0.0
    %602 = vmatpush1.msra.mxu0 0.0
    %603 = vmatprep.mubr.f32.mxu0 0.0
    %604 = vmatmul.mubr.f32.gmra.mrb[0].mxu0 %v534
    %v605 = vpop.f32.mrb[0].mxu0
    %v606 = vadd.f32 0.0, %v605
    %v607 = vpop.f32.mrb[0].mxu0
    %608 = vmatprep.mubr.f32.mxu0 0.0
    %609 = vmatmul.mubr.f32.gmra.mrb[0].mxu0 %v537
    %v610 = vpop.f32.mrb[0].mxu0
    %v611 = vadd.f32 0.0, %v610
    %v612 = vpop.f32.mrb[0].mxu0
    %613 = vdwg.mxu0
    %614 = vrot.lane.b32.xlu0 %v139, 112
    %v615 = vpop.permute.xlu0 %614
    %616 = vrot.lane.b32.xlu0 %v142, 112
    %v617 = vpop.permute.xlu0 %616
    %618 = vrot.lane.b32.xlu0 %v139, 80
    %v619 = vpop.permute.xlu0 %618
    %620 = vrot.lane.b32.xlu0 %v142, 80
    %v621 = vpop.permute.xlu0 %620
    %v622 = vsel %vm224, %v615, 0
    %v624 = vsel %vm224, %v617, 0
    %v626 = vsel %vm224, %v619, 0
    %v628 = vsel %vm224, %v621, 0
    %630 = vmatprep.subr.mxu0 0.0
    %631 = vmatpush1.xpose.msra.mxu0 %v626
    %632 = vmatprep.subr.mxu0 0.0
    %633 = vmatpush1.xpose.msra.mxu0 %v628
    %634 = vmatprep.subr.mxu0 0.0
    %635 = vmatpush1.xpose.msra.mxu0 0.0
    %636 = vmatprep.subr.mxu0 0.0
    %637 = vmatpush1.xpose.msra.mxu0 0.0
    %638 = vmatprep.subr.mxu0 0.0
    %639 = vmatpush1.xpose.msra.mxu0 0.0
    %640 = vmatprep.subr.mxu0 0.0
    %641 = vmatpush1.xpose.msra.mxu0 0.0
    %642 = vmatprep.subr.mxu0 0.0
    %643 = vmatpush1.xpose.msra.mxu0 0.0
    %644 = vmatprep.subr.mxu0 0.0
    %645 = vmatpush1.xpose.msra.mxu0 0.0
    %646 = vmatprep.subr.mxu0 0.0
    %647 = vmatpush1.xpose.msra.mxu0 0.0
    %648 = vmatprep.subr.mxu0 0.0
    %649 = vmatpush1.xpose.msra.mxu0 0.0
    %650 = vmatprep.subr.mxu0 0.0
    %651 = vmatpush1.xpose.msra.mxu0 0.0
    %652 = vmatprep.subr.mxu0 0.0
    %653 = vmatpush1.xpose.msra.mxu0 0.0
    %654 = vmatprep.subr.mxu0 0.0
    %655 = vmatpush1.xpose.msra.mxu0 0.0
    %656 = vmatprep.subr.mxu0 0.0
    %657 = vmatpush1.xpose.msra.mxu0 0.0
    %658 = vmatprep.subr.mxu0 0.0
    %659 = vmatpush1.xpose.msra.mxu0 0.0
    %660 = vmatprep.subr.mxu0 0.0
    %661 = vmatpush1.xpose.msra.mxu0 0.0
    %662 = vmatprep.subr.mxu0 0.0
    %663 = vmatpush1.xpose.msra.mxu0 0.0
    %664 = vmatprep.subr.mxu0 0.0
    %665 = vmatpush1.xpose.msra.mxu0 0.0
    %666 = vmatprep.subr.mxu0 0.0
    %667 = vmatpush1.xpose.msra.mxu0 0.0
    %668 = vmatprep.subr.mxu0 0.0
    %669 = vmatpush1.xpose.msra.mxu0 0.0
    %670 = vmatprep.subr.mxu0 0.0
    %671 = vmatpush1.xpose.msra.mxu0 0.0
    %672 = vmatprep.subr.mxu0 0.0
    %673 = vmatpush1.xpose.msra.mxu0 0.0
    %674 = vmatprep.subr.mxu0 0.0
    %675 = vmatpush1.xpose.msra.mxu0 0.0
    %676 = vmatprep.subr.mxu0 0.0
    %677 = vmatpush1.xpose.msra.mxu0 0.0
    %678 = vmatprep.subr.mxu0 0.0
    %679 = vmatpush1.xpose.msra.mxu0 0.0
    %680 = vmatprep.subr.mxu0 0.0
    %681 = vmatpush1.xpose.msra.mxu0 0.0
    %682 = vmatprep.subr.mxu0 0.0
    %683 = vmatpush1.xpose.msra.mxu0 0.0
    %684 = vmatprep.subr.mxu0 0.0
    %685 = vmatpush1.xpose.msra.mxu0 0.0
    %686 = vmatprep.subr.mxu0 0.0
    %687 = vmatpush1.xpose.msra.mxu0 0.0
    %688 = vmatprep.subr.mxu0 0.0
    %689 = vmatpush1.xpose.msra.mxu0 0.0
    %690 = vmatprep.subr.mxu0 0.0
    %691 = vmatpush1.xpose.msra.mxu0 0.0
    %692 = vmatprep.subr.mxu0 0.0
    %693 = vmatpush1.xpose.msra.mxu0 0.0
    %694 = vmatprep.mubr.f32.mxu0 0.0
    %695 = vmatmul.mubr.f32.gmra.mrb[0].mxu0 %v622
    %v696 = vpop.f32.mrb[0].mxu0
    %v697 = vadd.f32 0.0, %v696
    %v698 = vpop.f32.mrb[0].mxu0
    %699 = vmatprep.mubr.f32.mxu0 0.0
    %700 = vmatmul.mubr.f32.gmra.mrb[0].mxu0 %v624
    %v701 = vpop.f32.mrb[0].mxu0
    %v702 = vadd.f32 0.0, %v701
    %v703 = vpop.f32.mrb[0].mxu0
    %704 = vdwg.mxu0
    %v705 = vsel %vm308, %v697, -inf
    %706 = vmax.xlane.f32.xlu0 %v705
    %v707 = vpop.xlane.xlu0 %706
    %v708 = vsel %vm308, %v702, -inf
    %709 = vmax.xlane.f32.xlu0 %v708
    %v710 = vpop.xlane.xlu0 %709
    %v711 = vsub.f32 %v697, %v707
    %v712 = vsub.f32 %v702, %v710
    %v713 = vmul.f32 %v711, 1.442695
    %v714 = vpow.pop %v713
    %v715 = vmul.f32 %v712, 1.442695
    %v716 = vpow.pop %v715
    %v717 = vsel %vm308, %v714, 0.0
    %718 = vadd.xlane.f32.xlu0 %v717
    %v719 = vpop.xlane.xlu0 %718
    %v720 = vsel %vm308, %v716, 0.0
    %721 = vadd.xlane.f32.xlu0 %v720
    %v722 = vpop.xlane.xlu0 %721
    %v723 = vrcp.pop %v719
    %v724 = vrcp.pop %v722
    %v725 = vmul.f32 %v714, %v723
    %v726 = vmul.f32 %v716, %v724
    %727 = vrot.lane.b32.xlu0 %v204, 112
    %v728 = vpop.permute.xlu0 %727
    %729 = vrot.lane.b32.xlu0 %v207, 112
    %v730 = vpop.permute.xlu0 %729
    %v734 = vsel %vm308, %v725, 0
    %v737 = vsel %vm308, %v726, 0
    %739 = vmatprep.subr.mxu0 0.0
    %740 = vmatpush1.msra.mxu0 %v728
    %741 = vmatprep.subr.mxu0 0.0
    %742 = vmatpush1.msra.mxu0 %v730
    %743 = vmatprep.subr.mxu0 0.0
    %744 = vmatpush1.msra.mxu0 0.0
    %745 = vmatprep.subr.mxu0 0.0
    %746 = vmatpush1.msra.mxu0 0.0
    %747 = vmatprep.subr.mxu0 0.0
    %748 = vmatpush1.msra.mxu0 0.0
    %749 = vmatprep.subr.mxu0 0.0
    %750 = vmatpush1.msra.mxu0 0.0
    %751 = vmatprep.subr.mxu0 0.0
    %752 = vmatpush1.msra.mxu0 0.0
    %753 = vmatprep.subr.mxu0 0.0
    %754 = vmatpush1.msra.mxu0 0.0
    %755 = vmatprep.subr.mxu0 0.0
    %756 = vmatpush1.msra.mxu0 0.0
    %757 = vmatprep.subr.mxu0 0.0
    %758 = vmatpush1.msra.mxu0 0.0
    %759 = vmatprep.subr.mxu0 0.0
    %760 = vmatpush1.msra.mxu0 0.0
    %761 = vmatprep.subr.mxu0 0.0
    %762 = vmatpush1.msra.mxu0 0.0
    %763 = vmatprep.subr.mxu0 0.0
    %764 = vmatpush1.msra.mxu0 0.0
    %765 = vmatprep.subr.mxu0 0.0
    %766 = vmatpush1.msra.mxu0 0.0
    %767 = vmatprep.subr.mxu0 0.0
    %768 = vmatpush1.msra.mxu0 0.0
    %769 = vmatprep.subr.mxu0 0.0
    %770 = vmatpush1.msra.mxu0 0.0
    %771 = vmatprep.subr.mxu0 0.0
    %772 = vmatpush1.msra.mxu0 0.0
    %773 = vmatprep.subr.mxu0 0.0
    %774 = vmatpush1.msra.mxu0 0.0
    %775 = vmatprep.subr.mxu0 0.0
    %776 = vmatpush1.msra.mxu0 0.0
    %777 = vmatprep.subr.mxu0 0.0
    %778 = vmatpush1.msra.mxu0 0.0
    %779 = vmatprep.subr.mxu0 0.0
    %780 = vmatpush1.msra.mxu0 0.0
    %781 = vmatprep.subr.mxu0 0.0
    %782 = vmatpush1.msra.mxu0 0.0
    %783 = vmatprep.subr.mxu0 0.0
    %784 = vmatpush1.msra.mxu0 0.0
    %785 = vmatprep.subr.mxu0 0.0
    %786 = vmatpush1.msra.mxu0 0.0
    %787 = vmatprep.subr.mxu0 0.0
    %788 = vmatpush1.msra.mxu0 0.0
    %789 = vmatprep.subr.mxu0 0.0
    %790 = vmatpush1.msra.mxu0 0.0
    %791 = vmatprep.subr.mxu0 0.0
    %792 = vmatpush1.msra.mxu0 0.0
    %793 = vmatprep.subr.mxu0 0.0
    %794 = vmatpush1.msra.mxu0 0.0
    %795 = vmatprep.subr.mxu0 0.0
    %796 = vmatpush1.msra.mxu0 0.0
    %797 = vmatprep.subr.mxu0 0.0
    %798 = vmatpush1.msra.mxu0 0.0
    %799 = vmatprep.subr.mxu0 0.0
    %800 = vmatpush1.msra.mxu0 0.0
    %801 = vmatprep.subr.mxu0 0.0
    %802 = vmatpush1.msra.mxu0 0.0
    %803 = vmatprep.mubr.f32.mxu0 0.0
    %804 = vmatmul.mubr.f32.gmra.mrb[0].mxu0 %v734
    %v805 = vpop.f32.mrb[0].mxu0
    %v806 = vadd.f32 0.0, %v805
    %v807 = vpop.f32.mrb[0].mxu0
    %808 = vmatprep.mubr.f32.mxu0 0.0
    %809 = vmatmul.mubr.f32.gmra.mrb[0].mxu0 %v737
    %v810 = vpop.f32.mrb[0].mxu0
    %v811 = vadd.f32 0.0, %v810
    %v812 = vpop.f32.mrb[0].mxu0
    %813 = vdwg.mxu0
    %814 = vrot.lane.b32.xlu0 %v139, 104
    %v815 = vpop.permute.xlu0 %814
    %816 = vrot.lane.b32.xlu0 %v142, 104
    %v817 = vpop.permute.xlu0 %816
    %818 = vrot.lane.b32.xlu0 %v139, 72
    %v819 = vpop.permute.xlu0 %818
    %820 = vrot.lane.b32.xlu0 %v142, 72
    %v821 = vpop.permute.xlu0 %820
    %v822 = vsel %vm224, %v815, 0
    %v824 = vsel %vm224, %v817, 0
    %v826 = vsel %vm224, %v819, 0
    %v828 = vsel %vm224, %v821, 0
    %830 = vmatprep.subr.mxu0 0.0
    %831 = vmatpush1.xpose.msra.mxu0 %v826
    %832 = vmatprep.subr.mxu0 0.0
    %833 = vmatpush1.xpose.msra.mxu0 %v828
    %834 = vmatprep.subr.mxu0 0.0
    %835 = vmatpush1.xpose.msra.mxu0 0.0
    %836 = vmatprep.subr.mxu0 0.0
    %837 = vmatpush1.xpose.msra.mxu0 0.0
    %838 = vmatprep.subr.mxu0 0.0
    %839 = vmatpush1.xpose.msra.mxu0 0.0
    %840 = vmatprep.subr.mxu0 0.0
    %841 = vmatpush1.xpose.msra.mxu0 0.0
    %842 = vmatprep.subr.mxu0 0.0
    %843 = vmatpush1.xpose.msra.mxu0 0.0
    %844 = vmatprep.subr.mxu0 0.0
    %845 = vmatpush1.xpose.msra.mxu0 0.0
    %846 = vmatprep.subr.mxu0 0.0
    %847 = vmatpush1.xpose.msra.mxu0 0.0
    %848 = vmatprep.subr.mxu0 0.0
    %849 = vmatpush1.xpose.msra.mxu0 0.0
    %850 = vmatprep.subr.mxu0 0.0
    %851 = vmatpush1.xpose.msra.mxu0 0.0
    %852 = vmatprep.subr.mxu0 0.0
    %853 = vmatpush1.xpose.msra.mxu0 0.0
    %854 = vmatprep.subr.mxu0 0.0
    %855 = vmatpush1.xpose.msra.mxu0 0.0
    %856 = vmatprep.subr.mxu0 0.0
    %857 = vmatpush1.xpose.msra.mxu0 0.0
    %858 = vmatprep.subr.mxu0 0.0
    %859 = vmatpush1.xpose.msra.mxu0 0.0
    %860 = vmatprep.subr.mxu0 0.0
    %861 = vmatpush1.xpose.msra.mxu0 0.0
    %862 = vmatprep.subr.mxu0 0.0
    %863 = vmatpush1.xpose.msra.mxu0 0.0
    %864 = vmatprep.subr.mxu0 0.0
    %865 = vmatpush1.xpose.msra.mxu0 0.0
    %866 = vmatprep.subr.mxu0 0.0
    %867 = vmatpush1.xpose.msra.mxu0 0.0
    %868 = vmatprep.subr.mxu0 0.0
    %869 = vmatpush1.xpose.msra.mxu0 0.0
    %870 = vmatprep.subr.mxu0 0.0
    %871 = vmatpush1.xpose.msra.mxu0 0.0
    %872 = vmatprep.subr.mxu0 0.0
    %873 = vmatpush1.xpose.msra.mxu0 0.0
    %874 = vmatprep.subr.mxu0 0.0
    %875 = vmatpush1.xpose.msra.mxu0 0.0
    %876 = vmatprep.subr.mxu0 0.0
    %877 = vmatpush1.xpose.msra.mxu0 0.0
    %878 = vmatprep.subr.mxu0 0.0
    %879 = vmatpush1.xpose.msra.mxu0 0.0
    %880 = vmatprep.subr.mxu0 0.0
    %881 = vmatpush1.xpose.msra.mxu0 0.0
    %882 = vmatprep.subr.mxu0 0.0
    %883 = vmatpush1.xpose.msra.mxu0 0.0
    %884 = vmatprep.subr.mxu0 0.0
    %885 = vmatpush1.xpose.msra.mxu0 0.0
    %886 = vmatprep.subr.mxu0 0.0
    %887 = vmatpush1.xpose.msra.mxu0 0.0
    %888 = vmatprep.subr.mxu0 0.0
    %889 = vmatpush1.xpose.msra.mxu0 0.0
    %890 = vmatprep.subr.mxu0 0.0
    %891 = vmatpush1.xpose.msra.mxu0 0.0
    %892 = vmatprep.subr.mxu0 0.0
    %893 = vmatpush1.xpose.msra.mxu0 0.0
    %894 = vmatprep.mubr.f32.mxu0 0.0
    %895 = vmatmul.mubr.f32.gmra.mrb[0].mxu0 %v822
    %v896 = vpop.f32.mrb[0].mxu0
    %v897 = vadd.f32 0.0, %v896
    %v898 = vpop.f32.mrb[0].mxu0
    %899 = vmatprep.mubr.f32.mxu0 0.0
    %900 = vmatmul.mubr.f32.gmra.mrb[0].mxu0 %v824
    %v901 = vpop.f32.mrb[0].mxu0
    %v902 = vadd.f32 0.0, %v901
    %v903 = vpop.f32.mrb[0].mxu0
    %904 = vdwg.mxu0
    %v905 = vsel %vm308, %v897, -inf
    %906 = vmax.xlane.f32.xlu0 %v905
    %v907 = vpop.xlane.xlu0 %906
    %v908 = vsel %vm308, %v902, -inf
    %909 = vmax.xlane.f32.xlu0 %v908
    %v910 = vpop.xlane.xlu0 %909
    %v911 = vsub.f32 %v897, %v907
    %v912 = vsub.f32 %v902, %v910
    %v913 = vmul.f32 %v911, 1.442695
    %v914 = vpow.pop %v913
    %v915 = vmul.f32 %v912, 1.442695
    %v916 = vpow.pop %v915
    %v917 = vsel %vm308, %v914, 0.0
    %918 = vadd.xlane.f32.xlu0 %v917
    %v919 = vpop.xlane.xlu0 %918
    %v920 = vsel %vm308, %v916, 0.0
    %921 = vadd.xlane.f32.xlu0 %v920
    %v922 = vpop.xlane.xlu0 %921
    %v923 = vrcp.pop %v919
    %v924 = vrcp.pop %v922
    %v925 = vmul.f32 %v914, %v923
    %v926 = vmul.f32 %v916, %v924
    %927 = vrot.lane.b32.xlu0 %v204, 104
    %v928 = vpop.permute.xlu0 %927
    %929 = vrot.lane.b32.xlu0 %v207, 104
    %v930 = vpop.permute.xlu0 %929
    %v934 = vsel %vm308, %v925, 0
    %v937 = vsel %vm308, %v926, 0
    %939 = vmatprep.subr.mxu0 0.0
    %940 = vmatpush1.msra.mxu0 %v928
    %941 = vmatprep.subr.mxu0 0.0
    %942 = vmatpush1.msra.mxu0 %v930
    %943 = vmatprep.subr.mxu0 0.0
    %944 = vmatpush1.msra.mxu0 0.0
    %945 = vmatprep.subr.mxu0 0.0
    %946 = vmatpush1.msra.mxu0 0.0
    %947 = vmatprep.subr.mxu0 0.0
    %948 = vmatpush1.msra.mxu0 0.0
    %949 = vmatprep.subr.mxu0 0.0
    %950 = vmatpush1.msra.mxu0 0.0
    %951 = vmatprep.subr.mxu0 0.0
    %952 = vmatpush1.msra.mxu0 0.0
    %953 = vmatprep.subr.mxu0 0.0
    %954 = vmatpush1.msra.mxu0 0.0
    %955 = vmatprep.subr.mxu0 0.0
    %956 = vmatpush1.msra.mxu0 0.0
    %957 = vmatprep.subr.mxu0 0.0
    %958 = vmatpush1.msra.mxu0 0.0
    %959 = vmatprep.subr.mxu0 0.0
    %960 = vmatpush1.msra.mxu0 0.0
    %961 = vmatprep.subr.mxu0 0.0
    %962 = vmatpush1.msra.mxu0 0.0
    %963 = vmatprep.subr.mxu0 0.0
    %964 = vmatpush1.msra.mxu0 0.0
    %965 = vmatprep.subr.mxu0 0.0
    %966 = vmatpush1.msra.mxu0 0.0
    %967 = vmatprep.subr.mxu0 0.0
    %968 = vmatpush1.msra.mxu0 0.0
    %969 = vmatprep.subr.mxu0 0.0
    %970 = vmatpush1.msra.mxu0 0.0
    %971 = vmatprep.subr.mxu0 0.0
    %972 = vmatpush1.msra.mxu0 0.0
    %973 = vmatprep.subr.mxu0 0.0
    %974 = vmatpush1.msra.mxu0 0.0
    %975 = vmatprep.subr.mxu0 0.0
    %976 = vmatpush1.msra.mxu0 0.0
    %977 = vmatprep.subr.mxu0 0.0
    %978 = vmatpush1.msra.mxu0 0.0
    %979 = vmatprep.subr.mxu0 0.0
    %980 = vmatpush1.msra.mxu0 0.0
    %981 = vmatprep.subr.mxu0 0.0
    %982 = vmatpush1.msra.mxu0 0.0
    %983 = vmatprep.subr.mxu0 0.0
    %984 = vmatpush1.msra.mxu0 0.0
    %985 = vmatprep.subr.mxu0 0.0
    %986 = vmatpush1.msra.mxu0 0.0
    %987 = vmatprep.subr.mxu0 0.0
    %988 = vmatpush1.msra.mxu0 0.0
    %989 = vmatprep.subr.mxu0 0.0
    %990 = vmatpush1.msra.mxu0 0.0
    %991 = vmatprep.subr.mxu0 0.0
    %992 = vmatpush1.msra.mxu0 0.0
    %993 = vmatprep.subr.mxu0 0.0
    %994 = vmatpush1.msra.mxu0 0.0
    %995 = vmatprep.subr.mxu0 0.0
    %996 = vmatpush1.msra.mxu0 0.0
    %997 = vmatprep.subr.mxu0 0.0
    %998 = vmatpush1.msra.mxu0 0.0
    %999 = vmatprep.subr.mxu0 0.0
    %1000 = vmatpush1.msra.mxu0 0.0
    %1001 = vmatprep.subr.mxu0 0.0
    %1002 = vmatpush1.msra.mxu0 0.0
    %1003 = vmatprep.mubr.f32.mxu0 0.0
    %1004 = vmatmul.mubr.f32.gmra.mrb[0].mxu0 %v934
    %v1005 = vpop.f32.mrb[0].mxu0
    %v1006 = vadd.f32 0.0, %v1005
    %v1007 = vpop.f32.mrb[0].mxu0
    %1008 = vmatprep.mubr.f32.mxu0 0.0
    %1009 = vmatmul.mubr.f32.gmra.mrb[0].mxu0 %v937
    %v1010 = vpop.f32.mrb[0].mxu0
    %v1011 = vadd.f32 0.0, %v1010
    %v1012 = vpop.f32.mrb[0].mxu0
    %1013 = vdwg.mxu0
    %1016 = vrot.lane.b32.xlu0 %v606, 8
    %v1017 = vpop.permute.xlu0 %1016
    %1018 = vrot.lane.b32.xlu0 %v611, 8
    %v1019 = vpop.permute.xlu0 %1018
    %1024 = vrot.lane.b32.xlu0 %v806, 16
    %v1025 = vpop.permute.xlu0 %1024
    %1026 = vrot.lane.b32.xlu0 %v811, 16
    %v1027 = vpop.permute.xlu0 %1026
    %1032 = vrot.lane.b32.xlu0 %v1006, 24
    %v1033 = vpop.permute.xlu0 %1032
    %1034 = vrot.lane.b32.xlu0 %v1011, 24
    %v1035 = vpop.permute.xlu0 %1034
    %v1038 = vsel %vm224, %v404, %v1017
    %v1039 = vsel %vm224, %v409, %v1019
    %v1040 = vsel %vm308, %v1038, %v1025
    %v1041 = vsel %vm308, %v1039, %v1027
    %vm1042 = vcmask 195584
    %v1043 = vsel %vm1042, %v1040, %v1033
    %v1044 = vsel %vm1042, %v1041, %v1035
    %1047 = vrot.lane.b32.xlu0 %v147, 96
    %v1048 = vpop.permute.xlu0 %1047
    %1049 = vrot.lane.b32.xlu0 %v150, 96
    %v1050 = vpop.permute.xlu0 %1049
    %v1051 = vsel %vm224, %v147, 0
    %v1053 = vsel %vm224, %v150, 0
    %v1055 = vsel %vm224, %v1048, 0
    %v1057 = vsel %vm224, %v1050, 0
    %1059 = vmatprep.subr.mxu0 0.0
    %1060 = vmatpush1.xpose.msra.mxu0 %v1055
    %1061 = vmatprep.subr.mxu0 0.0
    %1062 = vmatpush1.xpose.msra.mxu0 %v1057
    %1063 = vmatprep.subr.mxu0 0.0
    %1064 = vmatpush1.xpose.msra.mxu0 0.0
    %1065 = vmatprep.subr.mxu0 0.0
    %1066 = vmatpush1.xpose.msra.mxu0 0.0
    %1067 = vmatprep.subr.mxu0 0.0
    %1068 = vmatpush1.xpose.msra.mxu0 0.0
    %1069 = vmatprep.subr.mxu0 0.0
    %1070 = vmatpush1.xpose.msra.mxu0 0.0
    %1071 = vmatprep.subr.mxu0 0.0
    %1072 = vmatpush1.xpose.msra.mxu0 0.0
    %1073 = vmatprep.subr.mxu0 0.0
    %1074 = vmatpush1.xpose.msra.mxu0 0.0
    %1075 = vmatprep.subr.mxu0 0.0
    %1076 = vmatpush1.xpose.msra.mxu0 0.0
    %1077 = vmatprep.subr.mxu0 0.0
    %1078 = vmatpush1.xpose.msra.mxu0 0.0
    %1079 = vmatprep.subr.mxu0 0.0
    %1080 = vmatpush1.xpose.msra.mxu0 0.0
    %1081 = vmatprep.subr.mxu0 0.0
    %1082 = vmatpush1.xpose.msra.mxu0 0.0
    %1083 = vmatprep.subr.mxu0 0.0
    %1084 = vmatpush1.xpose.msra.mxu0 0.0
    %1085 = vmatprep.subr.mxu0 0.0
    %1086 = vmatpush1.xpose.msra.mxu0 0.0
    %1087 = vmatprep.subr.mxu0 0.0
    %1088 = vmatpush1.xpose.msra.mxu0 0.0
    %1089 = vmatprep.subr.mxu0 0.0
    %1090 = vmatpush1.xpose.msra.mxu0 0.0
    %1091 = vmatprep.subr.mxu0 0.0
    %1092 = vmatpush1.xpose.msra.mxu0 0.0
    %1093 = vmatprep.subr.mxu0 0.0
    %1094 = vmatpush1.xpose.msra.mxu0 0.0
    %1095 = vmatprep.subr.mxu0 0.0
    %1096 = vmatpush1.xpose.msra.mxu0 0.0
    %1097 = vmatprep.subr.mxu0 0.0
    %1098 = vmatpush1.xpose.msra.mxu0 0.0
    %1099 = vmatprep.subr.mxu0 0.0
    %1100 = vmatpush1.xpose.msra.mxu0 0.0
    %1101 = vmatprep.subr.mxu0 0.0
    %1102 = vmatpush1.xpose.msra.mxu0 0.0
    %1103 = vmatprep.subr.mxu0 0.0
    %1104 = vmatpush1.xpose.msra.mxu0 0.0
    %1105 = vmatprep.subr.mxu0 0.0
    %1106 = vmatpush1.xpose.msra.mxu0 0.0
    %1107 = vmatprep.subr.mxu0 0.0
    %1108 = vmatpush1.xpose.msra.mxu0 0.0
    %1109 = vmatprep.subr.mxu0 0.0
    %1110 = vmatpush1.xpose.msra.mxu0 0.0
    %1111 = vmatprep.subr.mxu0 0.0
    %1112 = vmatpush1.xpose.msra.mxu0 0.0
    %1113 = vmatprep.subr.mxu0 0.0
    %1114 = vmatpush1.xpose.msra.mxu0 0.0
    %1115 = vmatprep.subr.mxu0 0.0
    %1116 = vmatpush1.xpose.msra.mxu0 0.0
    %1117 = vmatprep.subr.mxu0 0.0
    %1118 = vmatpush1.xpose.msra.mxu0 0.0
    %1119 = vmatprep.subr.mxu0 0.0
    %1120 = vmatpush1.xpose.msra.mxu0 0.0
    %1121 = vmatprep.subr.mxu0 0.0
    %1122 = vmatpush1.xpose.msra.mxu0 0.0
    %1123 = vmatprep.mubr.f32.mxu0 0.0
    %1124 = vmatmul.mubr.f32.gmra.mrb[0].mxu0 %v1051
    %v1125 = vpop.f32.mrb[0].mxu0
    %v1126 = vadd.f32 0.0, %v1125
    %v1127 = vpop.f32.mrb[0].mxu0
    %1128 = vmatprep.mubr.f32.mxu0 0.0
    %1129 = vmatmul.mubr.f32.gmra.mrb[0].mxu0 %v1053
    %v1130 = vpop.f32.mrb[0].mxu0
    %v1131 = vadd.f32 0.0, %v1130
    %v1132 = vpop.f32.mrb[0].mxu0
    %1133 = vdwg.mxu0
    %v1134 = vsel %vm308, %v1126, -inf
    %1135 = vmax.xlane.f32.xlu0 %v1134
    %v1136 = vpop.xlane.xlu0 %1135
    %v1137 = vsel %vm308, %v1131, -inf
    %1138 = vmax.xlane.f32.xlu0 %v1137
    %v1139 = vpop.xlane.xlu0 %1138
    %v1140 = vsub.f32 %v1126, %v1136
    %v1141 = vsub.f32 %v1131, %v1139
    %v1142 = vmul.f32 %v1140, 1.442695
    %v1143 = vpow.pop %v1142
    %v1144 = vmul.f32 %v1141, 1.442695
    %v1145 = vpow.pop %v1144
    %v1146 = vsel %vm308, %v1143, 0.0
    %1147 = vadd.xlane.f32.xlu0 %v1146
    %v1148 = vpop.xlane.xlu0 %1147
    %v1149 = vsel %vm308, %v1145, 0.0
    %1150 = vadd.xlane.f32.xlu0 %v1149
    %v1151 = vpop.xlane.xlu0 %1150
    %v1152 = vrcp.pop %v1148
    %v1153 = vrcp.pop %v1151
    %v1154 = vmul.f32 %v1143, %v1152
    %v1155 = vmul.f32 %v1145, %v1153
    %v1157 = vsel %vm308, %v1154, 0
    %v1160 = vsel %vm308, %v1155, 0
    %1162 = vmatprep.subr.mxu0 0.0
    %1163 = vmatpush1.msra.mxu0 %v212
    %1164 = vmatprep.subr.mxu0 0.0
    %1165 = vmatpush1.msra.mxu0 %v215
    %1166 = vmatprep.subr.mxu0 0.0
    %1167 = vmatpush1.msra.mxu0 0.0
    %1168 = vmatprep.subr.mxu0 0.0
    %1169 = vmatpush1.msra.mxu0 0.0
    %1170 = vmatprep.subr.mxu0 0.0
    %1171 = vmatpush1.msra.mxu0 0.0
    %1172 = vmatprep.subr.mxu0 0.0
    %1173 = vmatpush1.msra.mxu0 0.0
    %1174 = vmatprep.subr.mxu0 0.0
    %1175 = vmatpush1.msra.mxu0 0.0
    %1176 = vmatprep.subr.mxu0 0.0
    %1177 = vmatpush1.msra.mxu0 0.0
    %1178 = vmatprep.subr.mxu0 0.0
    %1179 = vmatpush1.msra.mxu0 0.0
    %1180 = vmatprep.subr.mxu0 0.0
    %1181 = vmatpush1.msra.mxu0 0.0
    %1182 = vmatprep.subr.mxu0 0.0
    %1183 = vmatpush1.msra.mxu0 0.0
    %1184 = vmatprep.subr.mxu0 0.0
    %1185 = vmatpush1.msra.mxu0 0.0
    %1186 = vmatprep.subr.mxu0 0.0
    %1187 = vmatpush1.msra.mxu0 0.0
    %1188 = vmatprep.subr.mxu0 0.0
    %1189 = vmatpush1.msra.mxu0 0.0
    %1190 = vmatprep.subr.mxu0 0.0
    %1191 = vmatpush1.msra.mxu0 0.0
    %1192 = vmatprep.subr.mxu0 0.0
    %1193 = vmatpush1.msra.mxu0 0.0
    %1194 = vmatprep.subr.mxu0 0.0
    %1195 = vmatpush1.msra.mxu0 0.0
    %1196 = vmatprep.subr.mxu0 0.0
    %1197 = vmatpush1.msra.mxu0 0.0
    %1198 = vmatprep.subr.mxu0 0.0
    %1199 = vmatpush1.msra.mxu0 0.0
    %1200 = vmatprep.subr.mxu0 0.0
    %1201 = vmatpush1.msra.mxu0 0.0
    %1202 = vmatprep.subr.mxu0 0.0
    %1203 = vmatpush1.msra.mxu0 0.0
    %1204 = vmatprep.subr.mxu0 0.0
    %1205 = vmatpush1.msra.mxu0 0.0
    %1206 = vmatprep.subr.mxu0 0.0
    %1207 = vmatpush1.msra.mxu0 0.0
    %1208 = vmatprep.subr.mxu0 0.0
    %1209 = vmatpush1.msra.mxu0 0.0
    %1210 = vmatprep.subr.mxu0 0.0
    %1211 = vmatpush1.msra.mxu0 0.0
    %1212 = vmatprep.subr.mxu0 0.0
    %1213 = vmatpush1.msra.mxu0 0.0
    %1214 = vmatprep.subr.mxu0 0.0
    %1215 = vmatpush1.msra.mxu0 0.0
    %1216 = vmatprep.subr.mxu0 0.0
    %1217 = vmatpush1.msra.mxu0 0.0
    %1218 = vmatprep.subr.mxu0 0.0
    %1219 = vmatpush1.msra.mxu0 0.0
    %1220 = vmatprep.subr.mxu0 0.0
    %1221 = vmatpush1.msra.mxu0 0.0
    %1222 = vmatprep.subr.mxu0 0.0
    %1223 = vmatpush1.msra.mxu0 0.0
    %1224 = vmatprep.subr.mxu0 0.0
    %1225 = vmatpush1.msra.mxu0 0.0
    %1226 = vmatprep.mubr.f32.mxu0 0.0
    %1227 = vmatmul.mubr.f32.gmra.mrb[0].mxu0 %v1157
    %v1228 = vpop.f32.mrb[0].mxu0
    %v1229 = vadd.f32 0.0, %v1228
    %v1230 = vpop.f32.mrb[0].mxu0
    %1231 = vmatprep.mubr.f32.mxu0 0.0
    %1232 = vmatmul.mubr.f32.gmra.mrb[0].mxu0 %v1160
    %v1233 = vpop.f32.mrb[0].mxu0
    %v1234 = vadd.f32 0.0, %v1233
    %v1235 = vpop.f32.mrb[0].mxu0
    %1236 = vdwg.mxu0
    %1237 = vrot.lane.b32.xlu0 %v147, 120
    %v1238 = vpop.permute.xlu0 %1237
    %1239 = vrot.lane.b32.xlu0 %v150, 120
    %v1240 = vpop.permute.xlu0 %1239
    %1241 = vrot.lane.b32.xlu0 %v147, 88
    %v1242 = vpop.permute.xlu0 %1241
    %1243 = vrot.lane.b32.xlu0 %v150, 88
    %v1244 = vpop.permute.xlu0 %1243
    %v1245 = vsel %vm224, %v1238, 0
    %v1247 = vsel %vm224, %v1240, 0
    %v1249 = vsel %vm224, %v1242, 0
    %v1251 = vsel %vm224, %v1244, 0
    %1253 = vmatprep.subr.mxu0 0.0
    %1254 = vmatpush1.xpose.msra.mxu0 %v1249
    %1255 = vmatprep.subr.mxu0 0.0
    %1256 = vmatpush1.xpose.msra.mxu0 %v1251
    %1257 = vmatprep.subr.mxu0 0.0
    %1258 = vmatpush1.xpose.msra.mxu0 0.0
    %1259 = vmatprep.subr.mxu0 0.0
    %1260 = vmatpush1.xpose.msra.mxu0 0.0
    %1261 = vmatprep.subr.mxu0 0.0
    %1262 = vmatpush1.xpose.msra.mxu0 0.0
    %1263 = vmatprep.subr.mxu0 0.0
    %1264 = vmatpush1.xpose.msra.mxu0 0.0
    %1265 = vmatprep.subr.mxu0 0.0
    %1266 = vmatpush1.xpose.msra.mxu0 0.0
    %1267 = vmatprep.subr.mxu0 0.0
    %1268 = vmatpush1.xpose.msra.mxu0 0.0
    %1269 = vmatprep.subr.mxu0 0.0
    %1270 = vmatpush1.xpose.msra.mxu0 0.0
    %1271 = vmatprep.subr.mxu0 0.0
    %1272 = vmatpush1.xpose.msra.mxu0 0.0
    %1273 = vmatprep.subr.mxu0 0.0
    %1274 = vmatpush1.xpose.msra.mxu0 0.0
    %1275 = vmatprep.subr.mxu0 0.0
    %1276 = vmatpush1.xpose.msra.mxu0 0.0
    %1277 = vmatprep.subr.mxu0 0.0
    %1278 = vmatpush1.xpose.msra.mxu0 0.0
    %1279 = vmatprep.subr.mxu0 0.0
    %1280 = vmatpush1.xpose.msra.mxu0 0.0
    %1281 = vmatprep.subr.mxu0 0.0
    %1282 = vmatpush1.xpose.msra.mxu0 0.0
    %1283 = vmatprep.subr.mxu0 0.0
    %1284 = vmatpush1.xpose.msra.mxu0 0.0
    %1285 = vmatprep.subr.mxu0 0.0
    %1286 = vmatpush1.xpose.msra.mxu0 0.0
    %1287 = vmatprep.subr.mxu0 0.0
    %1288 = vmatpush1.xpose.msra.mxu0 0.0
    %1289 = vmatprep.subr.mxu0 0.0
    %1290 = vmatpush1.xpose.msra.mxu0 0.0
    %1291 = vmatprep.subr.mxu0 0.0
    %1292 = vmatpush1.xpose.msra.mxu0 0.0
    %1293 = vmatprep.subr.mxu0 0.0
    %1294 = vmatpush1.xpose.msra.mxu0 0.0
    %1295 = vmatprep.subr.mxu0 0.0
    %1296 = vmatpush1.xpose.msra.mxu0 0.0
    %1297 = vmatprep.subr.mxu0 0.0
    %1298 = vmatpush1.xpose.msra.mxu0 0.0
    %1299 = vmatprep.subr.mxu0 0.0
    %1300 = vmatpush1.xpose.msra.mxu0 0.0
    %1301 = vmatprep.subr.mxu0 0.0
    %1302 = vmatpush1.xpose.msra.mxu0 0.0
    %1303 = vmatprep.subr.mxu0 0.0
    %1304 = vmatpush1.xpose.msra.mxu0 0.0
    %1305 = vmatprep.subr.mxu0 0.0
    %1306 = vmatpush1.xpose.msra.mxu0 0.0
    %1307 = vmatprep.subr.mxu0 0.0
    %1308 = vmatpush1.xpose.msra.mxu0 0.0
    %1309 = vmatprep.subr.mxu0 0.0
    %1310 = vmatpush1.xpose.msra.mxu0 0.0
    %1311 = vmatprep.subr.mxu0 0.0
    %1312 = vmatpush1.xpose.msra.mxu0 0.0
    %1313 = vmatprep.subr.mxu0 0.0
    %1314 = vmatpush1.xpose.msra.mxu0 0.0
    %1315 = vmatprep.subr.mxu0 0.0
    %1316 = vmatpush1.xpose.msra.mxu0 0.0
    %1317 = vmatprep.mubr.f32.mxu0 0.0
    %1318 = vmatmul.mubr.f32.gmra.mrb[0].mxu0 %v1245
    %v1319 = vpop.f32.mrb[0].mxu0
    %v1320 = vadd.f32 0.0, %v1319
    %v1321 = vpop.f32.mrb[0].mxu0
    %1322 = vmatprep.mubr.f32.mxu0 0.0
    %1323 = vmatmul.mubr.f32.gmra.mrb[0].mxu0 %v1247
    %v1324 = vpop.f32.mrb[0].mxu0
    %v1325 = vadd.f32 0.0, %v1324
    %v1326 = vpop.f32.mrb[0].mxu0
    %1327 = vdwg.mxu0
    %v1328 = vsel %vm308, %v1320, -inf
    %1329 = vmax.xlane.f32.xlu0 %v1328
    %v1330 = vpop.xlane.xlu0 %1329
    %v1331 = vsel %vm308, %v1325, -inf
    %1332 = vmax.xlane.f32.xlu0 %v1331
    %v1333 = vpop.xlane.xlu0 %1332
    %v1334 = vsub.f32 %v1320, %v1330
    %v1335 = vsub.f32 %v1325, %v1333
    %v1336 = vmul.f32 %v1334, 1.442695
    %v1337 = vpow.pop %v1336
    %v1338 = vmul.f32 %v1335, 1.442695
    %v1339 = vpow.pop %v1338
    %v1340 = vsel %vm308, %v1337, 0.0
    %1341 = vadd.xlane.f32.xlu0 %v1340
    %v1342 = vpop.xlane.xlu0 %1341
    %v1343 = vsel %vm308, %v1339, 0.0
    %1344 = vadd.xlane.f32.xlu0 %v1343
    %v1345 = vpop.xlane.xlu0 %1344
    %v1346 = vrcp.pop %v1342
    %v1347 = vrcp.pop %v1345
    %v1348 = vmul.f32 %v1337, %v1346
    %v1349 = vmul.f32 %v1339, %v1347
    %1352 = vrot.lane.b32.xlu0 %v212, 120
    %v1353 = vpop.permute.xlu0 %1352
    %1354 = vrot.lane.b32.xlu0 %v215, 120
    %v1355 = vpop.permute.xlu0 %1354
    %v1359 = vsel %vm308, %v1348, 0
    %v1362 = vsel %vm308, %v1349, 0
    %1364 = vmatprep.subr.mxu0 0.0
    %1365 = vmatpush1.msra.mxu0 %v1353
    %1366 = vmatprep.subr.mxu0 0.0
    %1367 = vmatpush1.msra.mxu0 %v1355
    %1368 = vmatprep.subr.mxu0 0.0
    %1369 = vmatpush1.msra.mxu0 0.0
    %1370 = vmatprep.subr.mxu0 0.0
    %1371 = vmatpush1.msra.mxu0 0.0
    %1372 = vmatprep.subr.mxu0 0.0
    %1373 = vmatpush1.msra.mxu0 0.0
    %1374 = vmatprep.subr.mxu0 0.0
    %1375 = vmatpush1.msra.mxu0 0.0
    %1376 = vmatprep.subr.mxu0 0.0
    %1377 = vmatpush1.msra.mxu0 0.0
    %1378 = vmatprep.subr.mxu0 0.0
    %1379 = vmatpush1.msra.mxu0 0.0
    %1380 = vmatprep.subr.mxu0 0.0
    %1381 = vmatpush1.msra.mxu0 0.0
    %1382 = vmatprep.subr.mxu0 0.0
    %1383 = vmatpush1.msra.mxu0 0.0
    %1384 = vmatprep.subr.mxu0 0.0
    %1385 = vmatpush1.msra.mxu0 0.0
    %1386 = vmatprep.subr.mxu0 0.0
    %1387 = vmatpush1.msra.mxu0 0.0
    %1388 = vmatprep.subr.mxu0 0.0
    %1389 = vmatpush1.msra.mxu0 0.0
    %1390 = vmatprep.subr.mxu0 0.0
    %1391 = vmatpush1.msra.mxu0 0.0
    %1392 = vmatprep.subr.mxu0 0.0
    %1393 = vmatpush1.msra.mxu0 0.0
    %1394 = vmatprep.subr.mxu0 0.0
    %1395 = vmatpush1.msra.mxu0 0.0
    %1396 = vmatprep.subr.mxu0 0.0
    %1397 = vmatpush1.msra.mxu0 0.0
    %1398 = vmatprep.subr.mxu0 0.0
    %1399 = vmatpush1.msra.mxu0 0.0
    %1400 = vmatprep.subr.mxu0 0.0
    %1401 = vmatpush1.msra.mxu0 0.0
    %1402 = vmatprep.subr.mxu0 0.0
    %1403 = vmatpush1.msra.mxu0 0.0
    %1404 = vmatprep.subr.mxu0 0.0
    %1405 = vmatpush1.msra.mxu0 0.0
    %1406 = vmatprep.subr.mxu0 0.0
    %1407 = vmatpush1.msra.mxu0 0.0
    %1408 = vmatprep.subr.mxu0 0.0
    %1409 = vmatpush1.msra.mxu0 0.0
    %1410 = vmatprep.subr.mxu0 0.0
    %1411 = vmatpush1.msra.mxu0 0.0
    %1412 = vmatprep.subr.mxu0 0.0
    %1413 = vmatpush1.msra.mxu0 0.0
    %1414 = vmatprep.subr.mxu0 0.0
    %1415 = vmatpush1.msra.mxu0 0.0
    %1416 = vmatprep.subr.mxu0 0.0
    %1417 = vmatpush1.msra.mxu0 0.0
    %1418 = vmatprep.subr.mxu0 0.0
    %1419 = vmatpush1.msra.mxu0 0.0
    %1420 = vmatprep.subr.mxu0 0.0
    %1421 = vmatpush1.msra.mxu0 0.0
    %1422 = vmatprep.subr.mxu0 0.0
    %1423 = vmatpush1.msra.mxu0 0.0
    %1424 = vmatprep.subr.mxu0 0.0
    %1425 = vmatpush1.msra.mxu0 0.0
    %1426 = vmatprep.subr.mxu0 0.0
    %1427 = vmatpush1.msra.mxu0 0.0
    %1428 = vmatprep.mubr.f32.mxu0 0.0
    %1429 = vmatmul.mubr.f32.gmra.mrb[0].mxu0 %v1359
    %v1430 = vpop.f32.mrb[0].mxu0
    %v1431 = vadd.f32 0.0, %v1430
    %v1432 = vpop.f32.mrb[0].mxu0
    %1433 = vmatprep.mubr.f32.mxu0 0.0
    %1434 = vmatmul.mubr.f32.gmra.mrb[0].mxu0 %v1362
    %v1435 = vpop.f32.mrb[0].mxu0
    %v1436 = vadd.f32 0.0, %v1435
    %v1437 = vpop.f32.mrb[0].mxu0
    %1438 = vdwg.mxu0
    %1439 = vrot.lane.b32.xlu0 %v147, 112
    %v1440 = vpop.permute.xlu0 %1439
    %1441 = vrot.lane.b32.xlu0 %v150, 112
    %v1442 = vpop.permute.xlu0 %1441
    %1443 = vrot.lane.b32.xlu0 %v147, 80
    %v1444 = vpop.permute.xlu0 %1443
    %1445 = vrot.lane.b32.xlu0 %v150, 80
    %v1446 = vpop.permute.xlu0 %1445
    %v1447 = vsel %vm224, %v1440, 0
    %v1449 = vsel %vm224, %v1442, 0
    %v1451 = vsel %vm224, %v1444, 0
    %v1453 = vsel %vm224, %v1446, 0
    %1455 = vmatprep.subr.mxu0 0.0
    %1456 = vmatpush1.xpose.msra.mxu0 %v1451
    %1457 = vmatprep.subr.mxu0 0.0
    %1458 = vmatpush1.xpose.msra.mxu0 %v1453
    %1459 = vmatprep.subr.mxu0 0.0
    %1460 = vmatpush1.xpose.msra.mxu0 0.0
    %1461 = vmatprep.subr.mxu0 0.0
    %1462 = vmatpush1.xpose.msra.mxu0 0.0
    %1463 = vmatprep.subr.mxu0 0.0
    %1464 = vmatpush1.xpose.msra.mxu0 0.0
    %1465 = vmatprep.subr.mxu0 0.0
    %1466 = vmatpush1.xpose.msra.mxu0 0.0
    %1467 = vmatprep.subr.mxu0 0.0
    %1468 = vmatpush1.xpose.msra.mxu0 0.0
    %1469 = vmatprep.subr.mxu0 0.0
    %1470 = vmatpush1.xpose.msra.mxu0 0.0
    %1471 = vmatprep.subr.mxu0 0.0
    %1472 = vmatpush1.xpose.msra.mxu0 0.0
    %1473 = vmatprep.subr.mxu0 0.0
    %1474 = vmatpush1.xpose.msra.mxu0 0.0
    %1475 = vmatprep.subr.mxu0 0.0
    %1476 = vmatpush1.xpose.msra.mxu0 0.0
    %1477 = vmatprep.subr.mxu0 0.0
    %1478 = vmatpush1.xpose.msra.mxu0 0.0
    %1479 = vmatprep.subr.mxu0 0.0
    %1480 = vmatpush1.xpose.msra.mxu0 0.0
    %1481 = vmatprep.subr.mxu0 0.0
    %1482 = vmatpush1.xpose.msra.mxu0 0.0
    %1483 = vmatprep.subr.mxu0 0.0
    %1484 = vmatpush1.xpose.msra.mxu0 0.0
    %1485 = vmatprep.subr.mxu0 0.0
    %1486 = vmatpush1.xpose.msra.mxu0 0.0
    %1487 = vmatprep.subr.mxu0 0.0
    %1488 = vmatpush1.xpose.msra.mxu0 0.0
    %1489 = vmatprep.subr.mxu0 0.0
    %1490 = vmatpush1.xpose.msra.mxu0 0.0
    %1491 = vmatprep.subr.mxu0 0.0
    %1492 = vmatpush1.xpose.msra.mxu0 0.0
    %1493 = vmatprep.subr.mxu0 0.0
    %1494 = vmatpush1.xpose.msra.mxu0 0.0
    %1495 = vmatprep.subr.mxu0 0.0
    %1496 = vmatpush1.xpose.msra.mxu0 0.0
    %1497 = vmatprep.subr.mxu0 0.0
    %1498 = vmatpush1.xpose.msra.mxu0 0.0
    %1499 = vmatprep.subr.mxu0 0.0
    %1500 = vmatpush1.xpose.msra.mxu0 0.0
    %1501 = vmatprep.subr.mxu0 0.0
    %1502 = vmatpush1.xpose.msra.mxu0 0.0
    %1503 = vmatprep.subr.mxu0 0.0
    %1504 = vmatpush1.xpose.msra.mxu0 0.0
    %1505 = vmatprep.subr.mxu0 0.0
    %1506 = vmatpush1.xpose.msra.mxu0 0.0
    %1507 = vmatprep.subr.mxu0 0.0
    %1508 = vmatpush1.xpose.msra.mxu0 0.0
    %1509 = vmatprep.subr.mxu0 0.0
    %1510 = vmatpush1.xpose.msra.mxu0 0.0
    %1511 = vmatprep.subr.mxu0 0.0
    %1512 = vmatpush1.xpose.msra.mxu0 0.0
    %1513 = vmatprep.subr.mxu0 0.0
    %1514 = vmatpush1.xpose.msra.mxu0 0.0
    %1515 = vmatprep.subr.mxu0 0.0
    %1516 = vmatpush1.xpose.msra.mxu0 0.0
    %1517 = vmatprep.subr.mxu0 0.0
    %1518 = vmatpush1.xpose.msra.mxu0 0.0
    %1519 = vmatprep.mubr.f32.mxu0 0.0
    %1520 = vmatmul.mubr.f32.gmra.mrb[0].mxu0 %v1447
    %v1521 = vpop.f32.mrb[0].mxu0
    %v1522 = vadd.f32 0.0, %v1521
    %v1523 = vpop.f32.mrb[0].mxu0
    %1524 = vmatprep.mubr.f32.mxu0 0.0
    %1525 = vmatmul.mubr.f32.gmra.mrb[0].mxu0 %v1449
    %v1526 = vpop.f32.mrb[0].mxu0
    %v1527 = vadd.f32 0.0, %v1526
    %v1528 = vpop.f32.mrb[0].mxu0
    %1529 = vdwg.mxu0
    %v1530 = vsel %vm308, %v1522, -inf
    %1531 = vmax.xlane.f32.xlu0 %v1530
    %v1532 = vpop.xlane.xlu0 %1531
    %v1533 = vsel %vm308, %v1527, -inf
    %1534 = vmax.xlane.f32.xlu0 %v1533
    %v1535 = vpop.xlane.xlu0 %1534
    %v1536 = vsub.f32 %v1522, %v1532
    %v1537 = vsub.f32 %v1527, %v1535
    %v1538 = vmul.f32 %v1536, 1.442695
    %v1539 = vpow.pop %v1538
    %v1540 = vmul.f32 %v1537, 1.442695
    %v1541 = vpow.pop %v1540
    %v1542 = vsel %vm308, %v1539, 0.0
    %1543 = vadd.xlane.f32.xlu0 %v1542
    %v1544 = vpop.xlane.xlu0 %1543
    %v1545 = vsel %vm308, %v1541, 0.0
    %1546 = vadd.xlane.f32.xlu0 %v1545
    %v1547 = vpop.xlane.xlu0 %1546
    %v1548 = vrcp.pop %v1544
    %v1549 = vrcp.pop %v1547
    %v1550 = vmul.f32 %v1539, %v1548
    %v1551 = vmul.f32 %v1541, %v1549
    %1552 = vrot.lane.b32.xlu0 %v212, 112
    %v1553 = vpop.permute.xlu0 %1552
    %1554 = vrot.lane.b32.xlu0 %v215, 112
    %v1555 = vpop.permute.xlu0 %1554
    %v1559 = vsel %vm308, %v1550, 0
    %v1562 = vsel %vm308, %v1551, 0
    %1564 = vmatprep.subr.mxu0 0.0
    %1565 = vmatpush1.msra.mxu0 %v1553
    %1566 = vmatprep.subr.mxu0 0.0
    %1567 = vmatpush1.msra.mxu0 %v1555
    %1568 = vmatprep.subr.mxu0 0.0
    %1569 = vmatpush1.msra.mxu0 0.0
    %1570 = vmatprep.subr.mxu0 0.0
    %1571 = vmatpush1.msra.mxu0 0.0
    %1572 = vmatprep.subr.mxu0 0.0
    %1573 = vmatpush1.msra.mxu0 0.0
    %1574 = vmatprep.subr.mxu0 0.0
    %1575 = vmatpush1.msra.mxu0 0.0
    %1576 = vmatprep.subr.mxu0 0.0
    %1577 = vmatpush1.msra.mxu0 0.0
    %1578 = vmatprep.subr.mxu0 0.0
    %1579 = vmatpush1.msra.mxu0 0.0
    %1580 = vmatprep.subr.mxu0 0.0
    %1581 = vmatpush1.msra.mxu0 0.0
    %1582 = vmatprep.subr.mxu0 0.0
    %1583 = vmatpush1.msra.mxu0 0.0
    %1584 = vmatprep.subr.mxu0 0.0
    %1585 = vmatpush1.msra.mxu0 0.0
    %1586 = vmatprep.subr.mxu0 0.0
    %1587 = vmatpush1.msra.mxu0 0.0
    %1588 = vmatprep.subr.mxu0 0.0
    %1589 = vmatpush1.msra.mxu0 0.0
    %1590 = vmatprep.subr.mxu0 0.0
    %1591 = vmatpush1.msra.mxu0 0.0
    %1592 = vmatprep.subr.mxu0 0.0
    %1593 = vmatpush1.msra.mxu0 0.0
    %1594 = vmatprep.subr.mxu0 0.0
    %1595 = vmatpush1.msra.mxu0 0.0
    %1596 = vmatprep.subr.mxu0 0.0
    %1597 = vmatpush1.msra.mxu0 0.0
    %1598 = vmatprep.subr.mxu0 0.0
    %1599 = vmatpush1.msra.mxu0 0.0
    %1600 = vmatprep.subr.mxu0 0.0
    %1601 = vmatpush1.msra.mxu0 0.0
    %1602 = vmatprep.subr.mxu0 0.0
    %1603 = vmatpush1.msra.mxu0 0.0
    %1604 = vmatprep.subr.mxu0 0.0
    %1605 = vmatpush1.msra.mxu0 0.0
    %1606 = vmatprep.subr.mxu0 0.0
    %1607 = vmatpush1.msra.mxu0 0.0
    %1608 = vmatprep.subr.mxu0 0.0
    %1609 = vmatpush1.msra.mxu0 0.0
    %1610 = vmatprep.subr.mxu0 0.0
    %1611 = vmatpush1.msra.mxu0 0.0
    %1612 = vmatprep.subr.mxu0 0.0
    %1613 = vmatpush1.msra.mxu0 0.0
    %1614 = vmatprep.subr.mxu0 0.0
    %1615 = vmatpush1.msra.mxu0 0.0
    %1616 = vmatprep.subr.mxu0 0.0
    %1617 = vmatpush1.msra.mxu0 0.0
    %1618 = vmatprep.subr.mxu0 0.0
    %1619 = vmatpush1.msra.mxu0 0.0
    %1620 = vmatprep.subr.mxu0 0.0
    %1621 = vmatpush1.msra.mxu0 0.0
    %1622 = vmatprep.subr.mxu0 0.0
    %1623 = vmatpush1.msra.mxu0 0.0
    %1624 = vmatprep.subr.mxu0 0.0
    %1625 = vmatpush1.msra.mxu0 0.0
    %1626 = vmatprep.subr.mxu0 0.0
    %1627 = vmatpush1.msra.mxu0 0.0
    %1628 = vmatprep.mubr.f32.mxu0 0.0
    %1629 = vmatmul.mubr.f32.gmra.mrb[0].mxu0 %v1559
    %v1630 = vpop.f32.mrb[0].mxu0
    %v1631 = vadd.f32 0.0, %v1630
    %v1632 = vpop.f32.mrb[0].mxu0
    %1633 = vmatprep.mubr.f32.mxu0 0.0
    %1634 = vmatmul.mubr.f32.gmra.mrb[0].mxu0 %v1562
    %v1635 = vpop.f32.mrb[0].mxu0
    %v1636 = vadd.f32 0.0, %v1635
    %v1637 = vpop.f32.mrb[0].mxu0
    %1638 = vdwg.mxu0
    %1639 = vrot.lane.b32.xlu0 %v147, 104
    %v1640 = vpop.permute.xlu0 %1639
    %1641 = vrot.lane.b32.xlu0 %v150, 104
    %v1642 = vpop.permute.xlu0 %1641
    %1643 = vrot.lane.b32.xlu0 %v147, 72
    %v1644 = vpop.permute.xlu0 %1643
    %1645 = vrot.lane.b32.xlu0 %v150, 72
    %v1646 = vpop.permute.xlu0 %1645
    %v1647 = vsel %vm224, %v1640, 0
    %v1649 = vsel %vm224, %v1642, 0
    %v1651 = vsel %vm224, %v1644, 0
    %v1653 = vsel %vm224, %v1646, 0
    %1655 = vmatprep.subr.mxu0 0.0
    %1656 = vmatpush1.xpose.msra.mxu0 %v1651
    %1657 = vmatprep.subr.mxu0 0.0
    %1658 = vmatpush1.xpose.msra.mxu0 %v1653
    %1659 = vmatprep.subr.mxu0 0.0
    %1660 = vmatpush1.xpose.msra.mxu0 0.0
    %1661 = vmatprep.subr.mxu0 0.0
    %1662 = vmatpush1.xpose.msra.mxu0 0.0
    %1663 = vmatprep.subr.mxu0 0.0
    %1664 = vmatpush1.xpose.msra.mxu0 0.0
    %1665 = vmatprep.subr.mxu0 0.0
    %1666 = vmatpush1.xpose.msra.mxu0 0.0
    %1667 = vmatprep.subr.mxu0 0.0
    %1668 = vmatpush1.xpose.msra.mxu0 0.0
    %1669 = vmatprep.subr.mxu0 0.0
    %1670 = vmatpush1.xpose.msra.mxu0 0.0
    %1671 = vmatprep.subr.mxu0 0.0
    %1672 = vmatpush1.xpose.msra.mxu0 0.0
    %1673 = vmatprep.subr.mxu0 0.0
    %1674 = vmatpush1.xpose.msra.mxu0 0.0
    %1675 = vmatprep.subr.mxu0 0.0
    %1676 = vmatpush1.xpose.msra.mxu0 0.0
    %1677 = vmatprep.subr.mxu0 0.0
    %1678 = vmatpush1.xpose.msra.mxu0 0.0
    %1679 = vmatprep.subr.mxu0 0.0
    %1680 = vmatpush1.xpose.msra.mxu0 0.0
    %1681 = vmatprep.subr.mxu0 0.0
    %1682 = vmatpush1.xpose.msra.mxu0 0.0
    %1683 = vmatprep.subr.mxu0 0.0
    %1684 = vmatpush1.xpose.msra.mxu0 0.0
    %1685 = vmatprep.subr.mxu0 0.0
    %1686 = vmatpush1.xpose.msra.mxu0 0.0
    %1687 = vmatprep.subr.mxu0 0.0
    %1688 = vmatpush1.xpose.msra.mxu0 0.0
    %1689 = vmatprep.subr.mxu0 0.0
    %1690 = vmatpush1.xpose.msra.mxu0 0.0
    %1691 = vmatprep.subr.mxu0 0.0
    %1692 = vmatpush1.xpose.msra.mxu0 0.0
    %1693 = vmatprep.subr.mxu0 0.0
    %1694 = vmatpush1.xpose.msra.mxu0 0.0
    %1695 = vmatprep.subr.mxu0 0.0
    %1696 = vmatpush1.xpose.msra.mxu0 0.0
    %1697 = vmatprep.subr.mxu0 0.0
    %1698 = vmatpush1.xpose.msra.mxu0 0.0
    %1699 = vmatprep.subr.mxu0 0.0
    %1700 = vmatpush1.xpose.msra.mxu0 0.0
    %1701 = vmatprep.subr.mxu0 0.0
    %1702 = vmatpush1.xpose.msra.mxu0 0.0
    %1703 = vmatprep.subr.mxu0 0.0
    %1704 = vmatpush1.xpose.msra.mxu0 0.0
    %1705 = vmatprep.subr.mxu0 0.0
    %1706 = vmatpush1.xpose.msra.mxu0 0.0
    %1707 = vmatprep.subr.mxu0 0.0
    %1708 = vmatpush1.xpose.msra.mxu0 0.0
    %1709 = vmatprep.subr.mxu0 0.0
    %1710 = vmatpush1.xpose.msra.mxu0 0.0
    %1711 = vmatprep.subr.mxu0 0.0
    %1712 = vmatpush1.xpose.msra.mxu0 0.0
    %1713 = vmatprep.subr.mxu0 0.0
    %1714 = vmatpush1.xpose.msra.mxu0 0.0
    %1715 = vmatprep.subr.mxu0 0.0
    %1716 = vmatpush1.xpose.msra.mxu0 0.0
    %1717 = vmatprep.subr.mxu0 0.0
    %1718 = vmatpush1.xpose.msra.mxu0 0.0
    %1719 = vmatprep.mubr.f32.mxu0 0.0
    %1720 = vmatmul.mubr.f32.gmra.mrb[0].mxu0 %v1647
    %v1721 = vpop.f32.mrb[0].mxu0
    %v1722 = vadd.f32 0.0, %v1721
    %v1723 = vpop.f32.mrb[0].mxu0
    %1724 = vmatprep.mubr.f32.mxu0 0.0
    %1725 = vmatmul.mubr.f32.gmra.mrb[0].mxu0 %v1649
    %v1726 = vpop.f32.mrb[0].mxu0
    %v1727 = vadd.f32 0.0, %v1726
    %v1728 = vpop.f32.mrb[0].mxu0
    %1729 = vdwg.mxu0
    %v1730 = vsel %vm308, %v1722, -inf
    %1731 = vmax.xlane.f32.xlu0 %v1730
    %v1732 = vpop.xlane.xlu0 %1731
    %v1733 = vsel %vm308, %v1727, -inf
    %1734 = vmax.xlane.f32.xlu0 %v1733
    %v1735 = vpop.xlane.xlu0 %1734
    %v1736 = vsub.f32 %v1722, %v1732
    %v1737 = vsub.f32 %v1727, %v1735
    %v1738 = vmul.f32 %v1736, 1.442695
    %v1739 = vpow.pop %v1738
    %v1740 = vmul.f32 %v1737, 1.442695
    %v1741 = vpow.pop %v1740
    %v1742 = vsel %vm308, %v1739, 0.0
    %1743 = vadd.xlane.f32.xlu0 %v1742
    %v1744 = vpop.xlane.xlu0 %1743
    %v1745 = vsel %vm308, %v1741, 0.0
    %1746 = vadd.xlane.f32.xlu0 %v1745
    %v1747 = vpop.xlane.xlu0 %1746
    %v1748 = vrcp.pop %v1744
    %v1749 = vrcp.pop %v1747
    %v1750 = vmul.f32 %v1739, %v1748
    %v1751 = vmul.f32 %v1741, %v1749
    %1752 = vrot.lane.b32.xlu0 %v212, 104
    %v1753 = vpop.permute.xlu0 %1752
    %1754 = vrot.lane.b32.xlu0 %v215, 104
    %v1755 = vpop.permute.xlu0 %1754
    %v1759 = vsel %vm308, %v1750, 0
    %v1762 = vsel %vm308, %v1751, 0
    %1764 = vmatprep.subr.mxu0 0.0
    %1765 = vmatpush1.msra.mxu0 %v1753
    %1766 = vmatprep.subr.mxu0 0.0
    %1767 = vmatpush1.msra.mxu0 %v1755
    %1768 = vmatprep.subr.mxu0 0.0
    %1769 = vmatpush1.msra.mxu0 0.0
    %1770 = vmatprep.subr.mxu0 0.0
    %1771 = vmatpush1.msra.mxu0 0.0
    %1772 = vmatprep.subr.mxu0 0.0
    %1773 = vmatpush1.msra.mxu0 0.0
    %1774 = vmatprep.subr.mxu0 0.0
    %1775 = vmatpush1.msra.mxu0 0.0
    %1776 = vmatprep.subr.mxu0 0.0
    %1777 = vmatpush1.msra.mxu0 0.0
    %1778 = vmatprep.subr.mxu0 0.0
    %1779 = vmatpush1.msra.mxu0 0.0
    %1780 = vmatprep.subr.mxu0 0.0
    %1781 = vmatpush1.msra.mxu0 0.0
    %1782 = vmatprep.subr.mxu0 0.0
    %1783 = vmatpush1.msra.mxu0 0.0
    %1784 = vmatprep.subr.mxu0 0.0
    %1785 = vmatpush1.msra.mxu0 0.0
    %1786 = vmatprep.subr.mxu0 0.0
    %1787 = vmatpush1.msra.mxu0 0.0
    %1788 = vmatprep.subr.mxu0 0.0
    %1789 = vmatpush1.msra.mxu0 0.0
    %1790 = vmatprep.subr.mxu0 0.0
    %1791 = vmatpush1.msra.mxu0 0.0
    %1792 = vmatprep.subr.mxu0 0.0
    %1793 = vmatpush1.msra.mxu0 0.0
    %1794 = vmatprep.subr.mxu0 0.0
    %1795 = vmatpush1.msra.mxu0 0.0
    %1796 = vmatprep.subr.mxu0 0.0
    %1797 = vmatpush1.msra.mxu0 0.0
    %1798 = vmatprep.subr.mxu0 0.0
    %1799 = vmatpush1.msra.mxu0 0.0
    %1800 = vmatprep.subr.mxu0 0.0
    %1801 = vmatpush1.msra.mxu0 0.0
    %1802 = vmatprep.subr.mxu0 0.0
    %1803 = vmatpush1.msra.mxu0 0.0
    %1804 = vmatprep.subr.mxu0 0.0
    %1805 = vmatpush1.msra.mxu0 0.0
    %1806 = vmatprep.subr.mxu0 0.0
    %1807 = vmatpush1.msra.mxu0 0.0
    %1808 = vmatprep.subr.mxu0 0.0
    %1809 = vmatpush1.msra.mxu0 0.0
    %1810 = vmatprep.subr.mxu0 0.0
    %1811 = vmatpush1.msra.mxu0 0.0
    %1812 = vmatprep.subr.mxu0 0.0
    %1813 = vmatpush1.msra.mxu0 0.0
    %1814 = vmatprep.subr.mxu0 0.0
    %1815 = vmatpush1.msra.mxu0 0.0
    %1816 = vmatprep.subr.mxu0 0.0
    %1817 = vmatpush1.msra.mxu0 0.0
    %1818 = vmatprep.subr.mxu0 0.0
    %1819 = vmatpush1.msra.mxu0 0.0
    %1820 = vmatprep.subr.mxu0 0.0
    %1821 = vmatpush1.msra.mxu0 0.0
    %1822 = vmatprep.subr.mxu0 0.0
    %1823 = vmatpush1.msra.mxu0 0.0
    %1824 = vmatprep.subr.mxu0 0.0
    %1825 = vmatpush1.msra.mxu0 0.0
    %1826 = vmatprep.subr.mxu0 0.0
    %1827 = vmatpush1.msra.mxu0 0.0
    %1828 = vmatprep.mubr.f32.mxu0 0.0
    %1829 = vmatmul.mubr.f32.gmra.mrb[0].mxu0 %v1759
    %v1830 = vpop.f32.mrb[0].mxu0
    %v1831 = vadd.f32 0.0, %v1830
    %v1832 = vpop.f32.mrb[0].mxu0
    %1833 = vmatprep.mubr.f32.mxu0 0.0
    %1834 = vmatmul.mubr.f32.gmra.mrb[0].mxu0 %v1762
    %v1835 = vpop.f32.mrb[0].mxu0
    %v1836 = vadd.f32 0.0, %v1835
    %v1837 = vpop.f32.mrb[0].mxu0
    %1838 = vdwg.mxu0
    %1841 = vrot.lane.b32.xlu0 %v1431, 8
    %v1842 = vpop.permute.xlu0 %1841
    %1843 = vrot.lane.b32.xlu0 %v1436, 8
    %v1844 = vpop.permute.xlu0 %1843
    %1849 = vrot.lane.b32.xlu0 %v1631, 16
    %v1850 = vpop.permute.xlu0 %1849
    %1851 = vrot.lane.b32.xlu0 %v1636, 16
    %v1852 = vpop.permute.xlu0 %1851
    %1857 = vrot.lane.b32.xlu0 %v1831, 24
    %v1858 = vpop.permute.xlu0 %1857
    %1859 = vrot.lane.b32.xlu0 %v1836, 24
    %v1860 = vpop.permute.xlu0 %1859
    %v1863 = vsel %vm224, %v1229, %v1842
    %v1864 = vsel %vm224, %v1234, %v1844
    %v1865 = vsel %vm308, %v1863, %v1850
    %v1866 = vsel %vm308, %v1864, %v1852
    %v1867 = vsel %vm1042, %v1865, %v1858
    %v1868 = vsel %vm1042, %v1866, %v1860
    %v1869 = vpack.c.bf16 %v1044, %v1043
    %v1870 = vpack.c.bf16 %v1868, %v1867
    %v1871 = vlaneseq
    %v1872 = vshrl.u32 %v1871, 7
    %v1873 = vsub.s32 2, %v1872
    %v1874 = vrot.slane %v71, %v1873
    %1875 = vrot.lane.b32.xlu0 %v93, 32
    %v1876 = vpop.permute.xlu0 %1875
    %1877 = vrot.lane.b32.xlu0 %v94, 32
    %v1878 = vpop.permute.xlu0 %1877
    %v1882 = vsel %vm97, %v1869, 0
    %v1885 = vsel %vm97, %v1870, 0
    %1887 = vmatprep.subr.bf16.mxu0 0
    %1888 = vmatpush1.bf16.msra.mxu0 %v1876
    %1889 = vmatprep.subr.bf16.mxu0 0
    %1890 = vmatpush1.bf16.msra.mxu0 %v1878
    %1891 = vmatprep.subr.bf16.mxu0 0
    %1892 = vmatpush1.bf16.msra.mxu0 0
    %1893 = vmatprep.subr.bf16.mxu0 0
    %1894 = vmatpush1.bf16.msra.mxu0 0
    %1895 = vmatprep.subr.bf16.mxu0 0
    %1896 = vmatpush1.bf16.msra.mxu0 0
    %1897 = vmatprep.subr.bf16.mxu0 0
    %1898 = vmatpush1.bf16.msra.mxu0 0
    %1899 = vmatprep.subr.bf16.mxu0 0
    %1900 = vmatpush1.bf16.msra.mxu0 0
    %1901 = vmatprep.subr.bf16.mxu0 0
    %1902 = vmatpush1.bf16.msra.mxu0 0
    %1903 = vmatprep.subr.bf16.mxu0 0
    %1904 = vmatpush1.bf16.msra.mxu0 0
    %1905 = vmatprep.subr.bf16.mxu0 0
    %1906 = vmatpush1.bf16.msra.mxu0 0
    %1907 = vmatprep.subr.bf16.mxu0 0
    %1908 = vmatpush1.bf16.msra.mxu0 0
    %1909 = vmatprep.subr.bf16.mxu0 0
    %1910 = vmatpush1.bf16.msra.mxu0 0
    %1911 = vmatprep.subr.bf16.mxu0 0
    %1912 = vmatpush1.bf16.msra.mxu0 0
    %1913 = vmatprep.subr.bf16.mxu0 0
    %1914 = vmatpush1.bf16.msra.mxu0 0
    %1915 = vmatprep.subr.bf16.mxu0 0
    %1916 = vmatpush1.bf16.msra.mxu0 0
    %1917 = vmatprep.subr.bf16.mxu0 0
    %1918 = vmatpush1.bf16.msra.mxu0 0
    %1919 = vmatprep.mubr.bf16.mxu0 0
    %1920 = vmatmul.mubr.bf16.gmra.mrb[0].mxu0 %v1882
    %v1921 = vpop.f32.mrb[0].mxu0
    %v1922 = vadd.f32 %v1874, %v1921
    %v1923 = vpop.f32.mrb[0].mxu0
    %v1924 = vpop.f32.mrb[0].mxu0
    %v1925 = vadd.f32 %v1874, %v1924
    %v1926 = vpop.f32.mrb[0].mxu0
    %1927 = vmatprep.mubr.bf16.mxu0 0
    %1928 = vmatmul.mubr.bf16.gmra.mrb[0].mxu0 %v1885
    %v1929 = vpop.f32.mrb[0].mxu0
    %v1930 = vadd.f32 %v1874, %v1929
    %v1931 = vpop.f32.mrb[0].mxu0
    %v1932 = vpop.f32.mrb[0].mxu0
    %v1933 = vadd.f32 %v1874, %v1932
    %v1934 = vpop.f32.mrb[0].mxu0
    %1935 = vdwg.mxu0
    %v1936 = vadd.f32 %v47, %v1922
    %v1937 = vadd.f32 %v48, %v1925
    %v1938 = vadd.f32 %v49, %v1930
    %v1939 = vadd.f32 %v50, %v1933
    %v1940 = vsel %vm97, %v1936, 0.0
    %1941 = vadd.xlane.f32.xlu0 %v1940
    %v1942 = vpop.xlane.xlu0 %1941
    %v1943 = vsel %vm97, %v1937, 0.0
    %1944 = vadd.xlane.f32.xlu0 %v1943
    %v1945 = vpop.xlane.xlu0 %1944
    %v1946 = vsel %vm97, %v1938, 0.0
    %1947 = vadd.xlane.f32.xlu0 %v1946
    %v1948 = vpop.xlane.xlu0 %1947
    %v1949 = vsel %vm97, %v1939, 0.0
    %1950 = vadd.xlane.f32.xlu0 %v1949
    %v1951 = vpop.xlane.xlu0 %1950
    %v1952 = vrcp.pop 32.0
    %v1953 = vmul.f32 %v1942, %v1952
    %v1954 = vmul.f32 %v1945, %v1952
    %v1955 = vmul.f32 %v1948, %v1952
    %v1956 = vmul.f32 %v1951, %v1952
    %v1957 = vsub.f32 %v1936, %v1953
    %v1958 = vsub.f32 %v1937, %v1954
    %v1959 = vsub.f32 %v1938, %v1955
    %v1960 = vsub.f32 %v1939, %v1956
    %v1961 = vmul.f32 %v1957, %v1957
    %v1962 = vmul.f32 %v1958, %v1958
    %v1963 = vmul.f32 %v1959, %v1959
    %v1964 = vmul.f32 %v1960, %v1960
    %v1965 = vsel %vm97, %v1961, 0.0
    %1966 = vadd.xlane.f32.xlu0 %v1965
    %v1967 = vpop.xlane.xlu0 %1966
    %v1968 = vsel %vm97, %v1962, 0.0
    %1969 = vadd.xlane.f32.xlu0 %v1968
    %v1970 = vpop.xlane.xlu0 %1969
    %v1971 = vsel %vm97, %v1963, 0.0
    %1972 = vadd.xlane.f32.xlu0 %v1971
    %v1973 = vpop.xlane.xlu0 %1972
    %v1974 = vsel %vm97, %v1964, 0.0
    %1975 = vadd.xlane.f32.xlu0 %v1974
    %v1976 = vpop.xlane.xlu0 %1975
    %v1977 = vmul.f32 %v1967, %v1952
    %v1978 = vmul.f32 %v1970, %v1952
    %v1979 = vmul.f32 %v1973, %v1952
    %v1980 = vmul.f32 %v1976, %v1952
    %v1981 = vadd.f32 %v1977, 1e-05
    %v1982 = vadd.f32 %v1978, 1e-05
    %v1983 = vadd.f32 %v1979, 1e-05
    %v1984 = vadd.f32 %v1980, 1e-05
    %v1985 = vrsqrt.pop %v1981
    %v1986 = vrsqrt.pop %v1982
    %v1987 = vrsqrt.pop %v1983
    %v1988 = vrsqrt.pop %v1984
    %v1989 = vmul.f32 %v1957, %v1985
    %v1990 = vmul.f32 %v1958, %v1986
    %v1991 = vmul.f32 %v1959, %v1987
    %v1992 = vmul.f32 %v1960, %v1988
    %v1993 = vlaneseq
    %v1994 = vshrl.u32 %v1993, 7
    %v1995 = vsub.s32 5, %v1994
    %v1996 = vrot.slane %v71, %v1995
    %v1997 = vmul.f32 %v1989, %v1996
    %v1998 = vmul.f32 %v1990, %v1996
    %v1999 = vmul.f32 %v1991, %v1996
    %v2000 = vmul.f32 %v1992, %v1996
    %v2001 = vlaneseq
    %v2002 = vshrl.u32 %v2001, 7
    %v2003 = vsub.s32 6, %v2002
    %v2004 = vrot.slane %v71, %v2003
    %v2005 = vadd.f32 %v1997, %v2004
    %v2006 = vadd.f32 %v1998, %v2004
    %v2007 = vadd.f32 %v1999, %v2004
    %v2008 = vadd.f32 %v2000, %v2004
    %v2009 = vpack.c.bf16 %v2006, %v2005
    %v2010 = vpack.c.bf16 %v2008, %v2007
    %v2011 = vlaneseq
    %v2012 = vshrl.u32 %v2011, 7
    %v2013 = vsub.s32 3, %v2012
    %v2014 = vrot.slane %v71, %v2013
    %v2019 = vunpack.c.l.b16 %v59
    %v2020 = vunpack.c.l.b16 %v60
    %v2021 = vunpack.c.l.b16 %v61
    %v2022 = vunpack.c.l.b16 %v62
    %v2023 = vpack.c.b16 %v2020, %v2019
    %v2024 = vpack.c.b16 %v2022, %v2021
    %v2028 = vsel %vm97, %v2009, 0
    %v2031 = vsel %vm97, %v2010, 0
    %2033 = vmatprep.subr.bf16.mxu0 0
    %2034 = vmatpush1.bf16.msra.mxu0 %v2023
    %2035 = vmatprep.subr.bf16.mxu0 0
    %2036 = vmatpush1.bf16.msra.mxu0 %v2024
    %2037 = vmatprep.subr.bf16.mxu0 0
    %2038 = vmatpush1.bf16.msra.mxu0 0
    %2039 = vmatprep.subr.bf16.mxu0 0
    %2040 = vmatpush1.bf16.msra.mxu0 0
    %2041 = vmatprep.subr.bf16.mxu0 0
    %2042 = vmatpush1.bf16.msra.mxu0 0
    %2043 = vmatprep.subr.bf16.mxu0 0
    %2044 = vmatpush1.bf16.msra.mxu0 0
    %2045 = vmatprep.subr.bf16.mxu0 0
    %2046 = vmatpush1.bf16.msra.mxu0 0
    %2047 = vmatprep.subr.bf16.mxu0 0
    %2048 = vmatpush1.bf16.msra.mxu0 0
    %2049 = vmatprep.subr.bf16.mxu0 0
    %2050 = vmatpush1.bf16.msra.mxu0 0
    %2051 = vmatprep.subr.bf16.mxu0 0
    %2052 = vmatpush1.bf16.msra.mxu0 0
    %2053 = vmatprep.subr.bf16.mxu0 0
    %2054 = vmatpush1.bf16.msra.mxu0 0
    %2055 = vmatprep.subr.bf16.mxu0 0
    %2056 = vmatpush1.bf16.msra.mxu0 0
    %2057 = vmatprep.subr.bf16.mxu0 0
    %2058 = vmatpush1.bf16.msra.mxu0 0
    %2059 = vmatprep.subr.bf16.mxu0 0
    %2060 = vmatpush1.bf16.msra.mxu0 0
    %2061 = vmatprep.subr.bf16.mxu0 0
    %2062 = vmatpush1.bf16.msra.mxu0 0
    %2063 = vmatprep.subr.bf16.mxu0 0
    %2064 = vmatpush1.bf16.msra.mxu0 0
    %2065 = vmatprep.mubr.bf16.mxu0 0
    %2066 = vmatmul.mubr.bf16.gmra.mrb[0].mxu0 %v2028
    %v2067 = vpop.f32.mrb[0].mxu0
    %v2068 = vadd.f32 %v2014, %v2067
    %v2069 = vpop.f32.mrb[0].mxu0
    %v2070 = vpop.f32.mrb[0].mxu0
    %v2071 = vadd.f32 %v2014, %v2070
    %v2072 = vpop.f32.mrb[0].mxu0
    %2073 = vmatprep.mubr.bf16.mxu0 0
    %2074 = vmatmul.mubr.bf16.gmra.mrb[0].mxu0 %v2031
    %v2075 = vpop.f32.mrb[0].mxu0
    %v2076 = vadd.f32 %v2014, %v2075
    %v2077 = vpop.f32.mrb[0].mxu0
    %v2078 = vpop.f32.mrb[0].mxu0
    %v2079 = vadd.f32 %v2014, %v2078
    %v2080 = vpop.f32.mrb[0].mxu0
    %2081 = vdwg.mxu0
    %v2082 = vmax.f32 %v2068, 0.0
    %v2083 = vmax.f32 %v2071, 0.0
    %v2084 = vmax.f32 %v2076, 0.0
    %v2085 = vmax.f32 %v2079, 0.0
    %v2086 = vpack.c.bf16 %v2083, %v2082
    %v2087 = vpack.c.bf16 %v2085, %v2084
    %v2088 = vlaneseq
    %v2089 = vshrl.u32 %v2088, 7
    %v2090 = vsub.s32 4, %v2089
    %v2091 = vrot.slane %v71, %v2090
    %v2100 = vunpack.c.l.b16 %v63
    %v2101 = vunpack.c.l.b16 %v64
    %v2102 = vunpack.c.l.b16 %v65
    %v2103 = vunpack.c.l.b16 %v66
    %v2104 = vunpack.c.l.b16 %v67
    %v2105 = vunpack.c.l.b16 %v68
    %v2106 = vunpack.c.l.b16 %v69
    %v2107 = vunpack.c.l.b16 %v70
    %v2108 = vpack.c.b16 %v2101, %v2100
    %v2109 = vpack.c.b16 %v2103, %v2102
    %v2110 = vpack.c.b16 %v2105, %v2104
    %v2111 = vpack.c.b16 %v2107, %v2106
    %vm2116 = vcmask 523264
    %v2118 = vsel %vm2116, %v2086, 0
    %v2121 = vsel %vm2116, %v2087, 0
    %2123 = vmatprep.subr.bf16.mxu0 0
    %2124 = vmatpush1.bf16.msra.mxu0 %v2108
    %2125 = vmatprep.subr.bf16.mxu0 0
    %2126 = vmatpush1.bf16.msra.mxu0 %v2109
    %2127 = vmatprep.subr.bf16.mxu0 0
    %2128 = vmatpush1.bf16.msra.mxu0 %v2110
    %2129 = vmatprep.subr.bf16.mxu0 0
    %2130 = vmatpush1.bf16.msra.mxu0 %v2111
    %2131 = vmatprep.subr.bf16.mxu0 0
    %2132 = vmatpush1.bf16.msra.mxu0 0
    %2133 = vmatprep.subr.bf16.mxu0 0
    %2134 = vmatpush1.bf16.msra.mxu0 0
    %2135 = vmatprep.subr.bf16.mxu0 0
    %2136 = vmatpush1.bf16.msra.mxu0 0
    %2137 = vmatprep.subr.bf16.mxu0 0
    %2138 = vmatpush1.bf16.msra.mxu0 0
    %2139 = vmatprep.subr.bf16.mxu0 0
    %2140 = vmatpush1.bf16.msra.mxu0 0
    %2141 = vmatprep.subr.bf16.mxu0 0
    %2142 = vmatpush1.bf16.msra.mxu0 0
    %2143 = vmatprep.subr.bf16.mxu0 0
    %2144 = vmatpush1.bf16.msra.mxu0 0
    %2145 = vmatprep.subr.bf16.mxu0 0
    %2146 = vmatpush1.bf16.msra.mxu0 0
    %2147 = vmatprep.subr.bf16.mxu0 0
    %2148 = vmatpush1.bf16.msra.mxu0 0
    %2149 = vmatprep.subr.bf16.mxu0 0
    %2150 = vmatpush1.bf16.msra.mxu0 0
    %2151 = vmatprep.subr.bf16.mxu0 0
    %2152 = vmatpush1.bf16.msra.mxu0 0
    %2153 = vmatprep.subr.bf16.mxu0 0
    %2154 = vmatpush1.bf16.msra.mxu0 0
    %2155 = vmatprep.mubr.bf16.mxu0 0
    %2156 = vmatmul.mubr.bf16.gmra.mrb[0].mxu0 %v2118
    %v2157 = vpop.f32.mrb[0].mxu0
    %v2158 = vadd.f32 %v2091, %v2157
    %v2159 = vpop.f32.mrb[0].mxu0
    %v2160 = vpop.f32.mrb[0].mxu0
    %v2161 = vadd.f32 %v2091, %v2160
    %v2162 = vpop.f32.mrb[0].mxu0
    %2163 = vmatprep.mubr.bf16.mxu0 0
    %2164 = vmatmul.mubr.bf16.gmra.mrb[0].mxu0 %v2121
    %v2165 = vpop.f32.mrb[0].mxu0
    %v2166 = vadd.f32 %v2091, %v2165
    %v2167 = vpop.f32.mrb[0].mxu0
    %v2168 = vpop.f32.mrb[0].mxu0
    %v2169 = vadd.f32 %v2091, %v2168
    %v2170 = vpop.f32.mrb[0].mxu0
    %2171 = vdwg.mxu0
    %v2172 = vadd.f32 %v2005, %v2158
    %v2173 = vadd.f32 %v2006, %v2161
    %v2174 = vadd.f32 %v2007, %v2166
    %v2175 = vadd.f32 %v2008, %v2169
    %v2176 = vsel %vm97, %v2172, 0.0
    %2177 = vadd.xlane.f32.xlu0 %v2176
    %v2178 = vpop.xlane.xlu0 %2177
    %v2179 = vsel %vm97, %v2173, 0.0
    %2180 = vadd.xlane.f32.xlu0 %v2179
    %v2181 = vpop.xlane.xlu0 %2180
    %v2182 = vsel %vm97, %v2174, 0.0
    %2183 = vadd.xlane.f32.xlu0 %v2182
    %v2184 = vpop.xlane.xlu0 %2183
    %v2185 = vsel %vm97, %v2175, 0.0
    %2186 = vadd.xlane.f32.xlu0 %v2185
    %v2187 = vpop.xlane.xlu0 %2186
    %v2188 = vmul.f32 %v2178, %v1952
    %v2189 = vmul.f32 %v2181, %v1952
    %v2190 = vmul.f32 %v2184, %v1952
    %v2191 = vmul.f32 %v2187, %v1952
    %v2192 = vsub.f32 %v2172, %v2188
    %v2193 = vsub.f32 %v2173, %v2189
    %v2194 = vsub.f32 %v2174, %v2190
    %v2195 = vsub.f32 %v2175, %v2191
    %v2196 = vmul.f32 %v2192, %v2192
    %v2197 = vmul.f32 %v2193, %v2193
    %v2198 = vmul.f32 %v2194, %v2194
    %v2199 = vmul.f32 %v2195, %v2195
    %v2200 = vsel %vm97, %v2196, 0.0
    %2201 = vadd.xlane.f32.xlu0 %v2200
    %v2202 = vpop.xlane.xlu0 %2201
    %v2203 = vsel %vm97, %v2197, 0.0
    %2204 = vadd.xlane.f32.xlu0 %v2203
    %v2205 = vpop.xlane.xlu0 %2204
    %v2206 = vsel %vm97, %v2198, 0.0
    %2207 = vadd.xlane.f32.xlu0 %v2206
    %v2208 = vpop.xlane.xlu0 %2207
    %v2209 = vsel %vm97, %v2199, 0.0
    %2210 = vadd.xlane.f32.xlu0 %v2209
    %v2211 = vpop.xlane.xlu0 %2210
    %v2212 = vmul.f32 %v2202, %v1952
    %v2213 = vmul.f32 %v2205, %v1952
    %v2214 = vmul.f32 %v2208, %v1952
    %v2215 = vmul.f32 %v2211, %v1952
    %v2216 = vadd.f32 %v2212, 1e-05
    %v2217 = vadd.f32 %v2213, 1e-05
    %v2218 = vadd.f32 %v2214, 1e-05
    %v2219 = vadd.f32 %v2215, 1e-05
    %v2220 = vrsqrt.pop %v2216
    %v2221 = vrsqrt.pop %v2217
    %v2222 = vrsqrt.pop %v2218
    %v2223 = vrsqrt.pop %v2219
    %v2224 = vmul.f32 %v2192, %v2220
    %v2225 = vmul.f32 %v2193, %v2221
    %v2226 = vmul.f32 %v2194, %v2222
    %v2227 = vmul.f32 %v2195, %v2223
    %v2228 = vlaneseq
    %v2229 = vshrl.u32 %v2228, 7
    %v2230 = vsub.s32 7, %v2229
    %v2231 = vrot.slane %v71, %v2230
    %v2232 = vmul.f32 %v2224, %v2231
    %v2233 = vmul.f32 %v2225, %v2231
    %v2234 = vmul.f32 %v2226, %v2231
    %v2235 = vmul.f32 %v2227, %v2231
    %v2236 = vlaneseq
    %v2237 = vshrl.u32 %v2236, 7
    %v2238 = vsub.s32 0, %v2237
    %v2239 = vrot.slane %v72, %v2238
    %v2240 = vadd.f32 %v2232, %v2239
    %v2241 = vadd.f32 %v2233, %v2239
    %v2242 = vadd.f32 %v2234, %v2239
    %v2243 = vadd.f32 %v2235, %v2239
    %s2244 = scalar_lea.vmem [#allocation5], 96
    %v2245 = vld [vmem:[%s2244] sm:$0xf]
    %v2246 = vld [vmem:[%s2244 + $0x8] sm:$0xf]
    %v2247 = vld [vmem:[%s2244 + $0x10] sm:$0xf]
    %v2248 = vld [vmem:[%s2244 + $0x18] sm:$0xf]
    %v2249 = vld [vmem:[%s2244 + $0x4] sm:$0xf]
    %v2250 = vld [vmem:[%s2244 + $0xc] sm:$0xf]
    %v2251 = vld [vmem:[%s2244 + $0x14] sm:$0xf]
    %v2252 = vld [vmem:[%s2244 + $0x1c] sm:$0xf]
    %v2253 = vld [vmem:[%s2244 + $0x20] sm:$0xf]
    %v2254 = vld [vmem:[%s2244 + $0x28] sm:$0xf]
    %v2255 = vld [vmem:[%s2244 + $0x30] sm:$0xf]
    %v2256 = vld [vmem:[%s2244 + $0x38] sm:$0xf]
    %v2257 = vld [vmem:[%s2244 + $0x40] sm:$0xf]
    %v2258 = vld [vmem:[%s2244 + $0x48] sm:$0xf]
    %v2259 = vld [vmem:[%s2244 + $0x50] sm:$0xf]
    %v2260 = vld [vmem:[%s2244 + $0x58] sm:$0xf]
    %s2261 = scalar_lea.vmem %s3, 16
    %v2262 = vld [vmem:[%s2261] sm:$0xff]
    %v2263 = vld [vmem:[%s2261 + $0x8] sm:$0x7]
    %v2264 = vadd.f32 %v2240, %v51
    %v2265 = vadd.f32 %v2241, %v52
    %v2266 = vadd.f32 %v2242, %v53
    %v2267 = vadd.f32 %v2243, %v54
    %v2268 = vpack.c.bf16 %v2265, %v2264
    %v2269 = vpack.c.bf16 %v2267, %v2266
    %v2270 = vpack.c.bf16 %v2241, %v2240
    %v2271 = vpack.c.bf16 %v2243, %v2242
    %v2272 = vlaneseq
    %v2273 = vshrl.u32 %v2272, 7
    %v2274 = vsub.s32 0, %v2273
    %v2275 = vrot.slane %v2262, %v2274
    %v2280 = vunpack.c.l.b16 %v2245
    %v2281 = vunpack.c.l.b16 %v2246
    %v2282 = vunpack.c.l.b16 %v2247
    %v2283 = vunpack.c.l.b16 %v2248
    %v2284 = vpack.c.b16 %v2281, %v2280
    %v2285 = vpack.c.b16 %v2283, %v2282
    %v2289 = vsel %vm97, %v2268, 0
    %v2292 = vsel %vm97, %v2269, 0
    %2294 = vmatprep.subr.bf16.mxu0 0
    %2295 = vmatpush1.bf16.msra.mxu0 %v2284
    %2296 = vmatprep.subr.bf16.mxu0 0
    %2297 = vmatpush1.bf16.msra.mxu0 %v2285
    %2298 = vmatprep.subr.bf16.mxu0 0
    %2299 = vmatpush1.bf16.msra.mxu0 0
    %2300 = vmatprep.subr.bf16.mxu0 0
    %2301 = vmatpush1.bf16.msra.mxu0 0
    %2302 = vmatprep.subr.bf16.mxu0 0
    %2303 = vmatpush1.bf16.msra.mxu0 0
    %2304 = vmatprep.subr.bf16.mxu0 0
    %2305 = vmatpush1.bf16.msra.mxu0 0
    %2306 = vmatprep.subr.bf16.mxu0 0
    %2307 = vmatpush1.bf16.msra.mxu0 0
    %2308 = vmatprep.subr.bf16.mxu0 0
    %2309 = vmatpush1.bf16.msra.mxu0 0
    %2310 = vmatprep.subr.bf16.mxu0 0
    %2311 = vmatpush1.bf16.msra.mxu0 0
    %2312 = vmatprep.subr.bf16.mxu0 0
    %2313 = vmatpush1.bf16.msra.mxu0 0
    %2314 = vmatprep.subr.bf16.mxu0 0
    %2315 = vmatpush1.bf16.msra.mxu0 0
    %2316 = vmatprep.subr.bf16.mxu0 0
    %2317 = vmatpush1.bf16.msra.mxu0 0
    %2318 = vmatprep.subr.bf16.mxu0 0
    %2319 = vmatpush1.bf16.msra.mxu0 0
    %2320 = vmatprep.subr.bf16.mxu0 0
    %2321 = vmatpush1.bf16.msra.mxu0 0
    %2322 = vmatprep.subr.bf16.mxu0 0
    %2323 = vmatpush1.bf16.msra.mxu0 0
    %2324 = vmatprep.subr.bf16.mxu0 0
    %2325 = vmatpush1.bf16.msra.mxu0 0
    %2326 = vmatprep.mubr.bf16.mxu0 0
    %2327 = vmatmul.mubr.bf16.gmra.mrb[0].mxu0 %v2289
    %v2328 = vpop.f32.mrb[0].mxu0
    %v2329 = vadd.f32 %v2275, %v2328
    %v2330 = vpop.f32.mrb[0].mxu0
    %v2331 = vpop.f32.mrb[0].mxu0
    %v2332 = vadd.f32 %v2275, %v2331
    %v2333 = vpop.f32.mrb[0].mxu0
    %2334 = vmatprep.mubr.bf16.mxu0 0
    %2335 = vmatmul.mubr.bf16.gmra.mrb[0].mxu0 %v2292
    %v2336 = vpop.f32.mrb[0].mxu0
    %v2337 = vadd.f32 %v2275, %v2336
    %v2338 = vpop.f32.mrb[0].mxu0
    %v2339 = vpop.f32.mrb[0].mxu0
    %v2340 = vadd.f32 %v2275, %v2339
    %v2341 = vpop.f32.mrb[0].mxu0
    %2342 = vdwg.mxu0
    %v2343 = vlaneseq
    %v2344 = vshrl.u32 %v2343, 7
    %v2345 = vsub.s32 1, %v2344
    %v2346 = vrot.slane %v2262, %v2345
    %2347 = vrot.lane.b32.xlu0 %v2284, 64
    %v2348 = vpop.permute.xlu0 %2347
    %2349 = vrot.lane.b32.xlu0 %v2285, 64
    %v2350 = vpop.permute.xlu0 %2349
    %v2354 = vsel %vm97, %v2270, 0
    %v2357 = vsel %vm97, %v2271, 0
    %2359 = vmatprep.subr.bf16.mxu0 0
    %2360 = vmatpush1.bf16.msra.mxu0 %v2348
    %2361 = vmatprep.subr.bf16.mxu0 0
    %2362 = vmatpush1.bf16.msra.mxu0 %v2350
    %2363 = vmatprep.subr.bf16.mxu0 0
    %2364 = vmatpush1.bf16.msra.mxu0 0
    %2365 = vmatprep.subr.bf16.mxu0 0
    %2366 = vmatpush1.bf16.msra.mxu0 0
    %2367 = vmatprep.subr.bf16.mxu0 0
    %2368 = vmatpush1.bf16.msra.mxu0 0
    %2369 = vmatprep.subr.bf16.mxu0 0
    %2370 = vmatpush1.bf16.msra.mxu0 0
    %2371 = vmatprep.subr.bf16.mxu0 0
    %2372 = vmatpush1.bf16.msra.mxu0 0
    %2373 = vmatprep.subr.bf16.mxu0 0
    %2374 = vmatpush1.bf16.msra.mxu0 0
    %2375 = vmatprep.subr.bf16.mxu0 0
    %2376 = vmatpush1.bf16.msra.mxu0 0
    %2377 = vmatprep.subr.bf16.mxu0 0
    %2378 = vmatpush1.bf16.msra.mxu0 0
    %2379 = vmatprep.subr.bf16.mxu0 0
    %2380 = vmatpush1.bf16.msra.mxu0 0
    %2381 = vmatprep.subr.bf16.mxu0 0
    %2382 = vmatpush1.bf16.msra.mxu0 0
    %2383 = vmatprep.subr.bf16.mxu0 0
    %2384 = vmatpush1.bf16.msra.mxu0 0
    %2385 = vmatprep.subr.bf16.mxu0 0
    %2386 = vmatpush1.bf16.msra.mxu0 0
    %2387 = vmatprep.subr.bf16.mxu0 0
    %2388 = vmatpush1.bf16.msra.mxu0 0
    %2389 = vmatprep.subr.bf16.mxu0 0
    %2390 = vmatpush1.bf16.msra.mxu0 0
    %2391 = vmatprep.mubr.bf16.mxu0 0
    %2392 = vmatmul.mubr.bf16.gmra.mrb[0].mxu0 %v2354
    %v2393 = vpop.f32.mrb[0].mxu0
    %v2394 = vadd.f32 %v2346, %v2393
    %v2395 = vpop.f32.mrb[0].mxu0
    %v2396 = vpop.f32.mrb[0].mxu0
    %v2397 = vadd.f32 %v2346, %v2396
    %v2398 = vpop.f32.mrb[0].mxu0
    %2399 = vmatprep.mubr.bf16.mxu0 0
    %2400 = vmatmul.mubr.bf16.gmra.mrb[0].mxu0 %v2357
    %v2401 = vpop.f32.mrb[0].mxu0
    %v2402 = vadd.f32 %v2346, %v2401
    %v2403 = vpop.f32.mrb[0].mxu0
    %v2404 = vpop.f32.mrb[0].mxu0
    %v2405 = vadd.f32 %v2346, %v2404
    %v2406 = vpop.f32.mrb[0].mxu0
    %2407 = vdwg.mxu0
    %2410 = vrot.lane.b32.xlu0 %v2329, 96
    %v2411 = vpop.permute.xlu0 %2410
    %2412 = vrot.lane.b32.xlu0 %v2332, 96
    %v2413 = vpop.permute.xlu0 %2412
    %v2414 = vsel %vm224, %v2329, 0
    %v2416 = vsel %vm224, %v2332, 0
    %v2418 = vsel %vm224, %v2411, 0
    %v2420 = vsel %vm224, %v2413, 0
    %2422 = vmatprep.subr.mxu0 0.0
    %2423 = vmatpush1.xpose.msra.mxu0 %v2418
    %2424 = vmatprep.subr.mxu0 0.0
    %2425 = vmatpush1.xpose.msra.mxu0 %v2420
    %2426 = vmatprep.subr.mxu0 0.0
    %2427 = vmatpush1.xpose.msra.mxu0 0.0
    %2428 = vmatprep.subr.mxu0 0.0
    %2429 = vmatpush1.xpose.msra.mxu0 0.0
    %2430 = vmatprep.subr.mxu0 0.0
    %2431 = vmatpush1.xpose.msra.mxu0 0.0
    %2432 = vmatprep.subr.mxu0 0.0
    %2433 = vmatpush1.xpose.msra.mxu0 0.0
    %2434 = vmatprep.subr.mxu0 0.0
    %2435 = vmatpush1.xpose.msra.mxu0 0.0
    %2436 = vmatprep.subr.mxu0 0.0
    %2437 = vmatpush1.xpose.msra.mxu0 0.0
    %2438 = vmatprep.subr.mxu0 0.0
    %2439 = vmatpush1.xpose.msra.mxu0 0.0
    %2440 = vmatprep.subr.mxu0 0.0
    %2441 = vmatpush1.xpose.msra.mxu0 0.0
    %2442 = vmatprep.subr.mxu0 0.0
    %2443 = vmatpush1.xpose.msra.mxu0 0.0
    %2444 = vmatprep.subr.mxu0 0.0
    %2445 = vmatpush1.xpose.msra.mxu0 0.0
    %2446 = vmatprep.subr.mxu0 0.0
    %2447 = vmatpush1.xpose.msra.mxu0 0.0
    %2448 = vmatprep.subr.mxu0 0.0
    %2449 = vmatpush1.xpose.msra.mxu0 0.0
    %2450 = vmatprep.subr.mxu0 0.0
    %2451 = vmatpush1.xpose.msra.mxu0 0.0
    %2452 = vmatprep.subr.mxu0 0.0
    %2453 = vmatpush1.xpose.msra.mxu0 0.0
    %2454 = vmatprep.subr.mxu0 0.0
    %2455 = vmatpush1.xpose.msra.mxu0 0.0
    %2456 = vmatprep.subr.mxu0 0.0
    %2457 = vmatpush1.xpose.msra.mxu0 0.0
    %2458 = vmatprep.subr.mxu0 0.0
    %2459 = vmatpush1.xpose.msra.mxu0 0.0
    %2460 = vmatprep.subr.mxu0 0.0
    %2461 = vmatpush1.xpose.msra.mxu0 0.0
    %2462 = vmatprep.subr.mxu0 0.0
    %2463 = vmatpush1.xpose.msra.mxu0 0.0
    %2464 = vmatprep.subr.mxu0 0.0
    %2465 = vmatpush1.xpose.msra.mxu0 0.0
    %2466 = vmatprep.subr.mxu0 0.0
    %2467 = vmatpush1.xpose.msra.mxu0 0.0
    %2468 = vmatprep.subr.mxu0 0.0
    %2469 = vmatpush1.xpose.msra.mxu0 0.0
    %2470 = vmatprep.subr.mxu0 0.0
    %2471 = vmatpush1.xpose.msra.mxu0 0.0
    %2472 = vmatprep.subr.mxu0 0.0
    %2473 = vmatpush1.xpose.msra.mxu0 0.0
    %2474 = vmatprep.subr.mxu0 0.0
    %2475 = vmatpush1.xpose.msra.mxu0 0.0
    %2476 = vmatprep.subr.mxu0 0.0
    %2477 = vmatpush1.xpose.msra.mxu0 0.0
    %2478 = vmatprep.subr.mxu0 0.0
    %2479 = vmatpush1.xpose.msra.mxu0 0.0
    %2480 = vmatprep.subr.mxu0 0.0
    %2481 = vmatpush1.xpose.msra.mxu0 0.0
    %2482 = vmatprep.subr.mxu0 0.0
    %2483 = vmatpush1.xpose.msra.mxu0 0.0
    %2484 = vmatprep.subr.mxu0 0.0
    %2485 = vmatpush1.xpose.msra.mxu0 0.0
    %2486 = vmatprep.mubr.f32.mxu0 0.0
    %2487 = vmatmul.mubr.f32.gmra.mrb[0].mxu0 %v2414
    %v2488 = vpop.f32.mrb[0].mxu0
    %v2489 = vadd.f32 0.0, %v2488
    %v2490 = vpop.f32.mrb[0].mxu0
    %2491 = vmatprep.mubr.f32.mxu0 0.0
    %2492 = vmatmul.mubr.f32.gmra.mrb[0].mxu0 %v2416
    %v2493 = vpop.f32.mrb[0].mxu0
    %v2494 = vadd.f32 0.0, %v2493
    %v2495 = vpop.f32.mrb[0].mxu0
    %2496 = vdwg.mxu0
    %v2497 = vsel %vm308, %v2489, -inf
    %2498 = vmax.xlane.f32.xlu0 %v2497
    %v2499 = vpop.xlane.xlu0 %2498
    %v2500 = vsel %vm308, %v2494, -inf
    %2501 = vmax.xlane.f32.xlu0 %v2500
    %v2502 = vpop.xlane.xlu0 %2501
    %v2503 = vsub.f32 %v2489, %v2499
    %v2504 = vsub.f32 %v2494, %v2502
    %v2505 = vmul.f32 %v2503, 1.442695
    %v2506 = vpow.pop %v2505
    %v2507 = vmul.f32 %v2504, 1.442695
    %v2508 = vpow.pop %v2507
    %v2509 = vsel %vm308, %v2506, 0.0
    %2510 = vadd.xlane.f32.xlu0 %v2509
    %v2511 = vpop.xlane.xlu0 %2510
    %v2512 = vsel %vm308, %v2508, 0.0
    %2513 = vadd.xlane.f32.xlu0 %v2512
    %v2514 = vpop.xlane.xlu0 %2513
    %v2515 = vrcp.pop %v2511
    %v2516 = vrcp.pop %v2514
    %v2517 = vmul.f32 %v2506, %v2515
    %v2518 = vmul.f32 %v2508, %v2516
    %v2520 = vsel %vm308, %v2517, 0
    %v2523 = vsel %vm308, %v2518, 0
    %2525 = vmatprep.subr.mxu0 0.0
    %2526 = vmatpush1.msra.mxu0 %v2394
    %2527 = vmatprep.subr.mxu0 0.0
    %2528 = vmatpush1.msra.mxu0 %v2397
    %2529 = vmatprep.subr.mxu0 0.0
    %2530 = vmatpush1.msra.mxu0 0.0
    %2531 = vmatprep.subr.mxu0 0.0
    %2532 = vmatpush1.msra.mxu0 0.0
    %2533 = vmatprep.subr.mxu0 0.0
    %2534 = vmatpush1.msra.mxu0 0.0
    %2535 = vmatprep.subr.mxu0 0.0
    %2536 = vmatpush1.msra.mxu0 0.0
    %2537 = vmatprep.subr.mxu0 0.0
    %2538 = vmatpush1.msra.mxu0 0.0
    %2539 = vmatprep.subr.mxu0 0.0
    %2540 = vmatpush1.msra.mxu0 0.0
    %2541 = vmatprep.subr.mxu0 0.0
    %2542 = vmatpush1.msra.mxu0 0.0
    %2543 = vmatprep.subr.mxu0 0.0
    %2544 = vmatpush1.msra.mxu0 0.0
    %2545 = vmatprep.subr.mxu0 0.0
    %2546 = vmatpush1.msra.mxu0 0.0
    %2547 = vmatprep.subr.mxu0 0.0
    %2548 = vmatpush1.msra.mxu0 0.0
    %2549 = vmatprep.subr.mxu0 0.0
    %2550 = vmatpush1.msra.mxu0 0.0
    %2551 = vmatprep.subr.mxu0 0.0
    %2552 = vmatpush1.msra.mxu0 0.0
    %2553 = vmatprep.subr.mxu0 0.0
    %2554 = vmatpush1.msra.mxu0 0.0
    %2555 = vmatprep.subr.mxu0 0.0
    %2556 = vmatpush1.msra.mxu0 0.0
    %2557 = vmatprep.subr.mxu0 0.0
    %2558 = vmatpush1.msra.mxu0 0.0
    %2559 = vmatprep.subr.mxu0 0.0
    %2560 = vmatpush1.msra.mxu0 0.0
    %2561 = vmatprep.subr.mxu0 0.0
    %2562 = vmatpush1.msra.mxu0 0.0
    %2563 = vmatprep.subr.mxu0 0.0
    %2564 = vmatpush1.msra.mxu0 0.0
    %2565 = vmatprep.subr.mxu0 0.0
    %2566 = vmatpush1.msra.mxu0 0.0
    %2567 = vmatprep.subr.mxu0 0.0
    %2568 = vmatpush1.msra.mxu0 0.0
    %2569 = vmatprep.subr.mxu0 0.0
    %2570 = vmatpush1.msra.mxu0 0.0
    %2571 = vmatprep.subr.mxu0 0.0
    %2572 = vmatpush1.msra.mxu0 0.0
    %2573 = vmatprep.subr.mxu0 0.0
    %2574 = vmatpush1.msra.mxu0 0.0
    %2575 = vmatprep.subr.mxu0 0.0
    %2576 = vmatpush1.msra.mxu0 0.0
    %2577 = vmatprep.subr.mxu0 0.0
    %2578 = vmatpush1.msra.mxu0 0.0
    %2579 = vmatprep.subr.mxu0 0.0
    %2580 = vmatpush1.msra.mxu0 0.0
    %2581 = vmatprep.subr.mxu0 0.0
    %2582 = vmatpush1.msra.mxu0 0.0
    %2583 = vmatprep.subr.mxu0 0.0
    %2584 = vmatpush1.msra.mxu0 0.0
    %2585 = vmatprep.subr.mxu0 0.0
    %2586 = vmatpush1.msra.mxu0 0.0
    %2587 = vmatprep.subr.mxu0 0.0
    %2588 = vmatpush1.msra.mxu0 0.0
    %2589 = vmatprep.mubr.f32.mxu0 0.0
    %2590 = vmatmul.mubr.f32.gmra.mrb[0].mxu0 %v2520
    %v2591 = vpop.f32.mrb[0].mxu0
    %v2592 = vadd.f32 0.0, %v2591
    %v2593 = vpop.f32.mrb[0].mxu0
    %2594 = vmatprep.mubr.f32.mxu0 0.0
    %2595 = vmatmul.mubr.f32.gmra.mrb[0].mxu0 %v2523
    %v2596 = vpop.f32.mrb[0].mxu0
    %v2597 = vadd.f32 0.0, %v2596
    %v2598 = vpop.f32.mrb[0].mxu0
    %2599 = vdwg.mxu0
    %2600 = vrot.lane.b32.xlu0 %v2329, 120
    %v2601 = vpop.permute.xlu0 %2600
    %2602 = vrot.lane.b32.xlu0 %v2332, 120
    %v2603 = vpop.permute.xlu0 %2602
    %2604 = vrot.lane.b32.xlu0 %v2329, 88
    %v2605 = vpop.permute.xlu0 %2604
    %2606 = vrot.lane.b32.xlu0 %v2332, 88
    %v2607 = vpop.permute.xlu0 %2606
    %v2608 = vsel %vm224, %v2601, 0
    %v2610 = vsel %vm224, %v2603, 0
    %v2612 = vsel %vm224, %v2605, 0
    %v2614 = vsel %vm224, %v2607, 0
    %2616 = vmatprep.subr.mxu0 0.0
    %2617 = vmatpush1.xpose.msra.mxu0 %v2612
    %2618 = vmatprep.subr.mxu0 0.0
    %2619 = vmatpush1.xpose.msra.mxu0 %v2614
    %2620 = vmatprep.subr.mxu0 0.0
    %2621 = vmatpush1.xpose.msra.mxu0 0.0
    %2622 = vmatprep.subr.mxu0 0.0
    %2623 = vmatpush1.xpose.msra.mxu0 0.0
    %2624 = vmatprep.subr.mxu0 0.0
    %2625 = vmatpush1.xpose.msra.mxu0 0.0
    %2626 = vmatprep.subr.mxu0 0.0
    %2627 = vmatpush1.xpose.msra.mxu0 0.0
    %2628 = vmatprep.subr.mxu0 0.0
    %2629 = vmatpush1.xpose.msra.mxu0 0.0
    %2630 = vmatprep.subr.mxu0 0.0
    %2631 = vmatpush1.xpose.msra.mxu0 0.0
    %2632 = vmatprep.subr.mxu0 0.0
    %2633 = vmatpush1.xpose.msra.mxu0 0.0
    %2634 = vmatprep.subr.mxu0 0.0
    %2635 = vmatpush1.xpose.msra.mxu0 0.0
    %2636 = vmatprep.subr.mxu0 0.0
    %2637 = vmatpush1.xpose.msra.mxu0 0.0
    %2638 = vmatprep.subr.mxu0 0.0
    %2639 = vmatpush1.xpose.msra.mxu0 0.0
    %2640 = vmatprep.subr.mxu0 0.0
    %2641 = vmatpush1.xpose.msra.mxu0 0.0
    %2642 = vmatprep.subr.mxu0 0.0
    %2643 = vmatpush1.xpose.msra.mxu0 0.0
    %2644 = vmatprep.subr.mxu0 0.0
    %2645 = vmatpush1.xpose.msra.mxu0 0.0
    %2646 = vmatprep.subr.mxu0 0.0
    %2647 = vmatpush1.xpose.msra.mxu0 0.0
    %2648 = vmatprep.subr.mxu0 0.0
    %2649 = vmatpush1.xpose.msra.mxu0 0.0
    %2650 = vmatprep.subr.mxu0 0.0
    %2651 = vmatpush1.xpose.msra.mxu0 0.0
    %2652 = vmatprep.subr.mxu0 0.0
    %2653 = vmatpush1.xpose.msra.mxu0 0.0
    %2654 = vmatprep.subr.mxu0 0.0
    %2655 = vmatpush1.xpose.msra.mxu0 0.0
    %2656 = vmatprep.subr.mxu0 0.0
    %2657 = vmatpush1.xpose.msra.mxu0 0.0
    %2658 = vmatprep.subr.mxu0 0.0
    %2659 = vmatpush1.xpose.msra.mxu0 0.0
    %2660 = vmatprep.subr.mxu0 0.0
    %2661 = vmatpush1.xpose.msra.mxu0 0.0
    %2662 = vmatprep.subr.mxu0 0.0
    %2663 = vmatpush1.xpose.msra.mxu0 0.0
    %2664 = vmatprep.subr.mxu0 0.0
    %2665 = vmatpush1.xpose.msra.mxu0 0.0
    %2666 = vmatprep.subr.mxu0 0.0
    %2667 = vmatpush1.xpose.msra.mxu0 0.0
    %2668 = vmatprep.subr.mxu0 0.0
    %2669 = vmatpush1.xpose.msra.mxu0 0.0
    %2670 = vmatprep.subr.mxu0 0.0
    %2671 = vmatpush1.xpose.msra.mxu0 0.0
    %2672 = vmatprep.subr.mxu0 0.0
    %2673 = vmatpush1.xpose.msra.mxu0 0.0
    %2674 = vmatprep.subr.mxu0 0.0
    %2675 = vmatpush1.xpose.msra.mxu0 0.0
    %2676 = vmatprep.subr.mxu0 0.0
    %2677 = vmatpush1.xpose.msra.mxu0 0.0
    %2678 = vmatprep.subr.mxu0 0.0
    %2679 = vmatpush1.xpose.msra.mxu0 0.0
    %2680 = vmatprep.mubr.f32.mxu0 0.0
    %2681 = vmatmul.mubr.f32.gmra.mrb[0].mxu0 %v2608
    %v2682 = vpop.f32.mrb[0].mxu0
    %v2683 = vadd.f32 0.0, %v2682
    %v2684 = vpop.f32.mrb[0].mxu0
    %2685 = vmatprep.mubr.f32.mxu0 0.0
    %2686 = vmatmul.mubr.f32.gmra.mrb[0].mxu0 %v2610
    %v2687 = vpop.f32.mrb[0].mxu0
    %v2688 = vadd.f32 0.0, %v2687
    %v2689 = vpop.f32.mrb[0].mxu0
    %2690 = vdwg.mxu0
    %v2691 = vsel %vm308, %v2683, -inf
    %2692 = vmax.xlane.f32.xlu0 %v2691
    %v2693 = vpop.xlane.xlu0 %2692
    %v2694 = vsel %vm308, %v2688, -inf
    %2695 = vmax.xlane.f32.xlu0 %v2694
    %v2696 = vpop.xlane.xlu0 %2695
    %v2697 = vsub.f32 %v2683, %v2693
    %v2698 = vsub.f32 %v2688, %v2696
    %v2699 = vmul.f32 %v2697, 1.442695
    %v2700 = vpow.pop %v2699
    %v2701 = vmul.f32 %v2698, 1.442695
    %v2702 = vpow.pop %v2701
    %v2703 = vsel %vm308, %v2700, 0.0
    %2704 = vadd.xlane.f32.xlu0 %v2703
    %v2705 = vpop.xlane.xlu0 %2704
    %v2706 = vsel %vm308, %v2702, 0.0
    %2707 = vadd.xlane.f32.xlu0 %v2706
    %v2708 = vpop.xlane.xlu0 %2707
    %v2709 = vrcp.pop %v2705
    %v2710 = vrcp.pop %v2708
    %v2711 = vmul.f32 %v2700, %v2709
    %v2712 = vmul.f32 %v2702, %v2710
    %2715 = vrot.lane.b32.xlu0 %v2394, 120
    %v2716 = vpop.permute.xlu0 %2715
    %2717 = vrot.lane.b32.xlu0 %v2397, 120
    %v2718 = vpop.permute.xlu0 %2717
    %v2722 = vsel %vm308, %v2711, 0
    %v2725 = vsel %vm308, %v2712, 0
    %2727 = vmatprep.subr.mxu0 0.0
    %2728 = vmatpush1.msra.mxu0 %v2716
    %2729 = vmatprep.subr.mxu0 0.0
    %2730 = vmatpush1.msra.mxu0 %v2718
    %2731 = vmatprep.subr.mxu0 0.0
    %2732 = vmatpush1.msra.mxu0 0.0
    %2733 = vmatprep.subr.mxu0 0.0
    %2734 = vmatpush1.msra.mxu0 0.0
    %2735 = vmatprep.subr.mxu0 0.0
    %2736 = vmatpush1.msra.mxu0 0.0
    %2737 = vmatprep.subr.mxu0 0.0
    %2738 = vmatpush1.msra.mxu0 0.0
    %2739 = vmatprep.subr.mxu0 0.0
    %2740 = vmatpush1.msra.mxu0 0.0
    %2741 = vmatprep.subr.mxu0 0.0
    %2742 = vmatpush1.msra.mxu0 0.0
    %2743 = vmatprep.subr.mxu0 0.0
    %2744 = vmatpush1.msra.mxu0 0.0
    %2745 = vmatprep.subr.mxu0 0.0
    %2746 = vmatpush1.msra.mxu0 0.0
    %2747 = vmatprep.subr.mxu0 0.0
    %2748 = vmatpush1.msra.mxu0 0.0
    %2749 = vmatprep.subr.mxu0 0.0
    %2750 = vmatpush1.msra.mxu0 0.0
    %2751 = vmatprep.subr.mxu0 0.0
    %2752 = vmatpush1.msra.mxu0 0.0
    %2753 = vmatprep.subr.mxu0 0.0
    %2754 = vmatpush1.msra.mxu0 0.0
    %2755 = vmatprep.subr.mxu0 0.0
    %2756 = vmatpush1.msra.mxu0 0.0
    %2757 = vmatprep.subr.mxu0 0.0
    %2758 = vmatpush1.msra.mxu0 0.0
    %2759 = vmatprep.subr.mxu0 0.0
    %2760 = vmatpush1.msra.mxu0 0.0
    %2761 = vmatprep.subr.mxu0 0.0
    %2762 = vmatpush1.msra.mxu0 0.0
    %2763 = vmatprep.subr.mxu0 0.0
    %2764 = vmatpush1.msra.mxu0 0.0
    %2765 = vmatprep.subr.mxu0 0.0
    %2766 = vmatpush1.msra.mxu0 0.0
    %2767 = vmatprep.subr.mxu0 0.0
    %2768 = vmatpush1.msra.mxu0 0.0
    %2769 = vmatprep.subr.mxu0 0.0
    %2770 = vmatpush1.msra.mxu0 0.0
    %2771 = vmatprep.subr.mxu0 0.0
    %2772 = vmatpush1.msra.mxu0 0.0
    %2773 = vmatprep.subr.mxu0 0.0
    %2774 = vmatpush1.msra.mxu0 0.0
    %2775 = vmatprep.subr.mxu0 0.0
    %2776 = vmatpush1.msra.mxu0 0.0
    %2777 = vmatprep.subr.mxu0 0.0
    %2778 = vmatpush1.msra.mxu0 0.0
    %2779 = vmatprep.subr.mxu0 0.0
    %2780 = vmatpush1.msra.mxu0 0.0
    %2781 = vmatprep.subr.mxu0 0.0
    %2782 = vmatpush1.msra.mxu0 0.0
    %2783 = vmatprep.subr.mxu0 0.0
    %2784 = vmatpush1.msra.mxu0 0.0
    %2785 = vmatprep.subr.mxu0 0.0
    %2786 = vmatpush1.msra.mxu0 0.0
    %2787 = vmatprep.subr.mxu0 0.0
    %2788 = vmatpush1.msra.mxu0 0.0
    %2789 = vmatprep.subr.mxu0 0.0
    %2790 = vmatpush1.msra.mxu0 0.0
    %2791 = vmatprep.mubr.f32.mxu0 0.0
    %2792 = vmatmul.mubr.f32.gmra.mrb[0].mxu0 %v2722
    %v2793 = vpop.f32.mrb[0].mxu0
    %v2794 = vadd.f32 0.0, %v2793
    %v2795 = vpop.f32.mrb[0].mxu0
    %2796 = vmatprep.mubr.f32.mxu0 0.0
    %2797 = vmatmul.mubr.f32.gmra.mrb[0].mxu0 %v2725
    %v2798 = vpop.f32.mrb[0].mxu0
    %v2799 = vadd.f32 0.0, %v2798
    %v2800 = vpop.f32.mrb[0].mxu0
    %2801 = vdwg.mxu0
    %2802 = vrot.lane.b32.xlu0 %v2329, 112
    %v2803 = vpop.permute.xlu0 %2802
    %2804 = vrot.lane.b32.xlu0 %v2332, 112
    %v2805 = vpop.permute.xlu0 %2804
    %2806 = vrot.lane.b32.xlu0 %v2329, 80
    %v2807 = vpop.permute.xlu0 %2806
    %2808 = vrot.lane.b32.xlu0 %v2332, 80
    %v2809 = vpop.permute.xlu0 %2808
    %v2810 = vsel %vm224, %v2803, 0
    %v2812 = vsel %vm224, %v2805, 0
    %v2814 = vsel %vm224, %v2807, 0
    %v2816 = vsel %vm224, %v2809, 0
    %2818 = vmatprep.subr.mxu0 0.0
    %2819 = vmatpush1.xpose.msra.mxu0 %v2814
    %2820 = vmatprep.subr.mxu0 0.0
    %2821 = vmatpush1.xpose.msra.mxu0 %v2816
    %2822 = vmatprep.subr.mxu0 0.0
    %2823 = vmatpush1.xpose.msra.mxu0 0.0
    %2824 = vmatprep.subr.mxu0 0.0
    %2825 = vmatpush1.xpose.msra.mxu0 0.0
    %2826 = vmatprep.subr.mxu0 0.0
    %2827 = vmatpush1.xpose.msra.mxu0 0.0
    %2828 = vmatprep.subr.mxu0 0.0
    %2829 = vmatpush1.xpose.msra.mxu0 0.0
    %2830 = vmatprep.subr.mxu0 0.0
    %2831 = vmatpush1.xpose.msra.mxu0 0.0
    %2832 = vmatprep.subr.mxu0 0.0
    %2833 = vmatpush1.xpose.msra.mxu0 0.0
    %2834 = vmatprep.subr.mxu0 0.0
    %2835 = vmatpush1.xpose.msra.mxu0 0.0
    %2836 = vmatprep.subr.mxu0 0.0
    %2837 = vmatpush1.xpose.msra.mxu0 0.0
    %2838 = vmatprep.subr.mxu0 0.0
    %2839 = vmatpush1.xpose.msra.mxu0 0.0
    %2840 = vmatprep.subr.mxu0 0.0
    %2841 = vmatpush1.xpose.msra.mxu0 0.0
    %2842 = vmatprep.subr.mxu0 0.0
    %2843 = vmatpush1.xpose.msra.mxu0 0.0
    %2844 = vmatprep.subr.mxu0 0.0
    %2845 = vmatpush1.xpose.msra.mxu0 0.0
    %2846 = vmatprep.subr.mxu0 0.0
    %2847 = vmatpush1.xpose.msra.mxu0 0.0
    %2848 = vmatprep.subr.mxu0 0.0
    %2849 = vmatpush1.xpose.msra.mxu0 0.0
    %2850 = vmatprep.subr.mxu0 0.0
    %2851 = vmatpush1.xpose.msra.mxu0 0.0
    %2852 = vmatprep.subr.mxu0 0.0
    %2853 = vmatpush1.xpose.msra.mxu0 0.0
    %2854 = vmatprep.subr.mxu0 0.0
    %2855 = vmatpush1.xpose.msra.mxu0 0.0
    %2856 = vmatprep.subr.mxu0 0.0
    %2857 = vmatpush1.xpose.msra.mxu0 0.0
    %2858 = vmatprep.subr.mxu0 0.0
    %2859 = vmatpush1.xpose.msra.mxu0 0.0
    %2860 = vmatprep.subr.mxu0 0.0
    %2861 = vmatpush1.xpose.msra.mxu0 0.0
    %2862 = vmatprep.subr.mxu0 0.0
    %2863 = vmatpush1.xpose.msra.mxu0 0.0
    %2864 = vmatprep.subr.mxu0 0.0
    %2865 = vmatpush1.xpose.msra.mxu0 0.0
    %2866 = vmatprep.subr.mxu0 0.0
    %2867 = vmatpush1.xpose.msra.mxu0 0.0
    %2868 = vmatprep.subr.mxu0 0.0
    %2869 = vmatpush1.xpose.msra.mxu0 0.0
    %2870 = vmatprep.subr.mxu0 0.0
    %2871 = vmatpush1.xpose.msra.mxu0 0.0
    %2872 = vmatprep.subr.mxu0 0.0
    %2873 = vmatpush1.xpose.msra.mxu0 0.0
    %2874 = vmatprep.subr.mxu0 0.0
    %2875 = vmatpush1.xpose.msra.mxu0 0.0
    %2876 = vmatprep.subr.mxu0 0.0
    %2877 = vmatpush1.xpose.msra.mxu0 0.0
    %2878 = vmatprep.subr.mxu0 0.0
    %2879 = vmatpush1.xpose.msra.mxu0 0.0
    %2880 = vmatprep.subr.mxu0 0.0
    %2881 = vmatpush1.xpose.msra.mxu0 0.0
    %2882 = vmatprep.mubr.f32.mxu0 0.0
    %2883 = vmatmul.mubr.f32.gmra.mrb[0].mxu0 %v2810
    %v2884 = vpop.f32.mrb[0].mxu0
    %v2885 = vadd.f32 0.0, %v2884
    %v2886 = vpop.f32.mrb[0].mxu0
    %2887 = vmatprep.mubr.f32.mxu0 0.0
    %2888 = vmatmul.mubr.f32.gmra.mrb[0].mxu0 %v2812
    %v2889 = vpop.f32.mrb[0].mxu0
    %v2890 = vadd.f32 0.0, %v2889
    %v2891 = vpop.f32.mrb[0].mxu0
    %2892 = vdwg.mxu0
    %v2893 = vsel %vm308, %v2885, -inf
    %2894 = vmax.xlane.f32.xlu0 %v2893
    %v2895 = vpop.xlane.xlu0 %2894
    %v2896 = vsel %vm308, %v2890, -inf
    %2897 = vmax.xlane.f32.xlu0 %v2896
    %v2898 = vpop.xlane.xlu0 %2897
    %v2899 = vsub.f32 %v2885, %v2895
    %v2900 = vsub.f32 %v2890, %v2898
    %v2901 = vmul.f32 %v2899, 1.442695
    %v2902 = vpow.pop %v2901
    %v2903 = vmul.f32 %v2900, 1.442695
    %v2904 = vpow.pop %v2903
    %v2905 = vsel %vm308, %v2902, 0.0
    %2906 = vadd.xlane.f32.xlu0 %v2905
    %v2907 = vpop.xlane.xlu0 %2906
    %v2908 = vsel %vm308, %v2904, 0.0
    %2909 = vadd.xlane.f32.xlu0 %v2908
    %v2910 = vpop.xlane.xlu0 %2909
    %v2911 = vrcp.pop %v2907
    %v2912 = vrcp.pop %v2910
    %v2913 = vmul.f32 %v2902, %v2911
    %v2914 = vmul.f32 %v2904, %v2912
    %2915 = vrot.lane.b32.xlu0 %v2394, 112
    %v2916 = vpop.permute.xlu0 %2915
    %2917 = vrot.lane.b32.xlu0 %v2397, 112
    %v2918 = vpop.permute.xlu0 %2917
    %v2922 = vsel %vm308, %v2913, 0
    %v2925 = vsel %vm308, %v2914, 0
    %2927 = vmatprep.subr.mxu0 0.0
    %2928 = vmatpush1.msra.mxu0 %v2916
    %2929 = vmatprep.subr.mxu0 0.0
    %2930 = vmatpush1.msra.mxu0 %v2918
    %2931 = vmatprep.subr.mxu0 0.0
    %2932 = vmatpush1.msra.mxu0 0.0
    %2933 = vmatprep.subr.mxu0 0.0
    %2934 = vmatpush1.msra.mxu0 0.0
    %2935 = vmatprep.subr.mxu0 0.0
    %2936 = vmatpush1.msra.mxu0 0.0
    %2937 = vmatprep.subr.mxu0 0.0
    %2938 = vmatpush1.msra.mxu0 0.0
    %2939 = vmatprep.subr.mxu0 0.0
    %2940 = vmatpush1.msra.mxu0 0.0
    %2941 = vmatprep.subr.mxu0 0.0
    %2942 = vmatpush1.msra.mxu0 0.0
    %2943 = vmatprep.subr.mxu0 0.0
    %2944 = vmatpush1.msra.mxu0 0.0
    %2945 = vmatprep.subr.mxu0 0.0
    %2946 = vmatpush1.msra.mxu0 0.0
    %2947 = vmatprep.subr.mxu0 0.0
    %2948 = vmatpush1.msra.mxu0 0.0
    %2949 = vmatprep.subr.mxu0 0.0
    %2950 = vmatpush1.msra.mxu0 0.0
    %2951 = vmatprep.subr.mxu0 0.0
    %2952 = vmatpush1.msra.mxu0 0.0
    %2953 = vmatprep.subr.mxu0 0.0
    %2954 = vmatpush1.msra.mxu0 0.0
    %2955 = vmatprep.subr.mxu0 0.0
    %2956 = vmatpush1.msra.mxu0 0.0
    %2957 = vmatprep.subr.mxu0 0.0
    %2958 = vmatpush1.msra.mxu0 0.0
    %2959 = vmatprep.subr.mxu0 0.0
    %2960 = vmatpush1.msra.mxu0 0.0
    %2961 = vmatprep.subr.mxu0 0.0
    %2962 = vmatpush1.msra.mxu0 0.0
    %2963 = vmatprep.subr.mxu0 0.0
    %2964 = vmatpush1.msra.mxu0 0.0
    %2965 = vmatprep.subr.mxu0 0.0
    %2966 = vmatpush1.msra.mxu0 0.0
    %2967 = vmatprep.subr.mxu0 0.0
    %2968 = vmatpush1.msra.mxu0 0.0
    %2969 = vmatprep.subr.mxu0 0.0
    %2970 = vmatpush1.msra.mxu0 0.0
    %2971 = vmatprep.subr.mxu0 0.0
    %2972 = vmatpush1.msra.mxu0 0.0
    %2973 = vmatprep.subr.mxu0 0.0
    %2974 = vmatpush1.msra.mxu0 0.0
    %2975 = vmatprep.subr.mxu0 0.0
    %2976 = vmatpush1.msra.mxu0 0.0
    %2977 = vmatprep.subr.mxu0 0.0
    %2978 = vmatpush1.msra.mxu0 0.0
    %2979 = vmatprep.subr.mxu0 0.0
    %2980 = vmatpush1.msra.mxu0 0.0
    %2981 = vmatprep.subr.mxu0 0.0
    %2982 = vmatpush1.msra.mxu0 0.0
    %2983 = vmatprep.subr.mxu0 0.0
    %2984 = vmatpush1.msra.mxu0 0.0
    %2985 = vmatprep.subr.mxu0 0.0
    %2986 = vmatpush1.msra.mxu0 0.0
    %2987 = vmatprep.subr.mxu0 0.0
    %2988 = vmatpush1.msra.mxu0 0.0
    %2989 = vmatprep.subr.mxu0 0.0
    %2990 = vmatpush1.msra.mxu0 0.0
    %2991 = vmatprep.mubr.f32.mxu0 0.0
    %2992 = vmatmul.mubr.f32.gmra.mrb[0].mxu0 %v2922
    %v2993 = vpop.f32.mrb[0].mxu0
    %v2994 = vadd.f32 0.0, %v2993
    %v2995 = vpop.f32.mrb[0].mxu0
    %2996 = vmatprep.mubr.f32.mxu0 0.0
    %2997 = vmatmul.mubr.f32.gmra.mrb[0].mxu0 %v2925
    %v2998 = vpop.f32.mrb[0].mxu0
    %v2999 = vadd.f32 0.0, %v2998
    %v3000 = vpop.f32.mrb[0].mxu0
    %3001 = vdwg.mxu0
    %3002 = vrot.lane.b32.xlu0 %v2329, 104
    %v3003 = vpop.permute.xlu0 %3002
    %3004 = vrot.lane.b32.xlu0 %v2332, 104
    %v3005 = vpop.permute.xlu0 %3004
    %3006 = vrot.lane.b32.xlu0 %v2329, 72
    %v3007 = vpop.permute.xlu0 %3006
    %3008 = vrot.lane.b32.xlu0 %v2332, 72
    %v3009 = vpop.permute.xlu0 %3008
    %v3010 = vsel %vm224, %v3003, 0
    %v3012 = vsel %vm224, %v3005, 0
    %v3014 = vsel %vm224, %v3007, 0
    %v3016 = vsel %vm224, %v3009, 0
    %3018 = vmatprep.subr.mxu0 0.0
    %3019 = vmatpush1.xpose.msra.mxu0 %v3014
    %3020 = vmatprep.subr.mxu0 0.0
    %3021 = vmatpush1.xpose.msra.mxu0 %v3016
    %3022 = vmatprep.subr.mxu0 0.0
    %3023 = vmatpush1.xpose.msra.mxu0 0.0
    %3024 = vmatprep.subr.mxu0 0.0
    %3025 = vmatpush1.xpose.msra.mxu0 0.0
    %3026 = vmatprep.subr.mxu0 0.0
    %3027 = vmatpush1.xpose.msra.mxu0 0.0
    %3028 = vmatprep.subr.mxu0 0.0
    %3029 = vmatpush1.xpose.msra.mxu0 0.0
    %3030 = vmatprep.subr.mxu0 0.0
    %3031 = vmatpush1.xpose.msra.mxu0 0.0
    %3032 = vmatprep.subr.mxu0 0.0
    %3033 = vmatpush1.xpose.msra.mxu0 0.0
    %3034 = vmatprep.subr.mxu0 0.0
    %3035 = vmatpush1.xpose.msra.mxu0 0.0
    %3036 = vmatprep.subr.mxu0 0.0
    %3037 = vmatpush1.xpose.msra.mxu0 0.0
    %3038 = vmatprep.subr.mxu0 0.0
    %3039 = vmatpush1.xpose.msra.mxu0 0.0
    %3040 = vmatprep.subr.mxu0 0.0
    %3041 = vmatpush1.xpose.msra.mxu0 0.0
    %3042 = vmatprep.subr.mxu0 0.0
    %3043 = vmatpush1.xpose.msra.mxu0 0.0
    %3044 = vmatprep.subr.mxu0 0.0
    %3045 = vmatpush1.xpose.msra.mxu0 0.0
    %3046 = vmatprep.subr.mxu0 0.0
    %3047 = vmatpush1.xpose.msra.mxu0 0.0
    %3048 = vmatprep.subr.mxu0 0.0
    %3049 = vmatpush1.xpose.msra.mxu0 0.0
    %3050 = vmatprep.subr.mxu0 0.0
    %3051 = vmatpush1.xpose.msra.mxu0 0.0
    %3052 = vmatprep.subr.mxu0 0.0
    %3053 = vmatpush1.xpose.msra.mxu0 0.0
    %3054 = vmatprep.subr.mxu0 0.0
    %3055 = vmatpush1.xpose.msra.mxu0 0.0
    %3056 = vmatprep.subr.mxu0 0.0
    %3057 = vmatpush1.xpose.msra.mxu0 0.0
    %3058 = vmatprep.subr.mxu0 0.0
    %3059 = vmatpush1.xpose.msra.mxu0 0.0
    %3060 = vmatprep.subr.mxu0 0.0
    %3061 = vmatpush1.xpose.msra.mxu0 0.0
    %3062 = vmatprep.subr.mxu0 0.0
    %3063 = vmatpush1.xpose.msra.mxu0 0.0
    %3064 = vmatprep.subr.mxu0 0.0
    %3065 = vmatpush1.xpose.msra.mxu0 0.0
    %3066 = vmatprep.subr.mxu0 0.0
    %3067 = vmatpush1.xpose.msra.mxu0 0.0
    %3068 = vmatprep.subr.mxu0 0.0
    %3069 = vmatpush1.xpose.msra.mxu0 0.0
    %3070 = vmatprep.subr.mxu0 0.0
    %3071 = vmatpush1.xpose.msra.mxu0 0.0
    %3072 = vmatprep.subr.mxu0 0.0
    %3073 = vmatpush1.xpose.msra.mxu0 0.0
    %3074 = vmatprep.subr.mxu0 0.0
    %3075 = vmatpush1.xpose.msra.mxu0 0.0
    %3076 = vmatprep.subr.mxu0 0.0
    %3077 = vmatpush1.xpose.msra.mxu0 0.0
    %3078 = vmatprep.subr.mxu0 0.0
    %3079 = vmatpush1.xpose.msra.mxu0 0.0
    %3080 = vmatprep.subr.mxu0 0.0
    %3081 = vmatpush1.xpose.msra.mxu0 0.0
    %3082 = vmatprep.mubr.f32.mxu0 0.0
    %3083 = vmatmul.mubr.f32.gmra.mrb[0].mxu0 %v3010
    %v3084 = vpop.f32.mrb[0].mxu0
    %v3085 = vadd.f32 0.0, %v3084
    %v3086 = vpop.f32.mrb[0].mxu0
    %3087 = vmatprep.mubr.f32.mxu0 0.0
    %3088 = vmatmul.mubr.f32.gmra.mrb[0].mxu0 %v3012
    %v3089 = vpop.f32.mrb[0].mxu0
    %v3090 = vadd.f32 0.0, %v3089
    %v3091 = vpop.f32.mrb[0].mxu0
    %3092 = vdwg.mxu0
    %v3093 = vsel %vm308, %v3085, -inf
    %3094 = vmax.xlane.f32.xlu0 %v3093
    %v3095 = vpop.xlane.xlu0 %3094
    %v3096 = vsel %vm308, %v3090, -inf
    %3097 = vmax.xlane.f32.xlu0 %v3096
    %v3098 = vpop.xlane.xlu0 %3097
    %v3099 = vsub.f32 %v3085, %v3095
    %v3100 = vsub.f32 %v3090, %v3098
    %v3101 = vmul.f32 %v3099, 1.442695
    %v3102 = vpow.pop %v3101
    %v3103 = vmul.f32 %v3100, 1.442695
    %v3104 = vpow.pop %v3103
    %v3105 = vsel %vm308, %v3102, 0.0
    %3106 = vadd.xlane.f32.xlu0 %v3105
    %v3107 = vpop.xlane.xlu0 %3106
    %v3108 = vsel %vm308, %v3104, 0.0
    %3109 = vadd.xlane.f32.xlu0 %v3108
    %v3110 = vpop.xlane.xlu0 %3109
    %v3111 = vrcp.pop %v3107
    %v3112 = vrcp.pop %v3110
    %v3113 = vmul.f32 %v3102, %v3111
    %v3114 = vmul.f32 %v3104, %v3112
    %3115 = vrot.lane.b32.xlu0 %v2394, 104
    %v3116 = vpop.permute.xlu0 %3115
    %3117 = vrot.lane.b32.xlu0 %v2397, 104
    %v3118 = vpop.permute.xlu0 %3117
    %v3122 = vsel %vm308, %v3113, 0
    %v3125 = vsel %vm308, %v3114, 0
    %3127 = vmatprep.subr.mxu0 0.0
    %3128 = vmatpush1.msra.mxu0 %v3116
    %3129 = vmatprep.subr.mxu0 0.0
    %3130 = vmatpush1.msra.mxu0 %v3118
    %3131 = vmatprep.subr.mxu0 0.0
    %3132 = vmatpush1.msra.mxu0 0.0
    %3133 = vmatprep.subr.mxu0 0.0
    %3134 = vmatpush1.msra.mxu0 0.0
    %3135 = vmatprep.subr.mxu0 0.0
    %3136 = vmatpush1.msra.mxu0 0.0
    %3137 = vmatprep.subr.mxu0 0.0
    %3138 = vmatpush1.msra.mxu0 0.0
    %3139 = vmatprep.subr.mxu0 0.0
    %3140 = vmatpush1.msra.mxu0 0.0
    %3141 = vmatprep.subr.mxu0 0.0
    %3142 = vmatpush1.msra.mxu0 0.0
    %3143 = vmatprep.subr.mxu0 0.0
    %3144 = vmatpush1.msra.mxu0 0.0
    %3145 = vmatprep.subr.mxu0 0.0
    %3146 = vmatpush1.msra.mxu0 0.0
    %3147 = vmatprep.subr.mxu0 0.0
    %3148 = vmatpush1.msra.mxu0 0.0
    %3149 = vmatprep.subr.mxu0 0.0
    %3150 = vmatpush1.msra.mxu0 0.0
    %3151 = vmatprep.subr.mxu0 0.0
    %3152 = vmatpush1.msra.mxu0 0.0
    %3153 = vmatprep.subr.mxu0 0.0
    %3154 = vmatpush1.msra.mxu0 0.0
    %3155 = vmatprep.subr.mxu0 0.0
    %3156 = vmatpush1.msra.mxu0 0.0
    %3157 = vmatprep.subr.mxu0 0.0
    %3158 = vmatpush1.msra.mxu0 0.0
    %3159 = vmatprep.subr.mxu0 0.0
    %3160 = vmatpush1.msra.mxu0 0.0
    %3161 = vmatprep.subr.mxu0 0.0
    %3162 = vmatpush1.msra.mxu0 0.0
    %3163 = vmatprep.subr.mxu0 0.0
    %3164 = vmatpush1.msra.mxu0 0.0
    %3165 = vmatprep.subr.mxu0 0.0
    %3166 = vmatpush1.msra.mxu0 0.0
    %3167 = vmatprep.subr.mxu0 0.0
    %3168 = vmatpush1.msra.mxu0 0.0
    %3169 = vmatprep.subr.mxu0 0.0
    %3170 = vmatpush1.msra.mxu0 0.0
    %3171 = vmatprep.subr.mxu0 0.0
    %3172 = vmatpush1.msra.mxu0 0.0
    %3173 = vmatprep.subr.mxu0 0.0
    %3174 = vmatpush1.msra.mxu0 0.0
    %3175 = vmatprep.subr.mxu0 0.0
    %3176 = vmatpush1.msra.mxu0 0.0
    %3177 = vmatprep.subr.mxu0 0.0
    %3178 = vmatpush1.msra.mxu0 0.0
    %3179 = vmatprep.subr.mxu0 0.0
    %3180 = vmatpush1.msra.mxu0 0.0
    %3181 = vmatprep.subr.mxu0 0.0
    %3182 = vmatpush1.msra.mxu0 0.0
    %3183 = vmatprep.subr.mxu0 0.0
    %3184 = vmatpush1.msra.mxu0 0.0
    %3185 = vmatprep.subr.mxu0 0.0
    %3186 = vmatpush1.msra.mxu0 0.0
    %3187 = vmatprep.subr.mxu0 0.0
    %3188 = vmatpush1.msra.mxu0 0.0
    %3189 = vmatprep.subr.mxu0 0.0
    %3190 = vmatpush1.msra.mxu0 0.0
    %3191 = vmatprep.mubr.f32.mxu0 0.0
    %3192 = vmatmul.mubr.f32.gmra.mrb[0].mxu0 %v3122
    %v3193 = vpop.f32.mrb[0].mxu0
    %v3194 = vadd.f32 0.0, %v3193
    %v3195 = vpop.f32.mrb[0].mxu0
    %3196 = vmatprep.mubr.f32.mxu0 0.0
    %3197 = vmatmul.mubr.f32.gmra.mrb[0].mxu0 %v3125
    %v3198 = vpop.f32.mrb[0].mxu0
    %v3199 = vadd.f32 0.0, %v3198
    %v3200 = vpop.f32.mrb[0].mxu0
    %3201 = vdwg.mxu0
    %3204 = vrot.lane.b32.xlu0 %v2794, 8
    %v3205 = vpop.permute.xlu0 %3204
    %3206 = vrot.lane.b32.xlu0 %v2799, 8
    %v3207 = vpop.permute.xlu0 %3206
    %3212 = vrot.lane.b32.xlu0 %v2994, 16
    %v3213 = vpop.permute.xlu0 %3212
    %3214 = vrot.lane.b32.xlu0 %v2999, 16
    %v3215 = vpop.permute.xlu0 %3214
    %3220 = vrot.lane.b32.xlu0 %v3194, 24
    %v3221 = vpop.permute.xlu0 %3220
    %3222 = vrot.lane.b32.xlu0 %v3199, 24
    %v3223 = vpop.permute.xlu0 %3222
    %v3226 = vsel %vm224, %v2592, %v3205
    %v3227 = vsel %vm224, %v2597, %v3207
    %v3228 = vsel %vm308, %v3226, %v3213
    %v3229 = vsel %vm308, %v3227, %v3215
    %v3230 = vsel %vm1042, %v3228, %v3221
    %v3231 = vsel %vm1042, %v3229, %v3223
    %3234 = vrot.lane.b32.xlu0 %v2337, 96
    %v3235 = vpop.permute.xlu0 %3234
    %3236 = vrot.lane.b32.xlu0 %v2340, 96
    %v3237 = vpop.permute.xlu0 %3236
    %v3238 = vsel %vm224, %v2337, 0
    %v3240 = vsel %vm224, %v2340, 0
    %v3242 = vsel %vm224, %v3235, 0
    %v3244 = vsel %vm224, %v3237, 0
    %3246 = vmatprep.subr.mxu0 0.0
    %3247 = vmatpush1.xpose.msra.mxu0 %v3242
    %3248 = vmatprep.subr.mxu0 0.0
    %3249 = vmatpush1.xpose.msra.mxu0 %v3244
    %3250 = vmatprep.subr.mxu0 0.0
    %3251 = vmatpush1.xpose.msra.mxu0 0.0
    %3252 = vmatprep.subr.mxu0 0.0
    %3253 = vmatpush1.xpose.msra.mxu0 0.0
    %3254 = vmatprep.subr.mxu0 0.0
    %3255 = vmatpush1.xpose.msra.mxu0 0.0
    %3256 = vmatprep.subr.mxu0 0.0
    %3257 = vmatpush1.xpose.msra.mxu0 0.0
    %3258 = vmatprep.subr.mxu0 0.0
    %3259 = vmatpush1.xpose.msra.mxu0 0.0
    %3260 = vmatprep.subr.mxu0 0.0
    %3261 = vmatpush1.xpose.msra.mxu0 0.0
    %3262 = vmatprep.subr.mxu0 0.0
    %3263 = vmatpush1.xpose.msra.mxu0 0.0
    %3264 = vmatprep.subr.mxu0 0.0
    %3265 = vmatpush1.xpose.msra.mxu0 0.0
    %3266 = vmatprep.subr.mxu0 0.0
    %3267 = vmatpush1.xpose.msra.mxu0 0.0
    %3268 = vmatprep.subr.mxu0 0.0
    %3269 = vmatpush1.xpose.msra.mxu0 0.0
    %3270 = vmatprep.subr.mxu0 0.0
    %3271 = vmatpush1.xpose.msra.mxu0 0.0
    %3272 = vmatprep.subr.mxu0 0.0
    %3273 = vmatpush1.xpose.msra.mxu0 0.0
    %3274 = vmatprep.subr.mxu0 0.0
    %3275 = vmatpush1.xpose.msra.mxu0 0.0
    %3276 = vmatprep.subr.mxu0 0.0
    %3277 = vmatpush1.xpose.msra.mxu0 0.0
    %3278 = vmatprep.subr.mxu0 0.0
    %3279 = vmatpush1.xpose.msra.mxu0 0.0
    %3280 = vmatprep.subr.mxu0 0.0
    %3281 = vmatpush1.xpose.msra.mxu0 0.0
    %3282 = vmatprep.subr.mxu0 0.0
    %3283 = vmatpush1.xpose.msra.mxu0 0.0
    %3284 = vmatprep.subr.mxu0 0.0
    %3285 = vmatpush1.xpose.msra.mxu0 0.0
    %3286 = vmatprep.subr.mxu0 0.0
    %3287 = vmatpush1.xpose.msra.mxu0 0.0
    %3288 = vmatprep.subr.mxu0 0.0
    %3289 = vmatpush1.xpose.msra.mxu0 0.0
    %3290 = vmatprep.subr.mxu0 0.0
    %3291 = vmatpush1.xpose.msra.mxu0 0.0
    %3292 = vmatprep.subr.mxu0 0.0
    %3293 = vmatpush1.xpose.msra.mxu0 0.0
    %3294 = vmatprep.subr.mxu0 0.0
    %3295 = vmatpush1.xpose.msra.mxu0 0.0
    %3296 = vmatprep.subr.mxu0 0.0
    %3297 = vmatpush1.xpose.msra.mxu0 0.0
    %3298 = vmatprep.subr.mxu0 0.0
    %3299 = vmatpush1.xpose.msra.mxu0 0.0
    %3300 = vmatprep.subr.mxu0 0.0
    %3301 = vmatpush1.xpose.msra.mxu0 0.0
    %3302 = vmatprep.subr.mxu0 0.0
    %3303 = vmatpush1.xpose.msra.mxu0 0.0
    %3304 = vmatprep.subr.mxu0 0.0
    %3305 = vmatpush1.xpose.msra.mxu0 0.0
    %3306 = vmatprep.subr.mxu0 0.0
    %3307 = vmatpush1.xpose.msra.mxu0 0.0
    %3308 = vmatprep.subr.mxu0 0.0
    %3309 = vmatpush1.xpose.msra.mxu0 0.0
    %3310 = vmatprep.mubr.f32.mxu0 0.0
    %3311 = vmatmul.mubr.f32.gmra.mrb[0].mxu0 %v3238
    %v3312 = vpop.f32.mrb[0].mxu0
    %v3313 = vadd.f32 0.0, %v3312
    %v3314 = vpop.f32.mrb[0].mxu0
    %3315 = vmatprep.mubr.f32.mxu0 0.0
    %3316 = vmatmul.mubr.f32.gmra.mrb[0].mxu0 %v3240
    %v3317 = vpop.f32.mrb[0].mxu0
    %v3318 = vadd.f32 0.0, %v3317
    %v3319 = vpop.f32.mrb[0].mxu0
    %3320 = vdwg.mxu0
    %v3321 = vsel %vm308, %v3313, -inf
    %3322 = vmax.xlane.f32.xlu0 %v3321
    %v3323 = vpop.xlane.xlu0 %3322
    %v3324 = vsel %vm308, %v3318, -inf
    %3325 = vmax.xlane.f32.xlu0 %v3324
    %v3326 = vpop.xlane.xlu0 %3325
    %v3327 = vsub.f32 %v3313, %v3323
    %v3328 = vsub.f32 %v3318, %v3326
    %v3329 = vmul.f32 %v3327, 1.442695
    %v3330 = vpow.pop %v3329
    %v3331 = vmul.f32 %v3328, 1.442695
    %v3332 = vpow.pop %v3331
    %v3333 = vsel %vm308, %v3330, 0.0
    %3334 = vadd.xlane.f32.xlu0 %v3333
    %v3335 = vpop.xlane.xlu0 %3334
    %v3336 = vsel %vm308, %v3332, 0.0
    %3337 = vadd.xlane.f32.xlu0 %v3336
    %v3338 = vpop.xlane.xlu0 %3337
    %v3339 = vrcp.pop %v3335
    %v3340 = vrcp.pop %v3338
    %v3341 = vmul.f32 %v3330, %v3339
    %v3342 = vmul.f32 %v3332, %v3340
    %v3344 = vsel %vm308, %v3341, 0
    %v3347 = vsel %vm308, %v3342, 0
    %3349 = vmatprep.subr.mxu0 0.0
    %3350 = vmatpush1.msra.mxu0 %v2402
    %3351 = vmatprep.subr.mxu0 0.0
    %3352 = vmatpush1.msra.mxu0 %v2405
    %3353 = vmatprep.subr.mxu0 0.0
    %3354 = vmatpush1.msra.mxu0 0.0
    %3355 = vmatprep.subr.mxu0 0.0
    %3356 = vmatpush1.msra.mxu0 0.0
    %3357 = vmatprep.subr.mxu0 0.0
    %3358 = vmatpush1.msra.mxu0 0.0
    %3359 = vmatprep.subr.mxu0 0.0
    %3360 = vmatpush1.msra.mxu0 0.0
    %3361 = vmatprep.subr.mxu0 0.0
    %3362 = vmatpush1.msra.mxu0 0.0
    %3363 = vmatprep.subr.mxu0 0.0
    %3364 = vmatpush1.msra.mxu0 0.0
    %3365 = vmatprep.subr.mxu0 0.0
    %3366 = vmatpush1.msra.mxu0 0.0
    %3367 = vmatprep.subr.mxu0 0.0
    %3368 = vmatpush1.msra.mxu0 0.0
    %3369 = vmatprep.subr.mxu0 0.0
    %3370 = vmatpush1.msra.mxu0 0.0
    %3371 = vmatprep.subr.mxu0 0.0
    %3372 = vmatpush1.msra.mxu0 0.0
    %3373 = vmatprep.subr.mxu0 0.0
    %3374 = vmatpush1.msra.mxu0 0.0
    %3375 = vmatprep.subr.mxu0 0.0
    %3376 = vmatpush1.msra.mxu0 0.0
    %3377 = vmatprep.subr.mxu0 0.0
    %3378 = vmatpush1.msra.mxu0 0.0
    %3379 = vmatprep.subr.mxu0 0.0
    %3380 = vmatpush1.msra.mxu0 0.0
    %3381 = vmatprep.subr.mxu0 0.0
    %3382 = vmatpush1.msra.mxu0 0.0
    %3383 = vmatprep.subr.mxu0 0.0
    %3384 = vmatpush1.msra.mxu0 0.0
    %3385 = vmatprep.subr.mxu0 0.0
    %3386 = vmatpush1.msra.mxu0 0.0
    %3387 = vmatprep.subr.mxu0 0.0
    %3388 = vmatpush1.msra.mxu0 0.0
    %3389 = vmatprep.subr.mxu0 0.0
    %3390 = vmatpush1.msra.mxu0 0.0
    %3391 = vmatprep.subr.mxu0 0.0
    %3392 = vmatpush1.msra.mxu0 0.0
    %3393 = vmatprep.subr.mxu0 0.0
    %3394 = vmatpush1.msra.mxu0 0.0
    %3395 = vmatprep.subr.mxu0 0.0
    %3396 = vmatpush1.msra.mxu0 0.0
    %3397 = vmatprep.subr.mxu0 0.0
    %3398 = vmatpush1.msra.mxu0 0.0
    %3399 = vmatprep.subr.mxu0 0.0
    %3400 = vmatpush1.msra.mxu0 0.0
    %3401 = vmatprep.subr.mxu0 0.0
    %3402 = vmatpush1.msra.mxu0 0.0
    %3403 = vmatprep.subr.mxu0 0.0
    %3404 = vmatpush1.msra.mxu0 0.0
    %3405 = vmatprep.subr.mxu0 0.0
    %3406 = vmatpush1.msra.mxu0 0.0
    %3407 = vmatprep.subr.mxu0 0.0
    %3408 = vmatpush1.msra.mxu0 0.0
    %3409 = vmatprep.subr.mxu0 0.0
    %3410 = vmatpush1.msra.mxu0 0.0
    %3411 = vmatprep.subr.mxu0 0.0
    %3412 = vmatpush1.msra.mxu0 0.0
    %3413 = vmatprep.mubr.f32.mxu0 0.0
    %3414 = vmatmul.mubr.f32.gmra.mrb[0].mxu0 %v3344
    %v3415 = vpop.f32.mrb[0].mxu0
    %v3416 = vadd.f32 0.0, %v3415
    %v3417 = vpop.f32.mrb[0].mxu0
    %3418 = vmatprep.mubr.f32.mxu0 0.0
    %3419 = vmatmul.mubr.f32.gmra.mrb[0].mxu0 %v3347
    %v3420 = vpop.f32.mrb[0].mxu0
    %v3421 = vadd.f32 0.0, %v3420
    %v3422 = vpop.f32.mrb[0].mxu0
    %3423 = vdwg.mxu0
    %3424 = vrot.lane.b32.xlu0 %v2337, 120
    %v3425 = vpop.permute.xlu0 %3424
    %3426 = vrot.lane.b32.xlu0 %v2340, 120
    %v3427 = vpop.permute.xlu0 %3426
    %3428 = vrot.lane.b32.xlu0 %v2337, 88
    %v3429 = vpop.permute.xlu0 %3428
    %3430 = vrot.lane.b32.xlu0 %v2340, 88
    %v3431 = vpop.permute.xlu0 %3430
    %v3432 = vsel %vm224, %v3425, 0
    %v3434 = vsel %vm224, %v3427, 0
    %v3436 = vsel %vm224, %v3429, 0
    %v3438 = vsel %vm224, %v3431, 0
    %3440 = vmatprep.subr.mxu0 0.0
    %3441 = vmatpush1.xpose.msra.mxu0 %v3436
    %3442 = vmatprep.subr.mxu0 0.0
    %3443 = vmatpush1.xpose.msra.mxu0 %v3438
    %3444 = vmatprep.subr.mxu0 0.0
    %3445 = vmatpush1.xpose.msra.mxu0 0.0
    %3446 = vmatprep.subr.mxu0 0.0
    %3447 = vmatpush1.xpose.msra.mxu0 0.0
    %3448 = vmatprep.subr.mxu0 0.0
    %3449 = vmatpush1.xpose.msra.mxu0 0.0
    %3450 = vmatprep.subr.mxu0 0.0
    %3451 = vmatpush1.xpose.msra.mxu0 0.0
    %3452 = vmatprep.subr.mxu0 0.0
    %3453 = vmatpush1.xpose.msra.mxu0 0.0
    %3454 = vmatprep.subr.mxu0 0.0
    %3455 = vmatpush1.xpose.msra.mxu0 0.0
    %3456 = vmatprep.subr.mxu0 0.0
    %3457 = vmatpush1.xpose.msra.mxu0 0.0
    %3458 = vmatprep.subr.mxu0 0.0
    %3459 = vmatpush1.xpose.msra.mxu0 0.0
    %3460 = vmatprep.subr.mxu0 0.0
    %3461 = vmatpush1.xpose.msra.mxu0 0.0
    %3462 = vmatprep.subr.mxu0 0.0
    %3463 = vmatpush1.xpose.msra.mxu0 0.0
    %3464 = vmatprep.subr.mxu0 0.0
    %3465 = vmatpush1.xpose.msra.mxu0 0.0
    %3466 = vmatprep.subr.mxu0 0.0
    %3467 = vmatpush1.xpose.msra.mxu0 0.0
    %3468 = vmatprep.subr.mxu0 0.0
    %3469 = vmatpush1.xpose.msra.mxu0 0.0
    %3470 = vmatprep.subr.mxu0 0.0
    %3471 = vmatpush1.xpose.msra.mxu0 0.0
    %3472 = vmatprep.subr.mxu0 0.0
    %3473 = vmatpush1.xpose.msra.mxu0 0.0
    %3474 = vmatprep.subr.mxu0 0.0
    %3475 = vmatpush1.xpose.msra.mxu0 0.0
    %3476 = vmatprep.subr.mxu0 0.0
    %3477 = vmatpush1.xpose.msra.mxu0 0.0
    %3478 = vmatprep.subr.mxu0 0.0
    %3479 = vmatpush1.xpose.msra.mxu0 0.0
    %3480 = vmatprep.subr.mxu0 0.0
    %3481 = vmatpush1.xpose.msra.mxu0 0.0
    %3482 = vmatprep.subr.mxu0 0.0
    %3483 = vmatpush1.xpose.msra.mxu0 0.0
    %3484 = vmatprep.subr.mxu0 0.0
    %3485 = vmatpush1.xpose.msra.mxu0 0.0
    %3486 = vmatprep.subr.mxu0 0.0
    %3487 = vmatpush1.xpose.msra.mxu0 0.0
    %3488 = vmatprep.subr.mxu0 0.0
    %3489 = vmatpush1.xpose.msra.mxu0 0.0
    %3490 = vmatprep.subr.mxu0 0.0
    %3491 = vmatpush1.xpose.msra.mxu0 0.0
    %3492 = vmatprep.subr.mxu0 0.0
    %3493 = vmatpush1.xpose.msra.mxu0 0.0
    %3494 = vmatprep.subr.mxu0 0.0
    %3495 = vmatpush1.xpose.msra.mxu0 0.0
    %3496 = vmatprep.subr.mxu0 0.0
    %3497 = vmatpush1.xpose.msra.mxu0 0.0
    %3498 = vmatprep.subr.mxu0 0.0
    %3499 = vmatpush1.xpose.msra.mxu0 0.0
    %3500 = vmatprep.subr.mxu0 0.0
    %3501 = vmatpush1.xpose.msra.mxu0 0.0
    %3502 = vmatprep.subr.mxu0 0.0
    %3503 = vmatpush1.xpose.msra.mxu0 0.0
    %3504 = vmatprep.mubr.f32.mxu0 0.0
    %3505 = vmatmul.mubr.f32.gmra.mrb[0].mxu0 %v3432
    %v3506 = vpop.f32.mrb[0].mxu0
    %v3507 = vadd.f32 0.0, %v3506
    %v3508 = vpop.f32.mrb[0].mxu0
    %3509 = vmatprep.mubr.f32.mxu0 0.0
    %3510 = vmatmul.mubr.f32.gmra.mrb[0].mxu0 %v3434
    %v3511 = vpop.f32.mrb[0].mxu0
    %v3512 = vadd.f32 0.0, %v3511
    %v3513 = vpop.f32.mrb[0].mxu0
    %3514 = vdwg.mxu0
    %v3515 = vsel %vm308, %v3507, -inf
    %3516 = vmax.xlane.f32.xlu0 %v3515
    %v3517 = vpop.xlane.xlu0 %3516
    %v3518 = vsel %vm308, %v3512, -inf
    %3519 = vmax.xlane.f32.xlu0 %v3518
    %v3520 = vpop.xlane.xlu0 %3519
    %v3521 = vsub.f32 %v3507, %v3517
    %v3522 = vsub.f32 %v3512, %v3520
    %v3523 = vmul.f32 %v3521, 1.442695
    %v3524 = vpow.pop %v3523
    %v3525 = vmul.f32 %v3522, 1.442695
    %v3526 = vpow.pop %v3525
    %v3527 = vsel %vm308, %v3524, 0.0
    %3528 = vadd.xlane.f32.xlu0 %v3527
    %v3529 = vpop.xlane.xlu0 %3528
    %v3530 = vsel %vm308, %v3526, 0.0
    %3531 = vadd.xlane.f32.xlu0 %v3530
    %v3532 = vpop.xlane.xlu0 %3531
    %v3533 = vrcp.pop %v3529
    %v3534 = vrcp.pop %v3532
    %v3535 = vmul.f32 %v3524, %v3533
    %v3536 = vmul.f32 %v3526, %v3534
    %3539 = vrot.lane.b32.xlu0 %v2402, 120
    %v3540 = vpop.permute.xlu0 %3539
    %3541 = vrot.lane.b32.xlu0 %v2405, 120
    %v3542 = vpop.permute.xlu0 %3541
    %v3546 = vsel %vm308, %v3535, 0
    %v3549 = vsel %vm308, %v3536, 0
    %3551 = vmatprep.subr.mxu0 0.0
    %3552 = vmatpush1.msra.mxu0 %v3540
    %3553 = vmatprep.subr.mxu0 0.0
    %3554 = vmatpush1.msra.mxu0 %v3542
    %3555 = vmatprep.subr.mxu0 0.0
    %3556 = vmatpush1.msra.mxu0 0.0
    %3557 = vmatprep.subr.mxu0 0.0
    %3558 = vmatpush1.msra.mxu0 0.0
    %3559 = vmatprep.subr.mxu0 0.0
    %3560 = vmatpush1.msra.mxu0 0.0
    %3561 = vmatprep.subr.mxu0 0.0
    %3562 = vmatpush1.msra.mxu0 0.0
    %3563 = vmatprep.subr.mxu0 0.0
    %3564 = vmatpush1.msra.mxu0 0.0
    %3565 = vmatprep.subr.mxu0 0.0
    %3566 = vmatpush1.msra.mxu0 0.0
    %3567 = vmatprep.subr.mxu0 0.0
    %3568 = vmatpush1.msra.mxu0 0.0
    %3569 = vmatprep.subr.mxu0 0.0
    %3570 = vmatpush1.msra.mxu0 0.0
    %3571 = vmatprep.subr.mxu0 0.0
    %3572 = vmatpush1.msra.mxu0 0.0
    %3573 = vmatprep.subr.mxu0 0.0
    %3574 = vmatpush1.msra.mxu0 0.0
    %3575 = vmatprep.subr.mxu0 0.0
    %3576 = vmatpush1.msra.mxu0 0.0
    %3577 = vmatprep.subr.mxu0 0.0
    %3578 = vmatpush1.msra.mxu0 0.0
    %3579 = vmatprep.subr.mxu0 0.0
    %3580 = vmatpush1.msra.mxu0 0.0
    %3581 = vmatprep.subr.mxu0 0.0
    %3582 = vmatpush1.msra.mxu0 0.0
    %3583 = vmatprep.subr.mxu0 0.0
    %3584 = vmatpush1.msra.mxu0 0.0
    %3585 = vmatprep.subr.mxu0 0.0
    %3586 = vmatpush1.msra.mxu0 0.0
    %3587 = vmatprep.subr.mxu0 0.0
    %3588 = vmatpush1.msra.mxu0 0.0
    %3589 = vmatprep.subr.mxu0 0.0
    %3590 = vmatpush1.msra.mxu0 0.0
    %3591 = vmatprep.subr.mxu0 0.0
    %3592 = vmatpush1.msra.mxu0 0.0
    %3593 = vmatprep.subr.mxu0 0.0
    %3594 = vmatpush1.msra.mxu0 0.0
    %3595 = vmatprep.subr.mxu0 0.0
    %3596 = vmatpush1.msra.mxu0 0.0
    %3597 = vmatprep.subr.mxu0 0.0
    %3598 = vmatpush1.msra.mxu0 0.0
    %3599 = vmatprep.subr.mxu0 0.0
    %3600 = vmatpush1.msra.mxu0 0.0
    %3601 = vmatprep.subr.mxu0 0.0
    %3602 = vmatpush1.msra.mxu0 0.0
    %3603 = vmatprep.subr.mxu0 0.0
    %3604 = vmatpush1.msra.mxu0 0.0
    %3605 = vmatprep.subr.mxu0 0.0
    %3606 = vmatpush1.msra.mxu0 0.0
    %3607 = vmatprep.subr.mxu0 0.0
    %3608 = vmatpush1.msra.mxu0 0.0
    %3609 = vmatprep.subr.mxu0 0.0
    %3610 = vmatpush1.msra.mxu0 0.0
    %3611 = vmatprep.subr.mxu0 0.0
    %3612 = vmatpush1.msra.mxu0 0.0
    %3613 = vmatprep.subr.mxu0 0.0
    %3614 = vmatpush1.msra.mxu0 0.0
    %3615 = vmatprep.mubr.f32.mxu0 0.0
    %3616 = vmatmul.mubr.f32.gmra.mrb[0].mxu0 %v3546
    %v3617 = vpop.f32.mrb[0].mxu0
    %v3618 = vadd.f32 0.0, %v3617
    %v3619 = vpop.f32.mrb[0].mxu0
    %3620 = vmatprep.mubr.f32.mxu0 0.0
    %3621 = vmatmul.mubr.f32.gmra.mrb[0].mxu0 %v3549
    %v3622 = vpop.f32.mrb[0].mxu0
    %v3623 = vadd.f32 0.0, %v3622
    %v3624 = vpop.f32.mrb[0].mxu0
    %3625 = vdwg.mxu0
    %3626 = vrot.lane.b32.xlu0 %v2337, 112
    %v3627 = vpop.permute.xlu0 %3626
    %3628 = vrot.lane.b32.xlu0 %v2340, 112
    %v3629 = vpop.permute.xlu0 %3628
    %3630 = vrot.lane.b32.xlu0 %v2337, 80
    %v3631 = vpop.permute.xlu0 %3630
    %3632 = vrot.lane.b32.xlu0 %v2340, 80
    %v3633 = vpop.permute.xlu0 %3632
    %v3634 = vsel %vm224, %v3627, 0
    %v3636 = vsel %vm224, %v3629, 0
    %v3638 = vsel %vm224, %v3631, 0
    %v3640 = vsel %vm224, %v3633, 0
    %3642 = vmatprep.subr.mxu0 0.0
    %3643 = vmatpush1.xpose.msra.mxu0 %v3638
    %3644 = vmatprep.subr.mxu0 0.0
    %3645 = vmatpush1.xpose.msra.mxu0 %v3640
    %3646 = vmatprep.subr.mxu0 0.0
    %3647 = vmatpush1.xpose.msra.mxu0 0.0
    %3648 = vmatprep.subr.mxu0 0.0
    %3649 = vmatpush1.xpose.msra.mxu0 0.0
    %3650 = vmatprep.subr.mxu0 0.0
    %3651 = vmatpush1.xpose.msra.mxu0 0.0
    %3652 = vmatprep.subr.mxu0 0.0
    %3653 = vmatpush1.xpose.msra.mxu0 0.0
    %3654 = vmatprep.subr.mxu0 0.0
    %3655 = vmatpush1.xpose.msra.mxu0 0.0
    %3656 = vmatprep.subr.mxu0 0.0
    %3657 = vmatpush1.xpose.msra.mxu0 0.0
    %3658 = vmatprep.subr.mxu0 0.0
    %3659 = vmatpush1.xpose.msra.mxu0 0.0
    %3660 = vmatprep.subr.mxu0 0.0
    %3661 = vmatpush1.xpose.msra.mxu0 0.0
    %3662 = vmatprep.subr.mxu0 0.0
    %3663 = vmatpush1.xpose.msra.mxu0 0.0
    %3664 = vmatprep.subr.mxu0 0.0
    %3665 = vmatpush1.xpose.msra.mxu0 0.0
    %3666 = vmatprep.subr.mxu0 0.0
    %3667 = vmatpush1.xpose.msra.mxu0 0.0
    %3668 = vmatprep.subr.mxu0 0.0
    %3669 = vmatpush1.xpose.msra.mxu0 0.0
    %3670 = vmatprep.subr.mxu0 0.0
    %3671 = vmatpush1.xpose.msra.mxu0 0.0
    %3672 = vmatprep.subr.mxu0 0.0
    %3673 = vmatpush1.xpose.msra.mxu0 0.0
    %3674 = vmatprep.subr.mxu0 0.0
    %3675 = vmatpush1.xpose.msra.mxu0 0.0
    %3676 = vmatprep.subr.mxu0 0.0
    %3677 = vmatpush1.xpose.msra.mxu0 0.0
    %3678 = vmatprep.subr.mxu0 0.0
    %3679 = vmatpush1.xpose.msra.mxu0 0.0
    %3680 = vmatprep.subr.mxu0 0.0
    %3681 = vmatpush1.xpose.msra.mxu0 0.0
    %3682 = vmatprep.subr.mxu0 0.0
    %3683 = vmatpush1.xpose.msra.mxu0 0.0
    %3684 = vmatprep.subr.mxu0 0.0
    %3685 = vmatpush1.xpose.msra.mxu0 0.0
    %3686 = vmatprep.subr.mxu0 0.0
    %3687 = vmatpush1.xpose.msra.mxu0 0.0
    %3688 = vmatprep.subr.mxu0 0.0
    %3689 = vmatpush1.xpose.msra.mxu0 0.0
    %3690 = vmatprep.subr.mxu0 0.0
    %3691 = vmatpush1.xpose.msra.mxu0 0.0
    %3692 = vmatprep.subr.mxu0 0.0
    %3693 = vmatpush1.xpose.msra.mxu0 0.0
    %3694 = vmatprep.subr.mxu0 0.0
    %3695 = vmatpush1.xpose.msra.mxu0 0.0
    %3696 = vmatprep.subr.mxu0 0.0
    %3697 = vmatpush1.xpose.msra.mxu0 0.0
    %3698 = vmatprep.subr.mxu0 0.0
    %3699 = vmatpush1.xpose.msra.mxu0 0.0
    %3700 = vmatprep.subr.mxu0 0.0
    %3701 = vmatpush1.xpose.msra.mxu0 0.0
    %3702 = vmatprep.subr.mxu0 0.0
    %3703 = vmatpush1.xpose.msra.mxu0 0.0
    %3704 = vmatprep.subr.mxu0 0.0
    %3705 = vmatpush1.xpose.msra.mxu0 0.0
    %3706 = vmatprep.mubr.f32.mxu0 0.0
    %3707 = vmatmul.mubr.f32.gmra.mrb[0].mxu0 %v3634
    %v3708 = vpop.f32.mrb[0].mxu0
    %v3709 = vadd.f32 0.0, %v3708
    %v3710 = vpop.f32.mrb[0].mxu0
    %3711 = vmatprep.mubr.f32.mxu0 0.0
    %3712 = vmatmul.mubr.f32.gmra.mrb[0].mxu0 %v3636
    %v3713 = vpop.f32.mrb[0].mxu0
    %v3714 = vadd.f32 0.0, %v3713
    %v3715 = vpop.f32.mrb[0].mxu0
    %3716 = vdwg.mxu0
    %v3717 = vsel %vm308, %v3709, -inf
    %3718 = vmax.xlane.f32.xlu0 %v3717
    %v3719 = vpop.xlane.xlu0 %3718
    %v3720 = vsel %vm308, %v3714, -inf
    %3721 = vmax.xlane.f32.xlu0 %v3720
    %v3722 = vpop.xlane.xlu0 %3721
    %v3723 = vsub.f32 %v3709, %v3719
    %v3724 = vsub.f32 %v3714, %v3722
    %v3725 = vmul.f32 %v3723, 1.442695
    %v3726 = vpow.pop %v3725
    %v3727 = vmul.f32 %v3724, 1.442695
    %v3728 = vpow.pop %v3727
    %v3729 = vsel %vm308, %v3726, 0.0
    %3730 = vadd.xlane.f32.xlu0 %v3729
    %v3731 = vpop.xlane.xlu0 %3730
    %v3732 = vsel %vm308, %v3728, 0.0
    %3733 = vadd.xlane.f32.xlu0 %v3732
    %v3734 = vpop.xlane.xlu0 %3733
    %v3735 = vrcp.pop %v3731
    %v3736 = vrcp.pop %v3734
    %v3737 = vmul.f32 %v3726, %v3735
    %v3738 = vmul.f32 %v3728, %v3736
    %3739 = vrot.lane.b32.xlu0 %v2402, 112
    %v3740 = vpop.permute.xlu0 %3739
    %3741 = vrot.lane.b32.xlu0 %v2405, 112
    %v3742 = vpop.permute.xlu0 %3741
    %v3746 = vsel %vm308, %v3737, 0
    %v3749 = vsel %vm308, %v3738, 0
    %3751 = vmatprep.subr.mxu0 0.0
    %3752 = vmatpush1.msra.mxu0 %v3740
    %3753 = vmatprep.subr.mxu0 0.0
    %3754 = vmatpush1.msra.mxu0 %v3742
    %3755 = vmatprep.subr.mxu0 0.0
    %3756 = vmatpush1.msra.mxu0 0.0
    %3757 = vmatprep.subr.mxu0 0.0
    %3758 = vmatpush1.msra.mxu0 0.0
    %3759 = vmatprep.subr.mxu0 0.0
    %3760 = vmatpush1.msra.mxu0 0.0
    %3761 = vmatprep.subr.mxu0 0.0
    %3762 = vmatpush1.msra.mxu0 0.0
    %3763 = vmatprep.subr.mxu0 0.0
    %3764 = vmatpush1.msra.mxu0 0.0
    %3765 = vmatprep.subr.mxu0 0.0
    %3766 = vmatpush1.msra.mxu0 0.0
    %3767 = vmatprep.subr.mxu0 0.0
    %3768 = vmatpush1.msra.mxu0 0.0
    %3769 = vmatprep.subr.mxu0 0.0
    %3770 = vmatpush1.msra.mxu0 0.0
    %3771 = vmatprep.subr.mxu0 0.0
    %3772 = vmatpush1.msra.mxu0 0.0
    %3773 = vmatprep.subr.mxu0 0.0
    %3774 = vmatpush1.msra.mxu0 0.0
    %3775 = vmatprep.subr.mxu0 0.0
    %3776 = vmatpush1.msra.mxu0 0.0
    %3777 = vmatprep.subr.mxu0 0.0
    %3778 = vmatpush1.msra.mxu0 0.0
    %3779 = vmatprep.subr.mxu0 0.0
    %3780 = vmatpush1.msra.mxu0 0.0
    %3781 = vmatprep.subr.mxu0 0.0
    %3782 = vmatpush1.msra.mxu0 0.0
    %3783 = vmatprep.subr.mxu0 0.0
    %3784 = vmatpush1.msra.mxu0 0.0
    %3785 = vmatprep.subr.mxu0 0.0
    %3786 = vmatpush1.msra.mxu0 0.0
    %3787 = vmatprep.subr.mxu0 0.0
    %3788 = vmatpush1.msra.mxu0 0.0
    %3789 = vmatprep.subr.mxu0 0.0
    %3790 = vmatpush1.msra.mxu0 0.0
    %3791 = vmatprep.subr.mxu0 0.0
    %3792 = vmatpush1.msra.mxu0 0.0
    %3793 = vmatprep.subr.mxu0 0.0
    %3794 = vmatpush1.msra.mxu0 0.0
    %3795 = vmatprep.subr.mxu0 0.0
    %3796 = vmatpush1.msra.mxu0 0.0
    %3797 = vmatprep.subr.mxu0 0.0
    %3798 = vmatpush1.msra.mxu0 0.0
    %3799 = vmatprep.subr.mxu0 0.0
    %3800 = vmatpush1.msra.mxu0 0.0
    %3801 = vmatprep.subr.mxu0 0.0
    %3802 = vmatpush1.msra.mxu0 0.0
    %3803 = vmatprep.subr.mxu0 0.0
    %3804 = vmatpush1.msra.mxu0 0.0
    %3805 = vmatprep.subr.mxu0 0.0
    %3806 = vmatpush1.msra.mxu0 0.0
    %3807 = vmatprep.subr.mxu0 0.0
    %3808 = vmatpush1.msra.mxu0 0.0
    %3809 = vmatprep.subr.mxu0 0.0
    %3810 = vmatpush1.msra.mxu0 0.0
    %3811 = vmatprep.subr.mxu0 0.0
    %3812 = vmatpush1.msra.mxu0 0.0
    %3813 = vmatprep.subr.mxu0 0.0
    %3814 = vmatpush1.msra.mxu0 0.0
    %3815 = vmatprep.mubr.f32.mxu0 0.0
    %3816 = vmatmul.mubr.f32.gmra.mrb[0].mxu0 %v3746
    %v3817 = vpop.f32.mrb[0].mxu0
    %v3818 = vadd.f32 0.0, %v3817
    %v3819 = vpop.f32.mrb[0].mxu0
    %3820 = vmatprep.mubr.f32.mxu0 0.0
    %3821 = vmatmul.mubr.f32.gmra.mrb[0].mxu0 %v3749
    %v3822 = vpop.f32.mrb[0].mxu0
    %v3823 = vadd.f32 0.0, %v3822
    %v3824 = vpop.f32.mrb[0].mxu0
    %3825 = vdwg.mxu0
    %3826 = vrot.lane.b32.xlu0 %v2337, 104
    %v3827 = vpop.permute.xlu0 %3826
    %3828 = vrot.lane.b32.xlu0 %v2340, 104
    %v3829 = vpop.permute.xlu0 %3828
    %3830 = vrot.lane.b32.xlu0 %v2337, 72
    %v3831 = vpop.permute.xlu0 %3830
    %3832 = vrot.lane.b32.xlu0 %v2340, 72
    %v3833 = vpop.permute.xlu0 %3832
    %v3834 = vsel %vm224, %v3827, 0
    %v3836 = vsel %vm224, %v3829, 0
    %v3838 = vsel %vm224, %v3831, 0
    %v3840 = vsel %vm224, %v3833, 0
    %3842 = vmatprep.subr.mxu0 0.0
    %3843 = vmatpush1.xpose.msra.mxu0 %v3838
    %3844 = vmatprep.subr.mxu0 0.0
    %3845 = vmatpush1.xpose.msra.mxu0 %v3840
    %3846 = vmatprep.subr.mxu0 0.0
    %3847 = vmatpush1.xpose.msra.mxu0 0.0
    %3848 = vmatprep.subr.mxu0 0.0
    %3849 = vmatpush1.xpose.msra.mxu0 0.0
    %3850 = vmatprep.subr.mxu0 0.0
    %3851 = vmatpush1.xpose.msra.mxu0 0.0
    %3852 = vmatprep.subr.mxu0 0.0
    %3853 = vmatpush1.xpose.msra.mxu0 0.0
    %3854 = vmatprep.subr.mxu0 0.0
    %3855 = vmatpush1.xpose.msra.mxu0 0.0
    %3856 = vmatprep.subr.mxu0 0.0
    %3857 = vmatpush1.xpose.msra.mxu0 0.0
    %3858 = vmatprep.subr.mxu0 0.0
    %3859 = vmatpush1.xpose.msra.mxu0 0.0
    %3860 = vmatprep.subr.mxu0 0.0
    %3861 = vmatpush1.xpose.msra.mxu0 0.0
    %3862 = vmatprep.subr.mxu0 0.0
    %3863 = vmatpush1.xpose.msra.mxu0 0.0
    %3864 = vmatprep.subr.mxu0 0.0
    %3865 = vmatpush1.xpose.msra.mxu0 0.0
    %3866 = vmatprep.subr.mxu0 0.0
    %3867 = vmatpush1.xpose.msra.mxu0 0.0
    %3868 = vmatprep.subr.mxu0 0.0
    %3869 = vmatpush1.xpose.msra.mxu0 0.0
    %3870 = vmatprep.subr.mxu0 0.0
    %3871 = vmatpush1.xpose.msra.mxu0 0.0
    %3872 = vmatprep.subr.mxu0 0.0
    %3873 = vmatpush1.xpose.msra.mxu0 0.0
    %3874 = vmatprep.subr.mxu0 0.0
    %3875 = vmatpush1.xpose.msra.mxu0 0.0
    %3876 = vmatprep.subr.mxu0 0.0
    %3877 = vmatpush1.xpose.msra.mxu0 0.0
    %3878 = vmatprep.subr.mxu0 0.0
    %3879 = vmatpush1.xpose.msra.mxu0 0.0
    %3880 = vmatprep.subr.mxu0 0.0
    %3881 = vmatpush1.xpose.msra.mxu0 0.0
    %3882 = vmatprep.subr.mxu0 0.0
    %3883 = vmatpush1.xpose.msra.mxu0 0.0
    %3884 = vmatprep.subr.mxu0 0.0
    %3885 = vmatpush1.xpose.msra.mxu0 0.0
    %3886 = vmatprep.subr.mxu0 0.0
    %3887 = vmatpush1.xpose.msra.mxu0 0.0
    %3888 = vmatprep.subr.mxu0 0.0
    %3889 = vmatpush1.xpose.msra.mxu0 0.0
    %3890 = vmatprep.subr.mxu0 0.0
    %3891 = vmatpush1.xpose.msra.mxu0 0.0
    %3892 = vmatprep.subr.mxu0 0.0
    %3893 = vmatpush1.xpose.msra.mxu0 0.0
    %3894 = vmatprep.subr.mxu0 0.0
    %3895 = vmatpush1.xpose.msra.mxu0 0.0
    %3896 = vmatprep.subr.mxu0 0.0
    %3897 = vmatpush1.xpose.msra.mxu0 0.0
    %3898 = vmatprep.subr.mxu0 0.0
    %3899 = vmatpush1.xpose.msra.mxu0 0.0
    %3900 = vmatprep.subr.mxu0 0.0
    %3901 = vmatpush1.xpose.msra.mxu0 0.0
    %3902 = vmatprep.subr.mxu0 0.0
    %3903 = vmatpush1.xpose.msra.mxu0 0.0
    %3904 = vmatprep.subr.mxu0 0.0
    %3905 = vmatpush1.xpose.msra.mxu0 0.0
    %3906 = vmatprep.mubr.f32.mxu0 0.0
    %3907 = vmatmul.mubr.f32.gmra.mrb[0].mxu0 %v3834
    %v3908 = vpop.f32.mrb[0].mxu0
    %v3909 = vadd.f32 0.0, %v3908
    %v3910 = vpop.f32.mrb[0].mxu0
    %3911 = vmatprep.mubr.f32.mxu0 0.0
    %3912 = vmatmul.mubr.f32.gmra.mrb[0].mxu0 %v3836
    %v3913 = vpop.f32.mrb[0].mxu0
    %v3914 = vadd.f32 0.0, %v3913
    %v3915 = vpop.f32.mrb[0].mxu0
    %3916 = vdwg.mxu0
    %v3917 = vsel %vm308, %v3909, -inf
    %3918 = vmax.xlane.f32.xlu0 %v3917
    %v3919 = vpop.xlane.xlu0 %3918
    %v3920 = vsel %vm308, %v3914, -inf
    %3921 = vmax.xlane.f32.xlu0 %v3920
    %v3922 = vpop.xlane.xlu0 %3921
    %v3923 = vsub.f32 %v3909, %v3919
    %v3924 = vsub.f32 %v3914, %v3922
    %v3925 = vmul.f32 %v3923, 1.442695
    %v3926 = vpow.pop %v3925
    %v3927 = vmul.f32 %v3924, 1.442695
    %v3928 = vpow.pop %v3927
    %v3929 = vsel %vm308, %v3926, 0.0
    %3930 = vadd.xlane.f32.xlu0 %v3929
    %v3931 = vpop.xlane.xlu0 %3930
    %v3932 = vsel %vm308, %v3928, 0.0
    %3933 = vadd.xlane.f32.xlu0 %v3932
    %v3934 = vpop.xlane.xlu0 %3933
    %v3935 = vrcp.pop %v3931
    %v3936 = vrcp.pop %v3934
    %v3937 = vmul.f32 %v3926, %v3935
    %v3938 = vmul.f32 %v3928, %v3936
    %3939 = vrot.lane.b32.xlu0 %v2402, 104
    %v3940 = vpop.permute.xlu0 %3939
    %3941 = vrot.lane.b32.xlu0 %v2405, 104
    %v3942 = vpop.permute.xlu0 %3941
    %v3946 = vsel %vm308, %v3937, 0
    %v3949 = vsel %vm308, %v3938, 0
    %3951 = vmatprep.subr.mxu0 0.0
    %3952 = vmatpush1.msra.mxu0 %v3940
    %3953 = vmatprep.subr.mxu0 0.0
    %3954 = vmatpush1.msra.mxu0 %v3942
    %3955 = vmatprep.subr.mxu0 0.0
    %3956 = vmatpush1.msra.mxu0 0.0
    %3957 = vmatprep.subr.mxu0 0.0
    %3958 = vmatpush1.msra.mxu0 0.0
    %3959 = vmatprep.subr.mxu0 0.0
    %3960 = vmatpush1.msra.mxu0 0.0
    %3961 = vmatprep.subr.mxu0 0.0
    %3962 = vmatpush1.msra.mxu0 0.0
    %3963 = vmatprep.subr.mxu0 0.0
    %3964 = vmatpush1.msra.mxu0 0.0
    %3965 = vmatprep.subr.mxu0 0.0
    %3966 = vmatpush1.msra.mxu0 0.0
    %3967 = vmatprep.subr.mxu0 0.0
    %3968 = vmatpush1.msra.mxu0 0.0
    %3969 = vmatprep.subr.mxu0 0.0
    %3970 = vmatpush1.msra.mxu0 0.0
    %3971 = vmatprep.subr.mxu0 0.0
    %3972 = vmatpush1.msra.mxu0 0.0
    %3973 = vmatprep.subr.mxu0 0.0
    %3974 = vmatpush1.msra.mxu0 0.0
    %3975 = vmatprep.subr.mxu0 0.0
    %3976 = vmatpush1.msra.mxu0 0.0
    %3977 = vmatprep.subr.mxu0 0.0
    %3978 = vmatpush1.msra.mxu0 0.0
    %3979 = vmatprep.subr.mxu0 0.0
    %3980 = vmatpush1.msra.mxu0 0.0
    %3981 = vmatprep.subr.mxu0 0.0
    %3982 = vmatpush1.msra.mxu0 0.0
    %3983 = vmatprep.subr.mxu0 0.0
    %3984 = vmatpush1.msra.mxu0 0.0
    %3985 = vmatprep.subr.mxu0 0.0
    %3986 = vmatpush1.msra.mxu0 0.0
    %3987 = vmatprep.subr.mxu0 0.0
    %3988 = vmatpush1.msra.mxu0 0.0
    %3989 = vmatprep.subr.mxu0 0.0
    %3990 = vmatpush1.msra.mxu0 0.0
    %3991 = vmatprep.subr.mxu0 0.0
    %3992 = vmatpush1.msra.mxu0 0.0
    %3993 = vmatprep.subr.mxu0 0.0
    %3994 = vmatpush1.msra.mxu0 0.0
    %3995 = vmatprep.subr.mxu0 0.0
    %3996 = vmatpush1.msra.mxu0 0.0
    %3997 = vmatprep.subr.mxu0 0.0
    %3998 = vmatpush1.msra.mxu0 0.0
    %3999 = vmatprep.subr.mxu0 0.0
    %4000 = vmatpush1.msra.mxu0 0.0
    %4001 = vmatprep.subr.mxu0 0.0
    %4002 = vmatpush1.msra.mxu0 0.0
    %4003 = vmatprep.subr.mxu0 0.0
    %4004 = vmatpush1.msra.mxu0 0.0
    %4005 = vmatprep.subr.mxu0 0.0
    %4006 = vmatpush1.msra.mxu0 0.0
    %4007 = vmatprep.subr.mxu0 0.0
    %4008 = vmatpush1.msra.mxu0 0.0
    %4009 = vmatprep.subr.mxu0 0.0
    %4010 = vmatpush1.msra.mxu0 0.0
    %4011 = vmatprep.subr.mxu0 0.0
    %4012 = vmatpush1.msra.mxu0 0.0
    %4013 = vmatprep.subr.mxu0 0.0
    %4014 = vmatpush1.msra.mxu0 0.0
    %4015 = vmatprep.mubr.f32.mxu0 0.0
    %4016 = vmatmul.mubr.f32.gmra.mrb[0].mxu0 %v3946
    %v4017 = vpop.f32.mrb[0].mxu0
    %v4018 = vadd.f32 0.0, %v4017
    %v4019 = vpop.f32.mrb[0].mxu0
    %4020 = vmatprep.mubr.f32.mxu0 0.0
    %4021 = vmatmul.mubr.f32.gmra.mrb[0].mxu0 %v3949
    %v4022 = vpop.f32.mrb[0].mxu0
    %v4023 = vadd.f32 0.0, %v4022
    %v4024 = vpop.f32.mrb[0].mxu0
    %4025 = vdwg.mxu0
    %4028 = vrot.lane.b32.xlu0 %v3618, 8
    %v4029 = vpop.permute.xlu0 %4028
    %4030 = vrot.lane.b32.xlu0 %v3623, 8
    %v4031 = vpop.permute.xlu0 %4030
    %4036 = vrot.lane.b32.xlu0 %v3818, 16
    %v4037 = vpop.permute.xlu0 %4036
    %4038 = vrot.lane.b32.xlu0 %v3823, 16
    %v4039 = vpop.permute.xlu0 %4038
    %4044 = vrot.lane.b32.xlu0 %v4018, 24
    %v4045 = vpop.permute.xlu0 %4044
    %4046 = vrot.lane.b32.xlu0 %v4023, 24
    %v4047 = vpop.permute.xlu0 %4046
    %v4050 = vsel %vm224, %v3416, %v4029
    %v4051 = vsel %vm224, %v3421, %v4031
    %v4052 = vsel %vm308, %v4050, %v4037
    %v4053 = vsel %vm308, %v4051, %v4039
    %v4054 = vsel %vm1042, %v4052, %v4045
    %v4055 = vsel %vm1042, %v4053, %v4047
    %v4056 = vpack.c.bf16 %v3231, %v3230
    %v4057 = vpack.c.bf16 %v4055, %v4054
    %v4058 = vlaneseq
    %v4059 = vshrl.u32 %v4058, 7
    %v4060 = vsub.s32 2, %v4059
    %v4061 = vrot.slane %v2262, %v4060
    %4062 = vrot.lane.b32.xlu0 %v2284, 32
    %v4063 = vpop.permute.xlu0 %4062
    %4064 = vrot.lane.b32.xlu0 %v2285, 32
    %v4065 = vpop.permute.xlu0 %4064
    %v4069 = vsel %vm97, %v4056, 0
    %v4072 = vsel %vm97, %v4057, 0
    %4074 = vmatprep.subr.bf16.mxu0 0
    %4075 = vmatpush1.bf16.msra.mxu0 %v4063
    %4076 = vmatprep.subr.bf16.mxu0 0
    %4077 = vmatpush1.bf16.msra.mxu0 %v4065
    %4078 = vmatprep.subr.bf16.mxu0 0
    %4079 = vmatpush1.bf16.msra.mxu0 0
    %4080 = vmatprep.subr.bf16.mxu0 0
    %4081 = vmatpush1.bf16.msra.mxu0 0
    %4082 = vmatprep.subr.bf16.mxu0 0
    %4083 = vmatpush1.bf16.msra.mxu0 0
    %4084 = vmatprep.subr.bf16.mxu0 0
    %4085 = vmatpush1.bf16.msra.mxu0 0
    %4086 = vmatprep.subr.bf16.mxu0 0
    %4087 = vmatpush1.bf16.msra.mxu0 0
    %4088 = vmatprep.subr.bf16.mxu0 0
    %4089 = vmatpush1.bf16.msra.mxu0 0
    %4090 = vmatprep.subr.bf16.mxu0 0
    %4091 = vmatpush1.bf16.msra.mxu0 0
    %4092 = vmatprep.subr.bf16.mxu0 0
    %4093 = vmatpush1.bf16.msra.mxu0 0
    %4094 = vmatprep.subr.bf16.mxu0 0
    %4095 = vmatpush1.bf16.msra.mxu0 0
    %4096 = vmatprep.subr.bf16.mxu0 0
    %4097 = vmatpush1.bf16.msra.mxu0 0
    %4098 = vmatprep.subr.bf16.mxu0 0
    %4099 = vmatpush1.bf16.msra.mxu0 0
    %4100 = vmatprep.subr.bf16.mxu0 0
    %4101 = vmatpush1.bf16.msra.mxu0 0
    %4102 = vmatprep.subr.bf16.mxu0 0
    %4103 = vmatpush1.bf16.msra.mxu0 0
    %4104 = vmatprep.subr.bf16.mxu0 0
    %4105 = vmatpush1.bf16.msra.mxu0 0
    %4106 = vmatprep.mubr.bf16.mxu0 0
    %4107 = vmatmul.mubr.bf16.gmra.mrb[0].mxu0 %v4069
    %v4108 = vpop.f32.mrb[0].mxu0
    %v4109 = vadd.f32 %v4061, %v4108
    %v4110 = vpop.f32.mrb[0].mxu0
    %v4111 = vpop.f32.mrb[0].mxu0
    %v4112 = vadd.f32 %v4061, %v4111
    %v4113 = vpop.f32.mrb[0].mxu0
    %4114 = vmatprep.mubr.bf16.mxu0 0
    %4115 = vmatmul.mubr.bf16.gmra.mrb[0].mxu0 %v4072
    %v4116 = vpop.f32.mrb[0].mxu0
    %v4117 = vadd.f32 %v4061, %v4116
    %v4118 = vpop.f32.mrb[0].mxu0
    %v4119 = vpop.f32.mrb[0].mxu0
    %v4120 = vadd.f32 %v4061, %v4119
    %v4121 = vpop.f32.mrb[0].mxu0
    %4122 = vdwg.mxu0
    %v4123 = vadd.f32 %v2240, %v4109
    %v4124 = vadd.f32 %v2241, %v4112
    %v4125 = vadd.f32 %v2242, %v4117
    %v4126 = vadd.f32 %v2243, %v4120
    %v4127 = vsel %vm97, %v4123, 0.0
    %4128 = vadd.xlane.f32.xlu0 %v4127
    %v4129 = vpop.xlane.xlu0 %4128
    %v4130 = vsel %vm97, %v4124, 0.0
    %4131 = vadd.xlane.f32.xlu0 %v4130
    %v4132 = vpop.xlane.xlu0 %4131
    %v4133 = vsel %vm97, %v4125, 0.0
    %4134 = vadd.xlane.f32.xlu0 %v4133
    %v4135 = vpop.xlane.xlu0 %4134
    %v4136 = vsel %vm97, %v4126, 0.0
    %4137 = vadd.xlane.f32.xlu0 %v4136
    %v4138 = vpop.xlane.xlu0 %4137
    %v4139 = vmul.f32 %v4129, %v1952
    %v4140 = vmul.f32 %v4132, %v1952
    %v4141 = vmul.f32 %v4135, %v1952
    %v4142 = vmul.f32 %v4138, %v1952
    %v4143 = vsub.f32 %v4123, %v4139
    %v4144 = vsub.f32 %v4124, %v4140
    %v4145 = vsub.f32 %v4125, %v4141
    %v4146 = vsub.f32 %v4126, %v4142
    %v4147 = vmul.f32 %v4143, %v4143
    %v4148 = vmul.f32 %v4144, %v4144
    %v4149 = vmul.f32 %v4145, %v4145
    %v4150 = vmul.f32 %v4146, %v4146
    %v4151 = vsel %vm97, %v4147, 0.0
    %4152 = vadd.xlane.f32.xlu0 %v4151
    %v4153 = vpop.xlane.xlu0 %4152
    %v4154 = vsel %vm97, %v4148, 0.0
    %4155 = vadd.xlane.f32.xlu0 %v4154
    %v4156 = vpop.xlane.xlu0 %4155
    %v4157 = vsel %vm97, %v4149, 0.0
    %4158 = vadd.xlane.f32.xlu0 %v4157
    %v4159 = vpop.xlane.xlu0 %4158
    %v4160 = vsel %vm97, %v4150, 0.0
    %4161 = vadd.xlane.f32.xlu0 %v4160
    %v4162 = vpop.xlane.xlu0 %4161
    %v4163 = vmul.f32 %v4153, %v1952
    %v4164 = vmul.f32 %v4156, %v1952
    %v4165 = vmul.f32 %v4159, %v1952
    %v4166 = vmul.f32 %v4162, %v1952
    %v4167 = vadd.f32 %v4163, 1e-05
    %v4168 = vadd.f32 %v4164, 1e-05
    %v4169 = vadd.f32 %v4165, 1e-05
    %v4170 = vadd.f32 %v4166, 1e-05
    %v4171 = vrsqrt.pop %v4167
    %v4172 = vrsqrt.pop %v4168
    %v4173 = vrsqrt.pop %v4169
    %v4174 = vrsqrt.pop %v4170
    %v4175 = vmul.f32 %v4143, %v4171
    %v4176 = vmul.f32 %v4144, %v4172
    %v4177 = vmul.f32 %v4145, %v4173
    %v4178 = vmul.f32 %v4146, %v4174
    %v4179 = vlaneseq
    %v4180 = vshrl.u32 %v4179, 7
    %v4181 = vsub.s32 5, %v4180
    %v4182 = vrot.slane %v2262, %v4181
    %v4183 = vmul.f32 %v4175, %v4182
    %v4184 = vmul.f32 %v4176, %v4182
    %v4185 = vmul.f32 %v4177, %v4182
    %v4186 = vmul.f32 %v4178, %v4182
    %v4187 = vlaneseq
    %v4188 = vshrl.u32 %v4187, 7
    %v4189 = vsub.s32 6, %v4188
    %v4190 = vrot.slane %v2262, %v4189
    %v4191 = vadd.f32 %v4183, %v4190
    %v4192 = vadd.f32 %v4184, %v4190
    %v4193 = vadd.f32 %v4185, %v4190
    %v4194 = vadd.f32 %v4186, %v4190
    %v4195 = vpack.c.bf16 %v4192, %v4191
    %v4196 = vpack.c.bf16 %v4194, %v4193
    %v4197 = vlaneseq
    %v4198 = vshrl.u32 %v4197, 7
    %v4199 = vsub.s32 3, %v4198
    %v4200 = vrot.slane %v2262, %v4199
    %v4205 = vunpack.c.l.b16 %v2249
    %v4206 = vunpack.c.l.b16 %v2250
    %v4207 = vunpack.c.l.b16 %v2251
    %v4208 = vunpack.c.l.b16 %v2252
    %v4209 = vpack.c.b16 %v4206, %v4205
    %v4210 = vpack.c.b16 %v4208, %v4207
    %v4214 = vsel %vm97, %v4195, 0
    %v4217 = vsel %vm97, %v4196, 0
    %4219 = vmatprep.subr.bf16.mxu0 0
    %4220 = vmatpush1.bf16.msra.mxu0 %v4209
    %4221 = vmatprep.subr.bf16.mxu0 0
    %4222 = vmatpush1.bf16.msra.mxu0 %v4210
    %4223 = vmatprep.subr.bf16.mxu0 0
    %4224 = vmatpush1.bf16.msra.mxu0 0
    %4225 = vmatprep.subr.bf16.mxu0 0
    %4226 = vmatpush1.bf16.msra.mxu0 0
    %4227 = vmatprep.subr.bf16.mxu0 0
    %4228 = vmatpush1.bf16.msra.mxu0 0
    %4229 = vmatprep.subr.bf16.mxu0 0
    %4230 = vmatpush1.bf16.msra.mxu0 0
    %4231 = vmatprep.subr.bf16.mxu0 0
    %4232 = vmatpush1.bf16.msra.mxu0 0
    %4233 = vmatprep.subr.bf16.mxu0 0
    %4234 = vmatpush1.bf16.msra.mxu0 0
    %4235 = vmatprep.subr.bf16.mxu0 0
    %4236 = vmatpush1.bf16.msra.mxu0 0
    %4237 = vmatprep.subr.bf16.mxu0 0
    %4238 = vmatpush1.bf16.msra.mxu0 0
    %4239 = vmatprep.subr.bf16.mxu0 0
    %4240 = vmatpush1.bf16.msra.mxu0 0
    %4241 = vmatprep.subr.bf16.mxu0 0
    %4242 = vmatpush1.bf16.msra.mxu0 0
    %4243 = vmatprep.subr.bf16.mxu0 0
    %4244 = vmatpush1.bf16.msra.mxu0 0
    %4245 = vmatprep.subr.bf16.mxu0 0
    %4246 = vmatpush1.bf16.msra.mxu0 0
    %4247 = vmatprep.subr.bf16.mxu0 0
    %4248 = vmatpush1.bf16.msra.mxu0 0
    %4249 = vmatprep.subr.bf16.mxu0 0
    %4250 = vmatpush1.bf16.msra.mxu0 0
    %4251 = vmatprep.mubr.bf16.mxu0 0
    %4252 = vmatmul.mubr.bf16.gmra.mrb[0].mxu0 %v4214
    %v4253 = vpop.f32.mrb[0].mxu0
    %v4254 = vadd.f32 %v4200, %v4253
    %v4255 = vpop.f32.mrb[0].mxu0
    %v4256 = vpop.f32.mrb[0].mxu0
    %v4257 = vadd.f32 %v4200, %v4256
    %v4258 = vpop.f32.mrb[0].mxu0
    %4259 = vmatprep.mubr.bf16.mxu0 0
    %4260 = vmatmul.mubr.bf16.gmra.mrb[0].mxu0 %v4217
    %v4261 = vpop.f32.mrb[0].mxu0
    %v4262 = vadd.f32 %v4200, %v4261
    %v4263 = vpop.f32.mrb[0].mxu0
    %v4264 = vpop.f32.mrb[0].mxu0
    %v4265 = vadd.f32 %v4200, %v4264
    %v4266 = vpop.f32.mrb[0].mxu0
    %4267 = vdwg.mxu0
    %v4268 = vmax.f32 %v4254, 0.0
    %v4269 = vmax.f32 %v4257, 0.0
    %v4270 = vmax.f32 %v4262, 0.0
    %v4271 = vmax.f32 %v4265, 0.0
    %v4272 = vpack.c.bf16 %v4269, %v4268
    %v4273 = vpack.c.bf16 %v4271, %v4270
    %v4274 = vlaneseq
    %v4275 = vshrl.u32 %v4274, 7
    %v4276 = vsub.s32 4, %v4275
    %v4277 = vrot.slane %v2262, %v4276
    %v4286 = vunpack.c.l.b16 %v2253
    %v4287 = vunpack.c.l.b16 %v2254
    %v4288 = vunpack.c.l.b16 %v2255
    %v4289 = vunpack.c.l.b16 %v2256
    %v4290 = vunpack.c.l.b16 %v2257
    %v4291 = vunpack.c.l.b16 %v2258
    %v4292 = vunpack.c.l.b16 %v2259
    %v4293 = vunpack.c.l.b16 %v2260
    %v4294 = vpack.c.b16 %v4287, %v4286
    %v4295 = vpack.c.b16 %v4289, %v4288
    %v4296 = vpack.c.b16 %v4291, %v4290
    %v4297 = vpack.c.b16 %v4293, %v4292
    %v4303 = vsel %vm2116, %v4272, 0
    %v4306 = vsel %vm2116, %v4273, 0
    %4308 = vmatprep.subr.bf16.mxu0 0
    %4309 = vmatpush1.bf16.msra.mxu0 %v4294
    %4310 = vmatprep.subr.bf16.mxu0 0
    %4311 = vmatpush1.bf16.msra.mxu0 %v4295
    %4312 = vmatprep.subr.bf16.mxu0 0
    %4313 = vmatpush1.bf16.msra.mxu0 %v4296
    %4314 = vmatprep.subr.bf16.mxu0 0
    %4315 = vmatpush1.bf16.msra.mxu0 %v4297
    %4316 = vmatprep.subr.bf16.mxu0 0
    %4317 = vmatpush1.bf16.msra.mxu0 0
    %4318 = vmatprep.subr.bf16.mxu0 0
    %4319 = vmatpush1.bf16.msra.mxu0 0
    %4320 = vmatprep.subr.bf16.mxu0 0
    %4321 = vmatpush1.bf16.msra.mxu0 0
    %4322 = vmatprep.subr.bf16.mxu0 0
    %4323 = vmatpush1.bf16.msra.mxu0 0
    %4324 = vmatprep.subr.bf16.mxu0 0
    %4325 = vmatpush1.bf16.msra.mxu0 0
    %4326 = vmatprep.subr.bf16.mxu0 0
    %4327 = vmatpush1.bf16.msra.mxu0 0
    %4328 = vmatprep.subr.bf16.mxu0 0
    %4329 = vmatpush1.bf16.msra.mxu0 0
    %4330 = vmatprep.subr.bf16.mxu0 0
    %4331 = vmatpush1.bf16.msra.mxu0 0
    %4332 = vmatprep.subr.bf16.mxu0 0
    %4333 = vmatpush1.bf16.msra.mxu0 0
    %4334 = vmatprep.subr.bf16.mxu0 0
    %4335 = vmatpush1.bf16.msra.mxu0 0
    %4336 = vmatprep.subr.bf16.mxu0 0
    %4337 = vmatpush1.bf16.msra.mxu0 0
    %4338 = vmatprep.subr.bf16.mxu0 0
    %4339 = vmatpush1.bf16.msra.mxu0 0
    %4340 = vmatprep.mubr.bf16.mxu0 0
    %4341 = vmatmul.mubr.bf16.gmra.mrb[0].mxu0 %v4303
    %v4342 = vpop.f32.mrb[0].mxu0
    %v4343 = vadd.f32 %v4277, %v4342
    %v4344 = vpop.f32.mrb[0].mxu0
    %v4345 = vpop.f32.mrb[0].mxu0
    %v4346 = vadd.f32 %v4277, %v4345
    %v4347 = vpop.f32.mrb[0].mxu0
    %4348 = vmatprep.mubr.bf16.mxu0 0
    %4349 = vmatmul.mubr.bf16.gmra.mrb[0].mxu0 %v4306
    %v4350 = vpop.f32.mrb[0].mxu0
    %v4351 = vadd.f32 %v4277, %v4350
    %v4352 = vpop.f32.mrb[0].mxu0
    %v4353 = vpop.f32.mrb[0].mxu0
    %v4354 = vadd.f32 %v4277, %v4353
    %v4355 = vpop.f32.mrb[0].mxu0
    %4356 = vdwg.mxu0
    %v4357 = vadd.f32 %v4191, %v4343
    %v4358 = vadd.f32 %v4192, %v4346
    %v4359 = vadd.f32 %v4193, %v4351
    %v4360 = vadd.f32 %v4194, %v4354
    %v4361 = vsel %vm97, %v4357, 0.0
    %4362 = vadd.xlane.f32.xlu0 %v4361
    %v4363 = vpop.xlane.xlu0 %4362
    %v4364 = vsel %vm97, %v4358, 0.0
    %4365 = vadd.xlane.f32.xlu0 %v4364
    %v4366 = vpop.xlane.xlu0 %4365
    %v4367 = vsel %vm97, %v4359, 0.0
    %4368 = vadd.xlane.f32.xlu0 %v4367
    %v4369 = vpop.xlane.xlu0 %4368
    %v4370 = vsel %vm97, %v4360, 0.0
    %4371 = vadd.xlane.f32.xlu0 %v4370
    %v4372 = vpop.xlane.xlu0 %4371
    %v4373 = vmul.f32 %v4363, %v1952
    %v4374 = vmul.f32 %v4366, %v1952
    %v4375 = vmul.f32 %v4369, %v1952
    %v4376 = vmul.f32 %v4372, %v1952
    %v4377 = vsub.f32 %v4357, %v4373
    %v4378 = vsub.f32 %v4358, %v4374
    %v4379 = vsub.f32 %v4359, %v4375
    %v4380 = vsub.f32 %v4360, %v4376
    %v4381 = vmul.f32 %v4377, %v4377
    %v4382 = vmul.f32 %v4378, %v4378
    %v4383 = vmul.f32 %v4379, %v4379
    %v4384 = vmul.f32 %v4380, %v4380
    %v4385 = vsel %vm97, %v4381, 0.0
    %4386 = vadd.xlane.f32.xlu0 %v4385
    %v4387 = vpop.xlane.xlu0 %4386
    %v4388 = vsel %vm97, %v4382, 0.0
    %4389 = vadd.xlane.f32.xlu0 %v4388
    %v4390 = vpop.xlane.xlu0 %4389
    %v4391 = vsel %vm97, %v4383, 0.0
    %4392 = vadd.xlane.f32.xlu0 %v4391
    %v4393 = vpop.xlane.xlu0 %4392
    %v4394 = vsel %vm97, %v4384, 0.0
    %4395 = vadd.xlane.f32.xlu0 %v4394
    %v4396 = vpop.xlane.xlu0 %4395
    %v4397 = vmul.f32 %v4387, %v1952
    %v4398 = vmul.f32 %v4390, %v1952
    %v4399 = vmul.f32 %v4393, %v1952
    %v4400 = vmul.f32 %v4396, %v1952
    %v4401 = vadd.f32 %v4397, 1e-05
    %v4402 = vadd.f32 %v4398, 1e-05
    %v4403 = vadd.f32 %v4399, 1e-05
    %v4404 = vadd.f32 %v4400, 1e-05
    %v4405 = vrsqrt.pop %v4401
    %v4406 = vrsqrt.pop %v4402
    %v4407 = vrsqrt.pop %v4403
    %v4408 = vrsqrt.pop %v4404
    %v4409 = vmul.f32 %v4377, %v4405
    %v4410 = vmul.f32 %v4378, %v4406
    %v4411 = vmul.f32 %v4379, %v4407
    %v4412 = vmul.f32 %v4380, %v4408
    %v4413 = vlaneseq
    %v4414 = vshrl.u32 %v4413, 7
    %v4415 = vsub.s32 7, %v4414
    %v4416 = vrot.slane %v2262, %v4415
    %v4417 = vmul.f32 %v4409, %v4416
    %v4418 = vmul.f32 %v4410, %v4416
    %v4419 = vmul.f32 %v4411, %v4416
    %v4420 = vmul.f32 %v4412, %v4416
    %v4421 = vlaneseq
    %v4422 = vshrl.u32 %v4421, 7
    %v4423 = vsub.s32 0, %v4422
    %v4424 = vrot.slane %v2263, %v4423
    %v4425 = vadd.f32 %v4417, %v4424
    %v4426 = vadd.f32 %v4418, %v4424
    %v4427 = vadd.f32 %v4419, %v4424
    %v4428 = vadd.f32 %v4420, %v4424
    %v4429 = vld [vmem:[%s3 + $0x9] sm:$0x1]
    %v4430 = vld [vmem:[%s3 + $0xa] sm:$0x1]
    %v4431 = vsel %vm97, %v4425, 0.0
    %4432 = vadd.xlane.f32.xlu0 %v4431
    %v4433 = vpop.xlane.xlu0 %4432
    %v4434 = vsel %vm97, %v4426, 0.0
    %4435 = vadd.xlane.f32.xlu0 %v4434
    %v4436 = vpop.xlane.xlu0 %4435
    %v4437 = vsel %vm97, %v4427, 0.0
    %4438 = vadd.xlane.f32.xlu0 %v4437
    %v4439 = vpop.xlane.xlu0 %4438
    %v4440 = vsel %vm97, %v4428, 0.0
    %4441 = vadd.xlane.f32.xlu0 %v4440
    %v4442 = vpop.xlane.xlu0 %4441
    %v4443 = vmul.f32 %v4433, %v1952
    %v4444 = vmul.f32 %v4436, %v1952
    %v4445 = vmul.f32 %v4439, %v1952
    %v4446 = vmul.f32 %v4442, %v1952
    %v4447 = vsub.f32 %v4425, %v4443
    %v4448 = vsub.f32 %v4426, %v4444
    %v4449 = vsub.f32 %v4427, %v4445
    %v4450 = vsub.f32 %v4428, %v4446
    %v4451 = vmul.f32 %v4447, %v4447
    %v4452 = vmul.f32 %v4448, %v4448
    %v4453 = vmul.f32 %v4449, %v4449
    %v4454 = vmul.f32 %v4450, %v4450
    %v4455 = vsel %vm97, %v4451, 0.0
    %4456 = vadd.xlane.f32.xlu0 %v4455
    %v4457 = vpop.xlane.xlu0 %4456
    %v4458 = vsel %vm97, %v4452, 0.0
    %4459 = vadd.xlane.f32.xlu0 %v4458
    %v4460 = vpop.xlane.xlu0 %4459
    %v4461 = vsel %vm97, %v4453, 0.0
    %4462 = vadd.xlane.f32.xlu0 %v4461
    %v4463 = vpop.xlane.xlu0 %4462
    %v4464 = vsel %vm97, %v4454, 0.0
    %4465 = vadd.xlane.f32.xlu0 %v4464
    %v4466 = vpop.xlane.xlu0 %4465
    %v4467 = vmul.f32 %v4457, %v1952
    %v4468 = vmul.f32 %v4460, %v1952
    %v4469 = vmul.f32 %v4463, %v1952
    %v4470 = vmul.f32 %v4466, %v1952
    %v4471 = vadd.f32 %v4467, 1e-05
    %v4472 = vadd.f32 %v4468, 1e-05
    %v4473 = vadd.f32 %v4469, 1e-05
    %v4474 = vadd.f32 %v4470, 1e-05
    %v4475 = vrsqrt.pop %v4471
    %v4476 = vrsqrt.pop %v4472
    %v4477 = vrsqrt.pop %v4473
    %v4478 = vrsqrt.pop %v4474
    %v4479 = vmul.f32 %v4447, %v4475
    %v4480 = vmul.f32 %v4448, %v4476
    %v4481 = vmul.f32 %v4449, %v4477
    %v4482 = vmul.f32 %v4450, %v4478
    %v4483 = vlaneseq
    %v4484 = vshrl.u32 %v4483, 7
    %v4485 = vsub.s32 0, %v4484
    %v4486 = vrot.slane %v4429, %v4485
    %v4487 = vmul.f32 %v4479, %v4486
    %v4488 = vmul.f32 %v4480, %v4486
    %v4489 = vmul.f32 %v4481, %v4486
    %v4490 = vmul.f32 %v4482, %v4486
    %v4491 = vlaneseq
    %v4492 = vshrl.u32 %v4491, 7
    %v4493 = vsub.s32 0, %v4492
    %v4494 = vrot.slane %v4430, %v4493
    %v4495 = vadd.f32 %v4487, %v4494
    %v4496 = vadd.f32 %v4488, %v4494
    %v4497 = vadd.f32 %v4489, %v4494
    %v4498 = vadd.f32 %v4490, %v4494
    %4499 = vst.msk [vmem:[#allocation7] sm:$0xff] %vm97, %v4495
    %4500 = vst.msk [vmem:[#allocation7 + $0x8] sm:$0xff] %vm97, %v4496
    %4501 = vst.msk [vmem:[#allocation7 + $0x10] sm:$0xff] %vm97, %v4497
    %4502 = vst.msk [vmem:[#allocation7 + $0x18] sm:$0xff] %vm97, %v4498
    // Predicated region
    $region26: #{tpu_custom_call.1} parent=1 // pred_check
      _
    $region27: #{tpu_custom_call.1} parent=1 // pred_check_branch
      %4504 = sbr.rel (0) target = $region29
    $region28: #{tpu_custom_call.1} parent=1 // pred_region
      %s4506 = ssub.s32 512, 512
      %4507 = vsyncadd [#allocation4], %s4506
      %s4508 = sshll.u32 [#allocation7], 4
      %s4509 = int_to_ptr.vmem [resolvable:$true] %s4508
      %4514 = dma.vmem_to_hbm [thread:$0]  %s4509, 512, %s4, [#allocation4], 128, 128, 8
    $region29: #{tpu_custom_call.1} parent=1 // pred_fallthru
      _
    // Predicated region
    $region30: #{tpu_custom_call.1} parent=1 // pred_check
      _
    $region31: #{tpu_custom_call.1} parent=1 // pred_check_branch
      %4516 = sbr.rel (0) target = $region33
    $region32: #{tpu_custom_call.1} parent=1 // pred_region
      %4517 = dma.done [#allocation4], 512
    $region33: #{tpu_custom_call.1} parent=1 // pred_fallthru
      _
    %4518 = vsyncpa [#allocation3], 1
    %4519 = vsyncpa [#allocation6], 1
    %4520 = vsyncpa [#allocation4], 1

</llo_original>
